<compile_context>
chip_gen: v7x
topology: tpu7x:2x2x1
jax: 0.10.0
libtpu: 0.0.40
codegen_flags: <defaults>
</compile_context>

<pallas_src>
import numpy as np
import jax
import jax.numpy as jnp
from jax.experimental import pallas as pl
from jax.experimental.pallas import tpu as pltpu


def make_dqn_kernel(Cin, H, W, A_pad, Bt, mm_dtype=jnp.bfloat16):
    H1, W1 = H - 1, W - 1              # conv1 output
    Hp, Wp = H1 // 2, W1 // 2          # maxpool output (floor)
    H2, W2 = Hp - 1, Wp - 1            # conv2 output
    H3, W3 = H2 - 1, W2 - 1            # conv3 output
    C1, C2, C3 = 16, 32, 64
    L1, Lp, L2, L3 = W1 * C1, Wp * C1, W2 * C2, W3 * C3

    def conv(x3d, w_ref, b_ref, Ho, L_out):
        # x3d: (Hi, Bt, Wi*Ci) f32.  w_ref: (2, Wi*Ci, Wo*Co) banded weight.
        # Two matmuls (dh = 0, 1); W taps are inside the banded weight.
        Li = x3d.shape[-1]
        y = None
        for dh in range(2):
            tap = x3d[dh:dh + Ho].reshape(Ho * Bt, Li).astype(mm_dtype)
            d = jnp.dot(tap, w_ref[dh], preferred_element_type=jnp.float32)
            y = d if y is None else y + d
        y = jnp.maximum(y + b_ref[...], 0.0)                 # bias + ReLU (f32)
        return y.reshape(Ho, Bt, L_out)

    def kernel(x_ref, w1_ref, b1_ref, se_ref, so_ref, w2_ref, b2_ref,
               w3_ref, b3_ref, wf1_ref, bf1_ref, wf2_ref, bf2_ref, out_ref):
        x = x_ref[...]                                       # (H, Bt, W*Cin)

        # Conv2d(Cin, 16, 2) + ReLU
        c1 = conv(x, w1_ref, b1_ref, H1, L1)                 # (H1, Bt, W1*16)

        # MaxPool2d((2, 2)), stride 2, floor semantics.
        hp = c1[:2 * Hp].reshape(Hp, 2, Bt, L1)              # leading-dim split
        hmax = jnp.maximum(hp[:, 0], hp[:, 1]).reshape(Hp * Bt, L1)
        p1 = jnp.maximum(
            jnp.dot(hmax, se_ref[...], preferred_element_type=jnp.float32),
            jnp.dot(hmax, so_ref[...], preferred_element_type=jnp.float32),
        ).reshape(Hp, Bt, Lp)                                # (Hp, Bt, Wp*16)

        # Conv2d(16, 32, 2) + ReLU ; Conv2d(32, 64, 2) + ReLU
        c2 = conv(p1, w2_ref, b2_ref, H2, L2)                # (H2, Bt, W2*32)
        c3 = conv(c2, w3_ref, b3_ref, H3, L3)                # (H3, Bt, W3*64)

        # actor fc1: accumulated per-image-row matmuls (no flatten relayout)
        h = None
        for r in range(H3):
            d = jnp.dot(c3[r].astype(mm_dtype), wf1_ref[r],
                        preferred_element_type=jnp.float32)
            h = d if h is None else h + d
        h = jnp.tanh(h + bf1_ref[...])                       # (Bt, 64)

        # actor fc2, padded to 128 lane-dense output columns
        out_ref[...] = jnp.dot(h.astype(mm_dtype), wf2_ref[...],
                               preferred_element_type=jnp.float32) + bf2_ref[...]

    return kernel


def init_params(key, input_shape, n_actions):
    Cin, H, W = input_shape
    emb = ((H - 1) // 2 - 2) * ((W - 1) // 2 - 2) * 64
    ks = jax.random.split(key, 10)
    rnd = lambda k, s, sc: sc * jax.random.normal(k, s, jnp.float32)
    return {
        'conv1_w': rnd(ks[0], (16, Cin, 2, 2), 0.2),
        'conv1_b': rnd(ks[1], (16,), 0.1),
        'conv2_w': rnd(ks[2], (32, 16, 2, 2), 0.1),
        'conv2_b': rnd(ks[3], (32,), 0.1),
        'conv3_w': rnd(ks[4], (64, 32, 2, 2), 0.1),
        'conv3_b': rnd(ks[5], (64,), 0.1),
        'fc1_w': rnd(ks[6], (64, emb), 0.05),
        'fc1_b': rnd(ks[7], (64,), 0.1),
        'fc2_w': rnd(ks[8], (n_actions, 64), 0.1),
        'fc2_b': rnd(ks[9], (n_actions,), 0.1),
    }


def pack_params_for_kernel(p, input_shape, A_pad, mm_dtype):
    Cin, H, W = input_shape
    H1, W1 = H - 1, W - 1
    Hp, Wp = H1 // 2, W1 // 2
    H2, W2 = Hp - 1, Wp - 1
    H3, W3 = H2 - 1, W2 - 1
    C1, C2, C3 = 16, 32, 64

    def band(w, Wi, Wo):
        # PyTorch conv weight (Co, Ci, 2, 2) -> (2, Wi*Ci, Wo*Co).
        # Lane convention: input lane = wi*Ci + ci, output lane = wo*Co + co.
        w = np.asarray(w, np.float32)
        Co, Ci = w.shape[0], w.shape[1]
        m = np.zeros((2, Wi * Ci, Wo * Co), np.float32)
        for dh in range(2):
            for dw in range(2):
                for wo in range(Wo):
                    wi = wo + dw
                    if wi >= Wi:
                        continue
                    m[dh, wi * Ci:(wi + 1) * Ci,
                      wo * Co:(wo + 1) * Co] = w[:, :, dh, dw].T
        return jnp.asarray(m, mm_dtype)

    def bias_lanes(b, Wo):
        return jnp.asarray(np.tile(np.asarray(b, np.float32), Wo)[None, :],
                           jnp.float32)

    def pool_select(Wi, Wo, C):
        # 0/1 selectors picking even / odd W-pairs; kept f32 (exact on MXU).
        se = np.zeros((Wi * C, Wo * C), np.float32)
        so = np.zeros((Wi * C, Wo * C), np.float32)
        eye = np.eye(C, dtype=np.float32)
        for j in range(Wo):
            se[(2 * j) * C:(2 * j + 1) * C, j * C:(j + 1) * C] = eye
            so[(2 * j + 1) * C:(2 * j + 2) * C, j * C:(j + 1) * C] = eye
        return jnp.asarray(se), jnp.asarray(so)

    se, so = pool_select(W1, Wp, C1)

    # fc1: PyTorch flatten order is (c, h, w); kernel consumes (h, w*C3 + c).
    wt = np.asarray(p['fc1_w'], np.float32).reshape(64, C3, H3, W3)  # (o,c,h,w)
    wf1 = np.transpose(wt, (2, 3, 1, 0)).reshape(H3, W3 * C3, 64)    # (h, w*c, o)

    A = p['fc2_w'].shape[0]
    wf2 = np.zeros((64, A_pad), np.float32)
    wf2[:, :A] = np.asarray(p['fc2_w'], np.float32).T
    bf2 = np.zeros((1, A_pad), np.float32)
    bf2[0, :A] = np.asarray(p['fc2_b'], np.float32)

    return {
        'w1': band(p['conv1_w'], W, W1), 'b1': bias_lanes(p['conv1_b'], W1),
        'se': se, 'so': so,
        'w2': band(p['conv2_w'], Wp, W2), 'b2': bias_lanes(p['conv2_b'], W2),
        'w3': band(p['conv3_w'], W2, W3), 'b3': bias_lanes(p['conv3_b'], W3),
        'wf1': jnp.asarray(wf1, mm_dtype),
        'bf1': jnp.asarray(np.asarray(p['fc1_b'], np.float32)[None, :]),
        'wf2': jnp.asarray(wf2, mm_dtype),
        'bf2': jnp.asarray(bf2),
    }


def dqn_forward(x_nchw, params, input_shape, n_actions, block_b=64,
                mm_dtype=jnp.bfloat16):
    Cin, H, W = input_shape
    B = x_nchw.shape[0]
    A = n_actions
    A_pad = max(128, ((A + 127) // 128) * 128)

    kp = pack_params_for_kernel(params, input_shape, A_pad, mm_dtype)

    # (B, C, H, W) -> (H, B, W*C): image rows leading, batch on sublanes,
    # W*C lane-dense.  Done once on the host.
    x_hbwc = jnp.transpose(x_nchw, (2, 0, 3, 1)).reshape(H, B, W * Cin)
    x_hbwc = x_hbwc.astype(jnp.float32)

    # Batch tile: multiple of 8 (keeps every in-kernel reshape tile-aligned).
    # Sweep 32..128 on v5e/v6e; keep <=64 on v7x (64 MiB VMEM).  For B > Bt the
    # grid has >=2 steps so the "parallel" axis splits across v7x's two TCs.
    block_b = max(8, (block_b // 8) * 8)
    bt = block_b if B > block_b else ((B + 7) // 8) * 8
    Bp = ((B + bt - 1) // bt) * bt
    if Bp != B:
        x_hbwc = jnp.pad(x_hbwc, ((0, 0), (0, Bp - B), (0, 0)))

    kernel = make_dqn_kernel(Cin, H, W, A_pad, bt, mm_dtype)

    def wspec(a):
        z = (0,) * a.ndim
        return pl.BlockSpec(a.shape, lambda b, _z=z: _z)   # resident weight

    weights = [kp['w1'], kp['b1'], kp['se'], kp['so'],
               kp['w2'], kp['b2'], kp['w3'], kp['b3'],
               kp['wf1'], kp['bf1'], kp['wf2'], kp['bf2']]

    out = pl.pallas_call(
        kernel,
        out_shape=jax.ShapeDtypeStruct((Bp, A_pad), jnp.float32),
        grid_spec=pltpu.PrefetchScalarGridSpec(
            num_scalar_prefetch=0,
            grid=(Bp // bt,),
            in_specs=[pl.BlockSpec((H, bt, W * Cin), lambda b: (0, b, 0))]
                     + [wspec(a) for a in weights],
            out_specs=pl.BlockSpec((bt, A_pad), lambda b: (b, 0)),
        ),
        compiler_params=pltpu.CompilerParams(
            dimension_semantics=("parallel",),       # megacore batch sharding
            vmem_limit_bytes=48 * 1024 * 1024),      # <= v7x's 64 MiB physical
    )(x_hbwc, *weights)
    return out[:B, :A]


def torch_reference(x, p):
    # Pure-JAX replica of the PyTorch forward (NCHW, float32) for verification.
    dn = ('NCHW', 'OIHW', 'NCHW')
    y = jax.lax.conv_general_dilated(x, p['conv1_w'], (1, 1), 'VALID',
                                     dimension_numbers=dn)
    y = jax.nn.relu(y + p['conv1_b'][None, :, None, None])
    y = jax.lax.reduce_window(y, -jnp.inf, jax.lax.max,
                              (1, 1, 2, 2), (1, 1, 2, 2), 'VALID')
    y = jax.lax.conv_general_dilated(y, p['conv2_w'], (1, 1), 'VALID',
                                     dimension_numbers=dn)
    y = jax.nn.relu(y + p['conv2_b'][None, :, None, None])
    y = jax.lax.conv_general_dilated(y, p['conv3_w'], (1, 1), 'VALID',
                                     dimension_numbers=dn)
    y = jax.nn.relu(y + p['conv3_b'][None, :, None, None])
    emb = y.reshape(y.shape[0], -1)
    h = jnp.tanh(emb @ p['fc1_w'].T + p['fc1_b'])
    return h @ p['fc2_w'].T + p['fc2_b']


if __name__ == "__main__":
    input_shape = (4, 16, 16)   # (C, H, W), as in the PyTorch module
    n_actions = 4
    B = 2

    key = jax.random.PRNGKey(0)
    kx, kparams = jax.random.split(key)
    x = jax.random.normal(kx, (B,) + input_shape, jnp.float32)
    params = init_params(kparams, input_shape, n_actions)

    out = dqn_forward(x, params, input_shape, n_actions)
    out = jax.block_until_ready(out)

    ref = torch_reference(x, params)
    assert out.shape == (B, n_actions)
    # bf16 matmul operands with f32 accumulation: verify against a looser
    # tolerance than the pure-f32 version (per review guidance).
    max_err = float(jnp.max(jnp.abs(out - ref)))
    if max_err > 5e-2:
        raise AssertionError(f"kernel/reference mismatch, max abs err = {max_err}")
    print("KERNEL_OK")
</pallas_src>

<mosaic_0001>
module attributes {stable_mosaic.version = 11 : i64} {
  func.func @kernel(%arg0: i32, %arg1: memref<16x8x64xf32, #tpu.memory_space<vmem>>, %arg2: memref<2x64x240xbf16, #tpu.memory_space<vmem>>, %arg3: memref<1x240xf32, #tpu.memory_space<vmem>>, %arg4: memref<240x112xf32, #tpu.memory_space<vmem>>, %arg5: memref<240x112xf32, #tpu.memory_space<vmem>>, %arg6: memref<2x112x192xbf16, #tpu.memory_space<vmem>>, %arg7: memref<1x192xf32, #tpu.memory_space<vmem>>, %arg8: memref<2x192x320xbf16, #tpu.memory_space<vmem>>, %arg9: memref<1x320xf32, #tpu.memory_space<vmem>>, %arg10: memref<5x320x64xbf16, #tpu.memory_space<vmem>>, %arg11: memref<1x64xf32, #tpu.memory_space<vmem>>, %arg12: memref<64x128xbf16, #tpu.memory_space<vmem>>, %arg13: memref<1x128xf32, #tpu.memory_space<vmem>>, %arg14: memref<8x128xf32, #tpu.memory_space<vmem>>) attributes {dimension_semantics = [#tpu.dimension_semantics<parallel>], iteration_bounds = array<i64: 1>, scalar_prefetch = 0 : i64, scratch_operands = 0 : i64, tpu.core_type = #tpu.core_type<tc>, window_params = [{transform_indices = @transform_0, window_bounds = array<i64: 16, 8, 64>}, {pipeline_mode = #tpu.pipeline_mode<synchronous>, transform_indices = @transform_1, window_bounds = array<i64: 2, 64, 240>}, {pipeline_mode = #tpu.pipeline_mode<synchronous>, transform_indices = @transform_2, window_bounds = array<i64: 1, 240>}, {pipeline_mode = #tpu.pipeline_mode<synchronous>, transform_indices = @transform_3, window_bounds = array<i64: 240, 112>}, {pipeline_mode = #tpu.pipeline_mode<synchronous>, transform_indices = @transform_4, window_bounds = array<i64: 240, 112>}, {pipeline_mode = #tpu.pipeline_mode<synchronous>, transform_indices = @transform_5, window_bounds = array<i64: 2, 112, 192>}, {pipeline_mode = #tpu.pipeline_mode<synchronous>, transform_indices = @transform_6, window_bounds = array<i64: 1, 192>}, {pipeline_mode = #tpu.pipeline_mode<synchronous>, transform_indices = @transform_7, window_bounds = array<i64: 2, 192, 320>}, {pipeline_mode = #tpu.pipeline_mode<synchronous>, transform_indices = @transform_8, window_bounds = array<i64: 1, 320>}, {pipeline_mode = #tpu.pipeline_mode<synchronous>, transform_indices = @transform_9, window_bounds = array<i64: 5, 320, 64>}, {pipeline_mode = #tpu.pipeline_mode<synchronous>, transform_indices = @transform_10, window_bounds = array<i64: 1, 64>}, {pipeline_mode = #tpu.pipeline_mode<synchronous>, transform_indices = @transform_11, window_bounds = array<i64: 64, 128>}, {pipeline_mode = #tpu.pipeline_mode<synchronous>, transform_indices = @transform_12, window_bounds = array<i64: 1, 128>}, {transform_indices = @transform_13, window_bounds = array<i64: 8, 128>}]} {
    %c0 = arith.constant 0 : index
    %c0_0 = arith.constant 0 : index
    %c0_1 = arith.constant 0 : index
    %0 = vector.load %arg1[%c0, %c0_0, %c0_1] : memref<16x8x64xf32, #tpu.memory_space<vmem>>, vector<16x8x64xf32>
    %1 = vector.extract_strided_slice %0 {offsets = [0, 0, 0], sizes = [15, 8, 64], strides = [1, 1, 1]} : vector<16x8x64xf32> to vector<15x8x64xf32>
    %2 = vector.shape_cast %1 : vector<15x8x64xf32> to vector<120x64xf32>
    %3 = arith.truncf %2 : vector<120x64xf32> to vector<120x64xbf16>
    %c0_2 = arith.constant 0 : index
    %c0_3 = arith.constant 0 : index
    %c0_4 = arith.constant 0 : index
    %4 = vector.load %arg2[%c0_2, %c0_3, %c0_4] : memref<2x64x240xbf16, #tpu.memory_space<vmem>>, vector<1x64x240xbf16>
    %5 = vector.shape_cast %4 : vector<1x64x240xbf16> to vector<64x240xbf16>
    %cst = arith.constant dense<0.000000e+00> : vector<120x240xf32>
    %6 = tpu.matmul %3, %5, %cst {dimension_numbers = #tpu.dot_dimension_numbers<[1], [0], [0], [1], [0, 0, 1, 1], [], []>} : vector<120x64xbf16>, vector<64x240xbf16>, vector<120x240xf32> -> vector<120x240xf32>
    %7 = vector.extract_strided_slice %0 {offsets = [1, 0, 0], sizes = [15, 8, 64], strides = [1, 1, 1]} : vector<16x8x64xf32> to vector<15x8x64xf32>
    %8 = vector.shape_cast %7 : vector<15x8x64xf32> to vector<120x64xf32>
    %9 = arith.truncf %8 : vector<120x64xf32> to vector<120x64xbf16>
    %c1 = arith.constant 1 : index
    %c0_5 = arith.constant 0 : index
    %c0_6 = arith.constant 0 : index
    %10 = vector.load %arg2[%c1, %c0_5, %c0_6] : memref<2x64x240xbf16, #tpu.memory_space<vmem>>, vector<1x64x240xbf16>
    %11 = vector.shape_cast %10 : vector<1x64x240xbf16> to vector<64x240xbf16>
    %cst_7 = arith.constant dense<0.000000e+00> : vector<120x240xf32>
    %12 = tpu.matmul %9, %11, %cst_7 {dimension_numbers = #tpu.dot_dimension_numbers<[1], [0], [0], [1], [0, 0, 1, 1], [], []>} : vector<120x64xbf16>, vector<64x240xbf16>, vector<120x240xf32> -> vector<120x240xf32>
    %13 = arith.addf %6, %12 : vector<120x240xf32>
    %c0_8 = arith.constant 0 : index
    %c0_9 = arith.constant 0 : index
    %14 = vector.load %arg3[%c0_8, %c0_9] : memref<1x240xf32, #tpu.memory_space<vmem>>, vector<1x240xf32>
    %15 = vector.broadcast %14 : vector<1x240xf32> to vector<120x240xf32>
    %16 = arith.addf %13, %15 : vector<120x240xf32>
    %cst_10 = arith.constant 0.000000e+00 : f32
    %17 = vector.broadcast %cst_10 : f32 to vector<120x240xf32>
    %18 = arith.maximumf %16, %17 : vector<120x240xf32>
    %19 = vector.shape_cast %18 : vector<120x240xf32> to vector<15x8x240xf32>
    %20 = vector.extract_strided_slice %19 {offsets = [0, 0, 0], sizes = [14, 8, 240], strides = [1, 1, 1]} : vector<15x8x240xf32> to vector<14x8x240xf32>
    %21 = vector.shape_cast %20 : vector<14x8x240xf32> to vector<7x2x8x240xf32>
    %22 = vector.extract_strided_slice %21 {offsets = [0, 0, 0, 0], sizes = [7, 1, 8, 240], strides = [1, 1, 1, 1]} : vector<7x2x8x240xf32> to vector<7x1x8x240xf32>
    %23 = vector.shape_cast %22 : vector<7x1x8x240xf32> to vector<7x8x240xf32>
    %24 = vector.extract_strided_slice %21 {offsets = [0, 1, 0, 0], sizes = [7, 1, 8, 240], strides = [1, 1, 1, 1]} : vector<7x2x8x240xf32> to vector<7x1x8x240xf32>
    %25 = vector.shape_cast %24 : vector<7x1x8x240xf32> to vector<7x8x240xf32>
    %26 = arith.maximumf %23, %25 : vector<7x8x240xf32>
    %27 = vector.shape_cast %26 : vector<7x8x240xf32> to vector<56x240xf32>
    %c0_11 = arith.constant 0 : index
    %c0_12 = arith.constant 0 : index
    %28 = vector.load %arg4[%c0_11, %c0_12] : memref<240x112xf32, #tpu.memory_space<vmem>>, vector<240x112xf32>
    %cst_13 = arith.constant dense<0.000000e+00> : vector<56x112xf32>
    %29 = tpu.matmul %27, %28, %cst_13 {dimension_numbers = #tpu.dot_dimension_numbers<[1], [0], [0], [1], [0, 0, 1, 1], [], []>} : vector<56x240xf32>, vector<240x112xf32>, vector<56x112xf32> -> vector<56x112xf32>
    %c0_14 = arith.constant 0 : index
    %c0_15 = arith.constant 0 : index
    %30 = vector.load %arg5[%c0_14, %c0_15] : memref<240x112xf32, #tpu.memory_space<vmem>>, vector<240x112xf32>
    %cst_16 = arith.constant dense<0.000000e+00> : vector<56x112xf32>
    %31 = tpu.matmul %27, %30, %cst_16 {dimension_numbers = #tpu.dot_dimension_numbers<[1], [0], [0], [1], [0, 0, 1, 1], [], []>} : vector<56x240xf32>, vector<240x112xf32>, vector<56x112xf32> -> vector<56x112xf32>
    %32 = arith.maximumf %29, %31 : vector<56x112xf32>
    %33 = vector.shape_cast %32 : vector<56x112xf32> to vector<7x8x112xf32>
    %34 = vector.extract_strided_slice %33 {offsets = [0, 0, 0], sizes = [6, 8, 112], strides = [1, 1, 1]} : vector<7x8x112xf32> to vector<6x8x112xf32>
    %35 = vector.shape_cast %34 : vector<6x8x112xf32> to vector<48x112xf32>
    %36 = arith.truncf %35 : vector<48x112xf32> to vector<48x112xbf16>
    %c0_17 = arith.constant 0 : index
    %c0_18 = arith.constant 0 : index
    %c0_19 = arith.constant 0 : index
    %37 = vector.load %arg6[%c0_17, %c0_18, %c0_19] : memref<2x112x192xbf16, #tpu.memory_space<vmem>>, vector<1x112x192xbf16>
    %38 = vector.shape_cast %37 : vector<1x112x192xbf16> to vector<112x192xbf16>
    %cst_20 = arith.constant dense<0.000000e+00> : vector<48x192xf32>
    %39 = tpu.matmul %36, %38, %cst_20 {dimension_numbers = #tpu.dot_dimension_numbers<[1], [0], [0], [1], [0, 0, 1, 1], [], []>} : vector<48x112xbf16>, vector<112x192xbf16>, vector<48x192xf32> -> vector<48x192xf32>
    %40 = vector.extract_strided_slice %33 {offsets = [1, 0, 0], sizes = [6, 8, 112], strides = [1, 1, 1]} : vector<7x8x112xf32> to vector<6x8x112xf32>
    %41 = vector.shape_cast %40 : vector<6x8x112xf32> to vector<48x112xf32>
    %42 = arith.truncf %41 : vector<48x112xf32> to vector<48x112xbf16>
    %c1_21 = arith.constant 1 : index
    %c0_22 = arith.constant 0 : index
    %c0_23 = arith.constant 0 : index
    %43 = vector.load %arg6[%c1_21, %c0_22, %c0_23] : memref<2x112x192xbf16, #tpu.memory_space<vmem>>, vector<1x112x192xbf16>
    %44 = vector.shape_cast %43 : vector<1x112x192xbf16> to vector<112x192xbf16>
    %cst_24 = arith.constant dense<0.000000e+00> : vector<48x192xf32>
    %45 = tpu.matmul %42, %44, %cst_24 {dimension_numbers = #tpu.dot_dimension_numbers<[1], [0], [0], [1], [0, 0, 1, 1], [], []>} : vector<48x112xbf16>, vector<112x192xbf16>, vector<48x192xf32> -> vector<48x192xf32>
    %46 = arith.addf %39, %45 : vector<48x192xf32>
    %c0_25 = arith.constant 0 : index
    %c0_26 = arith.constant 0 : index
    %47 = vector.load %arg7[%c0_25, %c0_26] : memref<1x192xf32, #tpu.memory_space<vmem>>, vector<1x192xf32>
    %48 = vector.broadcast %47 : vector<1x192xf32> to vector<48x192xf32>
    %49 = arith.addf %46, %48 : vector<48x192xf32>
    %cst_27 = arith.constant 0.000000e+00 : f32
    %50 = vector.broadcast %cst_27 : f32 to vector<48x192xf32>
    %51 = arith.maximumf %49, %50 : vector<48x192xf32>
    %52 = vector.shape_cast %51 : vector<48x192xf32> to vector<6x8x192xf32>
    %53 = vector.extract_strided_slice %52 {offsets = [0, 0, 0], sizes = [5, 8, 192], strides = [1, 1, 1]} : vector<6x8x192xf32> to vector<5x8x192xf32>
    %54 = vector.shape_cast %53 : vector<5x8x192xf32> to vector<40x192xf32>
    %55 = arith.truncf %54 : vector<40x192xf32> to vector<40x192xbf16>
    %c0_28 = arith.constant 0 : index
    %c0_29 = arith.constant 0 : index
    %c0_30 = arith.constant 0 : index
    %56 = vector.load %arg8[%c0_28, %c0_29, %c0_30] : memref<2x192x320xbf16, #tpu.memory_space<vmem>>, vector<1x192x320xbf16>
    %57 = vector.shape_cast %56 : vector<1x192x320xbf16> to vector<192x320xbf16>
    %cst_31 = arith.constant dense<0.000000e+00> : vector<40x320xf32>
    %58 = tpu.matmul %55, %57, %cst_31 {dimension_numbers = #tpu.dot_dimension_numbers<[1], [0], [0], [1], [0, 0, 1, 1], [], []>} : vector<40x192xbf16>, vector<192x320xbf16>, vector<40x320xf32> -> vector<40x320xf32>
    %59 = vector.extract_strided_slice %52 {offsets = [1, 0, 0], sizes = [5, 8, 192], strides = [1, 1, 1]} : vector<6x8x192xf32> to vector<5x8x192xf32>
    %60 = vector.shape_cast %59 : vector<5x8x192xf32> to vector<40x192xf32>
    %61 = arith.truncf %60 : vector<40x192xf32> to vector<40x192xbf16>
    %c1_32 = arith.constant 1 : index
    %c0_33 = arith.constant 0 : index
    %c0_34 = arith.constant 0 : index
    %62 = vector.load %arg8[%c1_32, %c0_33, %c0_34] : memref<2x192x320xbf16, #tpu.memory_space<vmem>>, vector<1x192x320xbf16>
    %63 = vector.shape_cast %62 : vector<1x192x320xbf16> to vector<192x320xbf16>
    %cst_35 = arith.constant dense<0.000000e+00> : vector<40x320xf32>
    %64 = tpu.matmul %61, %63, %cst_35 {dimension_numbers = #tpu.dot_dimension_numbers<[1], [0], [0], [1], [0, 0, 1, 1], [], []>} : vector<40x192xbf16>, vector<192x320xbf16>, vector<40x320xf32> -> vector<40x320xf32>
    %65 = arith.addf %58, %64 : vector<40x320xf32>
    %c0_36 = arith.constant 0 : index
    %c0_37 = arith.constant 0 : index
    %66 = vector.load %arg9[%c0_36, %c0_37] : memref<1x320xf32, #tpu.memory_space<vmem>>, vector<1x320xf32>
    %67 = vector.broadcast %66 : vector<1x320xf32> to vector<40x320xf32>
    %68 = arith.addf %65, %67 : vector<40x320xf32>
    %cst_38 = arith.constant 0.000000e+00 : f32
    %69 = vector.broadcast %cst_38 : f32 to vector<40x320xf32>
    %70 = arith.maximumf %68, %69 : vector<40x320xf32>
    %71 = vector.shape_cast %70 : vector<40x320xf32> to vector<5x8x320xf32>
    %72 = vector.extract_strided_slice %71 {offsets = [0, 0, 0], sizes = [1, 8, 320], strides = [1, 1, 1]} : vector<5x8x320xf32> to vector<1x8x320xf32>
    %73 = vector.shape_cast %72 : vector<1x8x320xf32> to vector<8x320xf32>
    %74 = arith.truncf %73 : vector<8x320xf32> to vector<8x320xbf16>
    %c0_39 = arith.constant 0 : index
    %c0_40 = arith.constant 0 : index
    %c0_41 = arith.constant 0 : index
    %75 = vector.load %arg10[%c0_39, %c0_40, %c0_41] : memref<5x320x64xbf16, #tpu.memory_space<vmem>>, vector<1x320x64xbf16>
    %76 = vector.shape_cast %75 : vector<1x320x64xbf16> to vector<320x64xbf16>
    %cst_42 = arith.constant dense<0.000000e+00> : vector<8x64xf32>
    %77 = tpu.matmul %74, %76, %cst_42 {dimension_numbers = #tpu.dot_dimension_numbers<[1], [0], [0], [1], [0, 0, 1, 1], [], []>} : vector<8x320xbf16>, vector<320x64xbf16>, vector<8x64xf32> -> vector<8x64xf32>
    %78 = vector.extract_strided_slice %71 {offsets = [1, 0, 0], sizes = [1, 8, 320], strides = [1, 1, 1]} : vector<5x8x320xf32> to vector<1x8x320xf32>
    %79 = vector.shape_cast %78 : vector<1x8x320xf32> to vector<8x320xf32>
    %80 = arith.truncf %79 : vector<8x320xf32> to vector<8x320xbf16>
    %c1_43 = arith.constant 1 : index
    %c0_44 = arith.constant 0 : index
    %c0_45 = arith.constant 0 : index
    %81 = vector.load %arg10[%c1_43, %c0_44, %c0_45] : memref<5x320x64xbf16, #tpu.memory_space<vmem>>, vector<1x320x64xbf16>
    %82 = vector.shape_cast %81 : vector<1x320x64xbf16> to vector<320x64xbf16>
    %cst_46 = arith.constant dense<0.000000e+00> : vector<8x64xf32>
    %83 = tpu.matmul %80, %82, %cst_46 {dimension_numbers = #tpu.dot_dimension_numbers<[1], [0], [0], [1], [0, 0, 1, 1], [], []>} : vector<8x320xbf16>, vector<320x64xbf16>, vector<8x64xf32> -> vector<8x64xf32>
    %84 = arith.addf %77, %83 : vector<8x64xf32>
    %85 = vector.extract_strided_slice %71 {offsets = [2, 0, 0], sizes = [1, 8, 320], strides = [1, 1, 1]} : vector<5x8x320xf32> to vector<1x8x320xf32>
    %86 = vector.shape_cast %85 : vector<1x8x320xf32> to vector<8x320xf32>
    %87 = arith.truncf %86 : vector<8x320xf32> to vector<8x320xbf16>
    %c2 = arith.constant 2 : index
    %c0_47 = arith.constant 0 : index
    %c0_48 = arith.constant 0 : index
    %88 = vector.load %arg10[%c2, %c0_47, %c0_48] : memref<5x320x64xbf16, #tpu.memory_space<vmem>>, vector<1x320x64xbf16>
    %89 = vector.shape_cast %88 : vector<1x320x64xbf16> to vector<320x64xbf16>
    %cst_49 = arith.constant dense<0.000000e+00> : vector<8x64xf32>
    %90 = tpu.matmul %87, %89, %cst_49 {dimension_numbers = #tpu.dot_dimension_numbers<[1], [0], [0], [1], [0, 0, 1, 1], [], []>} : vector<8x320xbf16>, vector<320x64xbf16>, vector<8x64xf32> -> vector<8x64xf32>
    %91 = arith.addf %84, %90 : vector<8x64xf32>
    %92 = vector.extract_strided_slice %71 {offsets = [3, 0, 0], sizes = [1, 8, 320], strides = [1, 1, 1]} : vector<5x8x320xf32> to vector<1x8x320xf32>
    %93 = vector.shape_cast %92 : vector<1x8x320xf32> to vector<8x320xf32>
    %94 = arith.truncf %93 : vector<8x320xf32> to vector<8x320xbf16>
    %c3 = arith.constant 3 : index
    %c0_50 = arith.constant 0 : index
    %c0_51 = arith.constant 0 : index
    %95 = vector.load %arg10[%c3, %c0_50, %c0_51] : memref<5x320x64xbf16, #tpu.memory_space<vmem>>, vector<1x320x64xbf16>
    %96 = vector.shape_cast %95 : vector<1x320x64xbf16> to vector<320x64xbf16>
    %cst_52 = arith.constant dense<0.000000e+00> : vector<8x64xf32>
    %97 = tpu.matmul %94, %96, %cst_52 {dimension_numbers = #tpu.dot_dimension_numbers<[1], [0], [0], [1], [0, 0, 1, 1], [], []>} : vector<8x320xbf16>, vector<320x64xbf16>, vector<8x64xf32> -> vector<8x64xf32>
    %98 = arith.addf %91, %97 : vector<8x64xf32>
    %99 = vector.extract_strided_slice %71 {offsets = [4, 0, 0], sizes = [1, 8, 320], strides = [1, 1, 1]} : vector<5x8x320xf32> to vector<1x8x320xf32>
    %100 = vector.shape_cast %99 : vector<1x8x320xf32> to vector<8x320xf32>
    %101 = arith.truncf %100 : vector<8x320xf32> to vector<8x320xbf16>
    %c4 = arith.constant 4 : index
    %c0_53 = arith.constant 0 : index
    %c0_54 = arith.constant 0 : index
    %102 = vector.load %arg10[%c4, %c0_53, %c0_54] : memref<5x320x64xbf16, #tpu.memory_space<vmem>>, vector<1x320x64xbf16>
    %103 = vector.shape_cast %102 : vector<1x320x64xbf16> to vector<320x64xbf16>
    %cst_55 = arith.constant dense<0.000000e+00> : vector<8x64xf32>
    %104 = tpu.matmul %101, %103, %cst_55 {dimension_numbers = #tpu.dot_dimension_numbers<[1], [0], [0], [1], [0, 0, 1, 1], [], []>} : vector<8x320xbf16>, vector<320x64xbf16>, vector<8x64xf32> -> vector<8x64xf32>
    %105 = arith.addf %98, %104 : vector<8x64xf32>
    %c0_56 = arith.constant 0 : index
    %c0_57 = arith.constant 0 : index
    %106 = vector.load %arg11[%c0_56, %c0_57] : memref<1x64xf32, #tpu.memory_space<vmem>>, vector<1x64xf32>
    %107 = vector.broadcast %106 : vector<1x64xf32> to vector<8x64xf32>
    %108 = arith.addf %105, %107 : vector<8x64xf32>
    %109 = math.tanh %108 : vector<8x64xf32>
    %110 = arith.truncf %109 : vector<8x64xf32> to vector<8x64xbf16>
    %c0_58 = arith.constant 0 : index
    %c0_59 = arith.constant 0 : index
    %111 = vector.load %arg12[%c0_58, %c0_59] : memref<64x128xbf16, #tpu.memory_space<vmem>>, vector<64x128xbf16>
    %cst_60 = arith.constant dense<0.000000e+00> : vector<8x128xf32>
    %112 = tpu.matmul %110, %111, %cst_60 {dimension_numbers = #tpu.dot_dimension_numbers<[1], [0], [0], [1], [0, 0, 1, 1], [], []>} : vector<8x64xbf16>, vector<64x128xbf16>, vector<8x128xf32> -> vector<8x128xf32>
    %c0_61 = arith.constant 0 : index
    %c0_62 = arith.constant 0 : index
    %113 = vector.load %arg13[%c0_61, %c0_62] : memref<1x128xf32, #tpu.memory_space<vmem>>, vector<1x128xf32>
    %114 = vector.broadcast %113 : vector<1x128xf32> to vector<8x128xf32>
    %115 = arith.addf %112, %114 : vector<8x128xf32>
    %c0_63 = arith.constant 0 : index
    %c0_64 = arith.constant 0 : index
    %116 = vector.load %arg14[%c0_63, %c0_64] : memref<8x128xf32, #tpu.memory_space<vmem>>, vector<8x128xf32>
    tpu.vector_store %arg14[%c0_63, %c0_64], %115 {strides = array<i32>} : memref<8x128xf32, #tpu.memory_space<vmem>>, vector<8x128xf32>,
    return
  }
  func.func @transform_0(%arg0: i32) -> (i32, i32, i32) {
    %c0_i32 = arith.constant 0 : i32
    %c0_i32_0 = arith.constant 0 : i32
    %c0_i32_1 = arith.constant 0 : i32
    return %c0_i32, %arg0, %c0_i32_0 : i32, i32, i32
  }
  func.func @transform_1(%arg0: i32) -> (i32, i32, i32) {
    %c0_i32 = arith.constant 0 : i32
    %c0_i32_0 = arith.constant 0 : i32
    %c0_i32_1 = arith.constant 0 : i32
    %c0_i32_2 = arith.constant 0 : i32
    return %c0_i32, %c0_i32_0, %c0_i32_1 : i32, i32, i32
  }
  func.func @transform_2(%arg0: i32) -> (i32, i32) {
    %c0_i32 = arith.constant 0 : i32
    %c0_i32_0 = arith.constant 0 : i32
    %c0_i32_1 = arith.constant 0 : i32
    return %c0_i32, %c0_i32_0 : i32, i32
  }
  func.func @transform_3(%arg0: i32) -> (i32, i32) {
    %c0_i32 = arith.constant 0 : i32
    %c0_i32_0 = arith.constant 0 : i32
    %c0_i32_1 = arith.constant 0 : i32
    return %c0_i32, %c0_i32_0 : i32, i32
  }
  func.func @transform_4(%arg0: i32) -> (i32, i32) {
    %c0_i32 = arith.constant 0 : i32
    %c0_i32_0 = arith.constant 0 : i32
    %c0_i32_1 = arith.constant 0 : i32
    return %c0_i32, %c0_i32_0 : i32, i32
  }
  func.func @transform_5(%arg0: i32) -> (i32, i32, i32) {
    %c0_i32 = arith.constant 0 : i32
    %c0_i32_0 = arith.constant 0 : i32
    %c0_i32_1 = arith.constant 0 : i32
    %c0_i32_2 = arith.constant 0 : i32
    return %c0_i32, %c0_i32_0, %c0_i32_1 : i32, i32, i32
  }
  func.func @transform_6(%arg0: i32) -> (i32, i32) {
    %c0_i32 = arith.constant 0 : i32
    %c0_i32_0 = arith.constant 0 : i32
    %c0_i32_1 = arith.constant 0 : i32
    return %c0_i32, %c0_i32_0 : i32, i32
  }
  func.func @transform_7(%arg0: i32) -> (i32, i32, i32) {
    %c0_i32 = arith.constant 0 : i32
    %c0_i32_0 = arith.constant 0 : i32
    %c0_i32_1 = arith.constant 0 : i32
    %c0_i32_2 = arith.constant 0 : i32
    return %c0_i32, %c0_i32_0, %c0_i32_1 : i32, i32, i32
  }
  func.func @transform_8(%arg0: i32) -> (i32, i32) {
    %c0_i32 = arith.constant 0 : i32
    %c0_i32_0 = arith.constant 0 : i32
    %c0_i32_1 = arith.constant 0 : i32
    return %c0_i32, %c0_i32_0 : i32, i32
  }
  func.func @transform_9(%arg0: i32) -> (i32, i32, i32) {
    %c0_i32 = arith.constant 0 : i32
    %c0_i32_0 = arith.constant 0 : i32
    %c0_i32_1 = arith.constant 0 : i32
    %c0_i32_2 = arith.constant 0 : i32
    return %c0_i32, %c0_i32_0, %c0_i32_1 : i32, i32, i32
  }
  func.func @transform_10(%arg0: i32) -> (i32, i32) {
    %c0_i32 = arith.constant 0 : i32
    %c0_i32_0 = arith.constant 0 : i32
    %c0_i32_1 = arith.constant 0 : i32
    return %c0_i32, %c0_i32_0 : i32, i32
  }
  func.func @transform_11(%arg0: i32) -> (i32, i32) {
    %c0_i32 = arith.constant 0 : i32
    %c0_i32_0 = arith.constant 0 : i32
    %c0_i32_1 = arith.constant 0 : i32
    return %c0_i32, %c0_i32_0 : i32, i32
  }
  func.func @transform_12(%arg0: i32) -> (i32, i32) {
    %c0_i32 = arith.constant 0 : i32
    %c0_i32_0 = arith.constant 0 : i32
    %c0_i32_1 = arith.constant 0 : i32
    return %c0_i32, %c0_i32_0 : i32, i32
  }
  func.func @transform_13(%arg0: i32) -> (i32, i32) {
    %c0_i32 = arith.constant 0 : i32
    %c0_i32_0 = arith.constant 0 : i32
    return %arg0, %c0_i32 : i32, i32
  }
}

</mosaic_0001>

<llo_original>
// kernel: tpu_custom_call.1
$region0: #{tpu_custom_call.1}
  #allocation0 [shape = 'u32[]', space=smem, size = 0x4, offset = 0x4, fixed_abs, tag = 'smem constant byte address 0x4 - core index']
  #allocation1 [shape = 'u32[144,128]{1,0:T(1,128)}', space=vmem, size = 0x12000, scoped, tag = 'internal scratch']
  %s0 = inlined_call_operand.vmem [shape: f32[16,8,64], index: 0, kind: input, shape index: {}]
  %s1 = inlined_call_operand.vmem [shape: bf16[2,64,240], index: 1, kind: input, shape index: {}]
  %s2 = inlined_call_operand.vmem [shape: f32[1,240], index: 2, kind: input, shape index: {}]
  %s3 = inlined_call_operand.vmem [shape: f32[240,112], index: 3, kind: input, shape index: {}]
  %s4 = inlined_call_operand.vmem [shape: f32[240,112], index: 4, kind: input, shape index: {}]
  %s5 = inlined_call_operand.vmem [shape: bf16[2,112,192], index: 5, kind: input, shape index: {}]
  %s6 = inlined_call_operand.vmem [shape: f32[1,192], index: 6, kind: input, shape index: {}]
  %s7 = inlined_call_operand.vmem [shape: bf16[2,192,320], index: 7, kind: input, shape index: {}]
  %s8 = inlined_call_operand.vmem [shape: f32[1,320], index: 8, kind: input, shape index: {}]
  %s9 = inlined_call_operand.vmem [shape: bf16[5,320,64], index: 9, kind: input, shape index: {}]
  %s10 = inlined_call_operand.vmem [shape: f32[1,64], index: 10, kind: input, shape index: {}]
  %s11 = inlined_call_operand.vmem [shape: bf16[64,128], index: 11, kind: input, shape index: {}]
  %s12 = inlined_call_operand.vmem [shape: f32[1,128], index: 12, kind: input, shape index: {}]
  %s13 = inlined_call_operand.hbm [shape: f32[8,128], index: 13, kind: output, shape index: {}]
  %s14 = sld [smem:[#allocation0]]
  $region62: #{tpu_custom_call.1} parent=0
    _
  %s16 = ssub.s32 1, %s14
  %s17 = scalar_select 0, %s16, %s14
  $region1: #{tpu_custom_call.1} parent=0
    #allocation2 [shape = 'u8[4096]{0}', space=vmem, size = 0x1000, scoped, tag = 'output window, operand 0, single buffered']
    #allocation3 [shape = 's32[1]{0}', space=sflag, size = 0x4, scoped, tag = 'scoped memory for tpu_custom_call.1']
    %18 = vsyncpa [#allocation3], 0
    // Predicated region
    $region2: #{tpu_custom_call.1} parent=1 // pred_check
      _
    $region3: #{tpu_custom_call.1} parent=1 // pred_check_branch
      %20 = sbr.rel (0) target = $region5
    $region4: #{tpu_custom_call.1} parent=1 // pred_region
      _
    $region5: #{tpu_custom_call.1} parent=1 // pred_fallthru
      _
    // Predicated region
    $region6: #{tpu_custom_call.1} parent=1 // pred_check
      _
    $region7: #{tpu_custom_call.1} parent=1 // pred_check_branch
      %22 = sbr.rel (0) target = $region9
    $region8: #{tpu_custom_call.1} parent=1 // pred_region
      _
    $region9: #{tpu_custom_call.1} parent=1 // pred_fallthru
      _
    // Predicated region
    $region10: #{tpu_custom_call.1} parent=1 // pred_check
      _
    $region11: #{tpu_custom_call.1} parent=1 // pred_check_branch
      %24 = sbr.rel (0) target = $region13
    $region12: #{tpu_custom_call.1} parent=1 // pred_region
      _
    $region13: #{tpu_custom_call.1} parent=1 // pred_fallthru
      _
    // Predicated region
    $region14: #{tpu_custom_call.1} parent=1 // pred_check
      _
    $region15: #{tpu_custom_call.1} parent=1 // pred_check_branch
      %26 = sbr.rel (0) target = $region17
    $region16: #{tpu_custom_call.1} parent=1 // pred_region
      _
    $region17: #{tpu_custom_call.1} parent=1 // pred_fallthru
      _
    // Predicated region
    $region18: #{tpu_custom_call.1} parent=1 // pred_check
      _
    $region19: #{tpu_custom_call.1} parent=1 // pred_check_branch
      %28 = sbr.rel (0) target = $region21
    $region20: #{tpu_custom_call.1} parent=1 // pred_region
      _
    $region21: #{tpu_custom_call.1} parent=1 // pred_fallthru
      _
    // Predicated region
    $region22: #{tpu_custom_call.1} parent=1 // pred_check
      _
    $region23: #{tpu_custom_call.1} parent=1 // pred_check_branch
      %30 = sbr.rel (0) target = $region25
    $region24: #{tpu_custom_call.1} parent=1 // pred_region
      _
    $region25: #{tpu_custom_call.1} parent=1 // pred_fallthru
      _
    // Predicated region
    $region26: #{tpu_custom_call.1} parent=1 // pred_check
      _
    $region27: #{tpu_custom_call.1} parent=1 // pred_check_branch
      %32 = sbr.rel (0) target = $region29
    $region28: #{tpu_custom_call.1} parent=1 // pred_region
      _
    $region29: #{tpu_custom_call.1} parent=1 // pred_fallthru
      _
    // Predicated region
    $region30: #{tpu_custom_call.1} parent=1 // pred_check
      _
    $region31: #{tpu_custom_call.1} parent=1 // pred_check_branch
      %34 = sbr.rel (0) target = $region33
    $region32: #{tpu_custom_call.1} parent=1 // pred_region
      _
    $region33: #{tpu_custom_call.1} parent=1 // pred_fallthru
      _
    // Predicated region
    $region34: #{tpu_custom_call.1} parent=1 // pred_check
      _
    $region35: #{tpu_custom_call.1} parent=1 // pred_check_branch
      %36 = sbr.rel (0) target = $region37
    $region36: #{tpu_custom_call.1} parent=1 // pred_region
      _
    $region37: #{tpu_custom_call.1} parent=1 // pred_fallthru
      _
    // Predicated region
    $region38: #{tpu_custom_call.1} parent=1 // pred_check
      _
    $region39: #{tpu_custom_call.1} parent=1 // pred_check_branch
      %38 = sbr.rel (0) target = $region41
    $region40: #{tpu_custom_call.1} parent=1 // pred_region
      _
    $region41: #{tpu_custom_call.1} parent=1 // pred_fallthru
      _
    // Predicated region
    $region42: #{tpu_custom_call.1} parent=1 // pred_check
      _
    $region43: #{tpu_custom_call.1} parent=1 // pred_check_branch
      %40 = sbr.rel (0) target = $region45
    $region44: #{tpu_custom_call.1} parent=1 // pred_region
      _
    $region45: #{tpu_custom_call.1} parent=1 // pred_fallthru
      _
    // Predicated region
    $region46: #{tpu_custom_call.1} parent=1 // pred_check
      _
    $region47: #{tpu_custom_call.1} parent=1 // pred_check_branch
      %42 = sbr.rel (0) target = $region49
    $region48: #{tpu_custom_call.1} parent=1 // pred_region
      _
    $region49: #{tpu_custom_call.1} parent=1 // pred_fallthru
      _
    // Predicated region
    $region50: #{tpu_custom_call.1} parent=1 // pred_check
      _
    $region51: #{tpu_custom_call.1} parent=1 // pred_check_branch
      %44 = sbr.rel (0) target = $region53
    $region52: #{tpu_custom_call.1} parent=1 // pred_region
      _
    $region53: #{tpu_custom_call.1} parent=1 // pred_fallthru
      _
    %v46 = vld [vmem:[%s0] sm:$0xff]
    %v47 = vld [vmem:[%s0 + $0x8] sm:$0xff]
    %v48 = vld [vmem:[%s0 + $0x10] sm:$0xff]
    %v49 = vld [vmem:[%s0 + $0x18] sm:$0xff]
    %v50 = vld [vmem:[%s0 + $0x20] sm:$0xff]
    %v51 = vld [vmem:[%s0 + $0x28] sm:$0xff]
    %v52 = vld [vmem:[%s0 + $0x30] sm:$0xff]
    %v53 = vld [vmem:[%s0 + $0x38] sm:$0xff]
    %v54 = vld [vmem:[%s0 + $0x40] sm:$0xff]
    %v55 = vld [vmem:[%s0 + $0x48] sm:$0xff]
    %v56 = vld [vmem:[%s0 + $0x50] sm:$0xff]
    %v57 = vld [vmem:[%s0 + $0x58] sm:$0xff]
    %v58 = vld [vmem:[%s0 + $0x60] sm:$0xff]
    %v59 = vld [vmem:[%s0 + $0x68] sm:$0xff]
    %v60 = vld [vmem:[%s0 + $0x70] sm:$0xff]
    %v61 = vld [vmem:[%s0 + $0x78] sm:$0xff]
    %v62 = vpack.c.bf16 %v47, %v46
    %v63 = vpack.c.bf16 %v49, %v48
    %v64 = vpack.c.bf16 %v51, %v50
    %v65 = vpack.c.bf16 %v53, %v52
    %v66 = vpack.c.bf16 %v55, %v54
    %v67 = vpack.c.bf16 %v57, %v56
    %v68 = vpack.c.bf16 %v59, %v58
    %v69 = vpack.c.bf16 %v60, %v60
    %v70 = vld [vmem:[%s1] sm:$0xff]
    %v71 = vld [vmem:[%s1 + $0x8] sm:$0xff]
    %v72 = vld [vmem:[%s1 + $0x10] sm:$0xff]
    %v73 = vld [vmem:[%s1 + $0x18] sm:$0xff]
    %v74 = vld [vmem:[%s1 + $0x20] sm:$0xff]
    %v75 = vld [vmem:[%s1 + $0x28] sm:$0xff]
    %v76 = vld [vmem:[%s1 + $0x30] sm:$0xff]
    %v77 = vld [vmem:[%s1 + $0x38] sm:$0xff]
    %v78 = vpack.c.bf16 %v48, %v47
    %v79 = vpack.c.bf16 %v50, %v49
    %v80 = vpack.c.bf16 %v52, %v51
    %v81 = vpack.c.bf16 %v54, %v53
    %v82 = vpack.c.bf16 %v56, %v55
    %v83 = vpack.c.bf16 %v58, %v57
    %v84 = vpack.c.bf16 %v60, %v59
    %v85 = vpack.c.bf16 %v61, %v61
    %s86 = scalar_lea.vmem %s1, 64
    %v87 = vld [vmem:[%s86] sm:$0xff]
    %v88 = vld [vmem:[%s86 + $0x8] sm:$0xff]
    %v89 = vld [vmem:[%s86 + $0x10] sm:$0xff]
    %v90 = vld [vmem:[%s86 + $0x18] sm:$0xff]
    %v91 = vld [vmem:[%s86 + $0x20] sm:$0xff]
    %v92 = vld [vmem:[%s86 + $0x28] sm:$0xff]
    %v93 = vld [vmem:[%s86 + $0x30] sm:$0xff]
    %v94 = vld [vmem:[%s86 + $0x38] sm:$0xff]
    %v103 = vunpack.c.l.b16 %v87
    %v104 = vunpack.c.h.b16 %v87
    %v105 = vunpack.c.l.b16 %v88
    %v106 = vunpack.c.h.b16 %v88
    %v107 = vunpack.c.l.b16 %v89
    %v108 = vunpack.c.h.b16 %v89
    %v109 = vunpack.c.l.b16 %v90
    %v110 = vunpack.c.h.b16 %v90
    %v111 = vunpack.c.l.b16 %v91
    %v112 = vunpack.c.h.b16 %v91
    %v113 = vunpack.c.l.b16 %v92
    %v114 = vunpack.c.h.b16 %v92
    %v115 = vunpack.c.l.b16 %v93
    %v116 = vunpack.c.h.b16 %v93
    %v117 = vunpack.c.l.b16 %v94
    %v118 = vunpack.c.h.b16 %v94
    %v119 = vpack.c.b16 %v105, %v103
    %v120 = vpack.c.b16 %v106, %v104
    %v121 = vpack.c.b16 %v109, %v107
    %v122 = vpack.c.b16 %v110, %v108
    %v123 = vpack.c.b16 %v113, %v111
    %v124 = vpack.c.b16 %v114, %v112
    %v125 = vpack.c.b16 %v117, %v115
    %v126 = vpack.c.b16 %v118, %v116
    %vm135 = vcmask 523264
    %v137 = vsel %vm135, %v78, 0
    %v140 = vsel %vm135, %v79, 0
    %v143 = vsel %vm135, %v80, 0
    %v146 = vsel %vm135, %v81, 0
    %v149 = vsel %vm135, %v82, 0
    %v152 = vsel %vm135, %v83, 0
    %v155 = vsel %vm135, %v84, 0
    %v158 = vsel %vm135, %v85, 0
    %160 = vmatprep.subr.bf16.mxu0 %v120
    %161 = vmatpush1.bf16.msra.mxu0 %v119
    %162 = vmatprep.subr.bf16.mxu0 %v122
    %163 = vmatpush1.bf16.msra.mxu0 %v121
    %164 = vmatprep.subr.bf16.mxu0 %v124
    %165 = vmatpush1.bf16.msra.mxu0 %v123
    %166 = vmatprep.subr.bf16.mxu0 %v126
    %167 = vmatpush1.bf16.msra.mxu0 %v125
    %168 = vmatprep.subr.bf16.mxu0 0
    %169 = vmatpush1.bf16.msra.mxu0 0
    %170 = vmatprep.subr.bf16.mxu0 0
    %171 = vmatpush1.bf16.msra.mxu0 0
    %172 = vmatprep.subr.bf16.mxu0 0
    %173 = vmatpush1.bf16.msra.mxu0 0
    %174 = vmatprep.subr.bf16.mxu0 0
    %175 = vmatpush1.bf16.msra.mxu0 0
    %176 = vmatprep.subr.bf16.mxu0 0
    %177 = vmatpush1.bf16.msra.mxu0 0
    %178 = vmatprep.subr.bf16.mxu0 0
    %179 = vmatpush1.bf16.msra.mxu0 0
    %180 = vmatprep.subr.bf16.mxu0 0
    %181 = vmatpush1.bf16.msra.mxu0 0
    %182 = vmatprep.subr.bf16.mxu0 0
    %183 = vmatpush1.bf16.msra.mxu0 0
    %184 = vmatprep.subr.bf16.mxu0 0
    %185 = vmatpush1.bf16.msra.mxu0 0
    %186 = vmatprep.subr.bf16.mxu0 0
    %187 = vmatpush1.bf16.msra.mxu0 0
    %188 = vmatprep.subr.bf16.mxu0 0
    %189 = vmatpush1.bf16.msra.mxu0 0
    %190 = vmatprep.subr.bf16.mxu0 0
    %191 = vmatpush1.bf16.msra.mxu0 0
    %192 = vmatprep.mubr.bf16.mxu0 0
    %193 = vmatmul.mubr.bf16.gmra.mrb[0].mxu0 %v137
    %v194 = vpop.f32.mrb[0].mxu0
    %v195 = vadd.f32 0.0, %v194
    %v196 = vpop.f32.mrb[0].mxu0
    %v197 = vadd.f32 0.0, %v196
    %v198 = vpop.f32.mrb[0].mxu0
    %v199 = vadd.f32 0.0, %v198
    %v200 = vpop.f32.mrb[0].mxu0
    %v201 = vadd.f32 0.0, %v200
    %202 = vmatprep.mubr.bf16.mxu0 0
    %203 = vmatmul.mubr.bf16.gmra.mrb[0].mxu0 %v140
    %v204 = vpop.f32.mrb[0].mxu0
    %v205 = vadd.f32 0.0, %v204
    %v206 = vpop.f32.mrb[0].mxu0
    %v207 = vadd.f32 0.0, %v206
    %v208 = vpop.f32.mrb[0].mxu0
    %v209 = vadd.f32 0.0, %v208
    %v210 = vpop.f32.mrb[0].mxu0
    %v211 = vadd.f32 0.0, %v210
    %212 = vmatprep.mubr.bf16.mxu0 0
    %213 = vmatmul.mubr.bf16.gmra.mrb[0].mxu0 %v143
    %v214 = vpop.f32.mrb[0].mxu0
    %v215 = vadd.f32 0.0, %v214
    %v216 = vpop.f32.mrb[0].mxu0
    %v217 = vadd.f32 0.0, %v216
    %v218 = vpop.f32.mrb[0].mxu0
    %v219 = vadd.f32 0.0, %v218
    %v220 = vpop.f32.mrb[0].mxu0
    %v221 = vadd.f32 0.0, %v220
    %222 = vmatprep.mubr.bf16.mxu0 0
    %223 = vmatmul.mubr.bf16.gmra.mrb[0].mxu0 %v146
    %v224 = vpop.f32.mrb[0].mxu0
    %v225 = vadd.f32 0.0, %v224
    %v226 = vpop.f32.mrb[0].mxu0
    %v227 = vadd.f32 0.0, %v226
    %v228 = vpop.f32.mrb[0].mxu0
    %v229 = vadd.f32 0.0, %v228
    %v230 = vpop.f32.mrb[0].mxu0
    %v231 = vadd.f32 0.0, %v230
    %232 = vmatprep.mubr.bf16.mxu0 0
    %233 = vmatmul.mubr.bf16.gmra.mrb[0].mxu0 %v149
    %v234 = vpop.f32.mrb[0].mxu0
    %v235 = vadd.f32 0.0, %v234
    %v236 = vpop.f32.mrb[0].mxu0
    %v237 = vadd.f32 0.0, %v236
    %v238 = vpop.f32.mrb[0].mxu0
    %v239 = vadd.f32 0.0, %v238
    %v240 = vpop.f32.mrb[0].mxu0
    %v241 = vadd.f32 0.0, %v240
    %242 = vmatprep.mubr.bf16.mxu0 0
    %243 = vmatmul.mubr.bf16.gmra.mrb[0].mxu0 %v152
    %v244 = vpop.f32.mrb[0].mxu0
    %v245 = vadd.f32 0.0, %v244
    %v246 = vpop.f32.mrb[0].mxu0
    %v247 = vadd.f32 0.0, %v246
    %v248 = vpop.f32.mrb[0].mxu0
    %v249 = vadd.f32 0.0, %v248
    %v250 = vpop.f32.mrb[0].mxu0
    %v251 = vadd.f32 0.0, %v250
    %252 = vmatprep.mubr.bf16.mxu0 0
    %253 = vmatmul.mubr.bf16.gmra.mrb[0].mxu0 %v155
    %v254 = vpop.f32.mrb[0].mxu0
    %v255 = vadd.f32 0.0, %v254
    %v256 = vpop.f32.mrb[0].mxu0
    %v257 = vadd.f32 0.0, %v256
    %v258 = vpop.f32.mrb[0].mxu0
    %v259 = vadd.f32 0.0, %v258
    %v260 = vpop.f32.mrb[0].mxu0
    %v261 = vadd.f32 0.0, %v260
    %262 = vmatprep.mubr.bf16.mxu0 0
    %263 = vmatmul.mubr.bf16.gmra.mrb[0].mxu0 %v158
    %v264 = vpop.f32.mrb[0].mxu0
    %v265 = vpop.f32.mrb[0].mxu0
    %v266 = vpop.f32.mrb[0].mxu0
    %v267 = vpop.f32.mrb[0].mxu0
    %268 = vdwg.mxu0
    %v277 = vunpack.c.l.b16 %v70
    %v278 = vunpack.c.h.b16 %v70
    %v279 = vunpack.c.l.b16 %v71
    %v280 = vunpack.c.h.b16 %v71
    %v281 = vunpack.c.l.b16 %v72
    %v282 = vunpack.c.h.b16 %v72
    %v283 = vunpack.c.l.b16 %v73
    %v284 = vunpack.c.h.b16 %v73
    %v285 = vunpack.c.l.b16 %v74
    %v286 = vunpack.c.h.b16 %v74
    %v287 = vunpack.c.l.b16 %v75
    %v288 = vunpack.c.h.b16 %v75
    %v289 = vunpack.c.l.b16 %v76
    %v290 = vunpack.c.h.b16 %v76
    %v291 = vunpack.c.l.b16 %v77
    %v292 = vunpack.c.h.b16 %v77
    %v293 = vpack.c.b16 %v279, %v277
    %v294 = vpack.c.b16 %v280, %v278
    %v295 = vpack.c.b16 %v283, %v281
    %v296 = vpack.c.b16 %v284, %v282
    %v297 = vpack.c.b16 %v287, %v285
    %v298 = vpack.c.b16 %v288, %v286
    %v299 = vpack.c.b16 %v291, %v289
    %v300 = vpack.c.b16 %v292, %v290
    %v310 = vsel %vm135, %v62, 0
    %v313 = vsel %vm135, %v63, 0
    %v316 = vsel %vm135, %v64, 0
    %v319 = vsel %vm135, %v65, 0
    %v322 = vsel %vm135, %v66, 0
    %v325 = vsel %vm135, %v67, 0
    %v328 = vsel %vm135, %v68, 0
    %v331 = vsel %vm135, %v69, 0
    %333 = vmatprep.subr.bf16.mxu0 %v294
    %334 = vmatpush1.bf16.msra.mxu0 %v293
    %335 = vmatprep.subr.bf16.mxu0 %v296
    %336 = vmatpush1.bf16.msra.mxu0 %v295
    %337 = vmatprep.subr.bf16.mxu0 %v298
    %338 = vmatpush1.bf16.msra.mxu0 %v297
    %339 = vmatprep.subr.bf16.mxu0 %v300
    %340 = vmatpush1.bf16.msra.mxu0 %v299
    %341 = vmatprep.subr.bf16.mxu0 0
    %342 = vmatpush1.bf16.msra.mxu0 0
    %343 = vmatprep.subr.bf16.mxu0 0
    %344 = vmatpush1.bf16.msra.mxu0 0
    %345 = vmatprep.subr.bf16.mxu0 0
    %346 = vmatpush1.bf16.msra.mxu0 0
    %347 = vmatprep.subr.bf16.mxu0 0
    %348 = vmatpush1.bf16.msra.mxu0 0
    %349 = vmatprep.subr.bf16.mxu0 0
    %350 = vmatpush1.bf16.msra.mxu0 0
    %351 = vmatprep.subr.bf16.mxu0 0
    %352 = vmatpush1.bf16.msra.mxu0 0
    %353 = vmatprep.subr.bf16.mxu0 0
    %354 = vmatpush1.bf16.msra.mxu0 0
    %355 = vmatprep.subr.bf16.mxu0 0
    %356 = vmatpush1.bf16.msra.mxu0 0
    %357 = vmatprep.subr.bf16.mxu0 0
    %358 = vmatpush1.bf16.msra.mxu0 0
    %359 = vmatprep.subr.bf16.mxu0 0
    %360 = vmatpush1.bf16.msra.mxu0 0
    %361 = vmatprep.subr.bf16.mxu0 0
    %362 = vmatpush1.bf16.msra.mxu0 0
    %363 = vmatprep.subr.bf16.mxu0 0
    %364 = vmatpush1.bf16.msra.mxu0 0
    %365 = vmatprep.mubr.bf16.mxu0 0
    %366 = vmatmul.mubr.bf16.gmra.mrb[0].mxu0 %v310
    %v367 = vpop.f32.mrb[0].mxu0
    %v368 = vadd.f32 %v195, %v367
    %v369 = vpop.f32.mrb[0].mxu0
    %v370 = vadd.f32 %v197, %v369
    %v371 = vpop.f32.mrb[0].mxu0
    %v372 = vadd.f32 %v199, %v371
    %v373 = vpop.f32.mrb[0].mxu0
    %v374 = vadd.f32 %v201, %v373
    %375 = vmatprep.mubr.bf16.mxu0 0
    %376 = vmatmul.mubr.bf16.gmra.mrb[0].mxu0 %v313
    %v377 = vpop.f32.mrb[0].mxu0
    %v378 = vadd.f32 %v205, %v377
    %v379 = vpop.f32.mrb[0].mxu0
    %v380 = vadd.f32 %v207, %v379
    %v381 = vpop.f32.mrb[0].mxu0
    %v382 = vadd.f32 %v209, %v381
    %v383 = vpop.f32.mrb[0].mxu0
    %v384 = vadd.f32 %v211, %v383
    %385 = vmatprep.mubr.bf16.mxu0 0
    %386 = vmatmul.mubr.bf16.gmra.mrb[0].mxu0 %v316
    %v387 = vpop.f32.mrb[0].mxu0
    %v388 = vadd.f32 %v215, %v387
    %v389 = vpop.f32.mrb[0].mxu0
    %v390 = vadd.f32 %v217, %v389
    %v391 = vpop.f32.mrb[0].mxu0
    %v392 = vadd.f32 %v219, %v391
    %v393 = vpop.f32.mrb[0].mxu0
    %v394 = vadd.f32 %v221, %v393
    %395 = vmatprep.mubr.bf16.mxu0 0
    %396 = vmatmul.mubr.bf16.gmra.mrb[0].mxu0 %v319
    %v397 = vpop.f32.mrb[0].mxu0
    %v398 = vadd.f32 %v225, %v397
    %v399 = vpop.f32.mrb[0].mxu0
    %v400 = vadd.f32 %v227, %v399
    %v401 = vpop.f32.mrb[0].mxu0
    %v402 = vadd.f32 %v229, %v401
    %v403 = vpop.f32.mrb[0].mxu0
    %v404 = vadd.f32 %v231, %v403
    %405 = vmatprep.mubr.bf16.mxu0 0
    %406 = vmatmul.mubr.bf16.gmra.mrb[0].mxu0 %v322
    %v407 = vpop.f32.mrb[0].mxu0
    %v408 = vadd.f32 %v235, %v407
    %v409 = vpop.f32.mrb[0].mxu0
    %v410 = vadd.f32 %v237, %v409
    %v411 = vpop.f32.mrb[0].mxu0
    %v412 = vadd.f32 %v239, %v411
    %v413 = vpop.f32.mrb[0].mxu0
    %v414 = vadd.f32 %v241, %v413
    %415 = vmatprep.mubr.bf16.mxu0 0
    %416 = vmatmul.mubr.bf16.gmra.mrb[0].mxu0 %v325
    %v417 = vpop.f32.mrb[0].mxu0
    %v418 = vadd.f32 %v245, %v417
    %v419 = vpop.f32.mrb[0].mxu0
    %v420 = vadd.f32 %v247, %v419
    %v421 = vpop.f32.mrb[0].mxu0
    %v422 = vadd.f32 %v249, %v421
    %v423 = vpop.f32.mrb[0].mxu0
    %v424 = vadd.f32 %v251, %v423
    %425 = vmatprep.mubr.bf16.mxu0 0
    %426 = vmatmul.mubr.bf16.gmra.mrb[0].mxu0 %v328
    %v427 = vpop.f32.mrb[0].mxu0
    %v428 = vadd.f32 %v255, %v427
    %v429 = vpop.f32.mrb[0].mxu0
    %v430 = vadd.f32 %v257, %v429
    %v431 = vpop.f32.mrb[0].mxu0
    %v432 = vadd.f32 %v259, %v431
    %v433 = vpop.f32.mrb[0].mxu0
    %v434 = vadd.f32 %v261, %v433
    %435 = vmatprep.mubr.bf16.mxu0 0
    %436 = vmatmul.mubr.bf16.gmra.mrb[0].mxu0 %v331
    %v437 = vpop.f32.mrb[0].mxu0
    %v438 = vpop.f32.mrb[0].mxu0
    %v439 = vpop.f32.mrb[0].mxu0
    %v440 = vpop.f32.mrb[0].mxu0
    %441 = vdwg.mxu0
    %v442 = vld [vmem:[%s2] sm:$0x3]
    %v444 = vlaneseq
    %v445 = vshrl.u32 %v444, 7
    %v446 = vsub.s32 0, %v445
    %v447 = vrot.slane %v442, %v446
    %v448 = vlaneseq
    %v449 = vshrl.u32 %v448, 7
    %v450 = vsub.s32 1, %v449
    %v451 = vrot.slane %v442, %v450
    %v454 = vadd.f32 %v368, %v447
    %v455 = vadd.f32 %v370, %v451
    %v456 = vadd.f32 %v372, %v447
    %v457 = vadd.f32 %v374, %v451
    %v458 = vadd.f32 %v378, %v447
    %v459 = vadd.f32 %v380, %v451
    %v460 = vadd.f32 %v382, %v447
    %v461 = vadd.f32 %v384, %v451
    %v462 = vadd.f32 %v388, %v447
    %v463 = vadd.f32 %v390, %v451
    %v464 = vadd.f32 %v392, %v447
    %v465 = vadd.f32 %v394, %v451
    %v466 = vadd.f32 %v398, %v447
    %v467 = vadd.f32 %v400, %v451
    %v468 = vadd.f32 %v402, %v447
    %v469 = vadd.f32 %v404, %v451
    %v470 = vadd.f32 %v408, %v447
    %v471 = vadd.f32 %v410, %v451
    %v472 = vadd.f32 %v412, %v447
    %v473 = vadd.f32 %v414, %v451
    %v474 = vadd.f32 %v418, %v447
    %v475 = vadd.f32 %v420, %v451
    %v476 = vadd.f32 %v422, %v447
    %v477 = vadd.f32 %v424, %v451
    %v478 = vadd.f32 %v428, %v447
    %v479 = vadd.f32 %v430, %v451
    %v480 = vadd.f32 %v432, %v447
    %v481 = vadd.f32 %v434, %v451
    %v482 = vmax.f32 %v454, 0.0
    %v483 = vmax.f32 %v455, 0.0
    %v484 = vmax.f32 %v456, 0.0
    %v485 = vmax.f32 %v457, 0.0
    %v486 = vmax.f32 %v458, 0.0
    %v487 = vmax.f32 %v459, 0.0
    %v488 = vmax.f32 %v460, 0.0
    %v489 = vmax.f32 %v461, 0.0
    %v490 = vmax.f32 %v462, 0.0
    %v491 = vmax.f32 %v463, 0.0
    %v492 = vmax.f32 %v464, 0.0
    %v493 = vmax.f32 %v465, 0.0
    %v494 = vmax.f32 %v466, 0.0
    %v495 = vmax.f32 %v467, 0.0
    %v496 = vmax.f32 %v468, 0.0
    %v497 = vmax.f32 %v469, 0.0
    %v498 = vmax.f32 %v470, 0.0
    %v499 = vmax.f32 %v471, 0.0
    %v500 = vmax.f32 %v472, 0.0
    %v501 = vmax.f32 %v473, 0.0
    %v502 = vmax.f32 %v474, 0.0
    %v503 = vmax.f32 %v475, 0.0
    %v504 = vmax.f32 %v476, 0.0
    %v505 = vmax.f32 %v477, 0.0
    %v506 = vmax.f32 %v478, 0.0
    %v507 = vmax.f32 %v479, 0.0
    %v508 = vmax.f32 %v480, 0.0
    %v509 = vmax.f32 %v481, 0.0
    %v510 = vmax.f32 %v482, %v484
    %v511 = vmax.f32 %v483, %v485
    %v512 = vmax.f32 %v486, %v488
    %v513 = vmax.f32 %v487, %v489
    %v514 = vmax.f32 %v490, %v492
    %v515 = vmax.f32 %v491, %v493
    %v516 = vmax.f32 %v494, %v496
    %v517 = vmax.f32 %v495, %v497
    %v518 = vmax.f32 %v498, %v500
    %v519 = vmax.f32 %v499, %v501
    %v520 = vmax.f32 %v502, %v504
    %v521 = vmax.f32 %v503, %v505
    %v522 = vmax.f32 %v506, %v508
    %v523 = vmax.f32 %v507, %v509
    %v524 = vld [vmem:[%s3] sm:$0xff]
    %v525 = vld [vmem:[%s3 + $0x8] sm:$0xff]
    %v526 = vld [vmem:[%s3 + $0x10] sm:$0xff]
    %v527 = vld [vmem:[%s3 + $0x18] sm:$0xff]
    %v528 = vld [vmem:[%s3 + $0x20] sm:$0xff]
    %v529 = vld [vmem:[%s3 + $0x28] sm:$0xff]
    %v530 = vld [vmem:[%s3 + $0x30] sm:$0xff]
    %v531 = vld [vmem:[%s3 + $0x38] sm:$0xff]
    %v532 = vld [vmem:[%s3 + $0x40] sm:$0xff]
    %v533 = vld [vmem:[%s3 + $0x48] sm:$0xff]
    %v534 = vld [vmem:[%s3 + $0x50] sm:$0xff]
    %v535 = vld [vmem:[%s3 + $0x58] sm:$0xff]
    %v536 = vld [vmem:[%s3 + $0x60] sm:$0xff]
    %v537 = vld [vmem:[%s3 + $0x68] sm:$0xff]
    %v538 = vld [vmem:[%s3 + $0x70] sm:$0xff]
    %v539 = vld [vmem:[%s3 + $0x78] sm:$0xff]
    %v540 = vld [vmem:[%s3 + $0x80] sm:$0xff]
    %v541 = vld [vmem:[%s3 + $0x88] sm:$0xff]
    %v542 = vld [vmem:[%s3 + $0x90] sm:$0xff]
    %v543 = vld [vmem:[%s3 + $0x98] sm:$0xff]
    %v544 = vld [vmem:[%s3 + $0xa0] sm:$0xff]
    %v545 = vld [vmem:[%s3 + $0xa8] sm:$0xff]
    %v546 = vld [vmem:[%s3 + $0xb0] sm:$0xff]
    %v547 = vld [vmem:[%s3 + $0xb8] sm:$0xff]
    %v548 = vld [vmem:[%s3 + $0xc0] sm:$0xff]
    %v549 = vld [vmem:[%s3 + $0xc8] sm:$0xff]
    %v550 = vld [vmem:[%s3 + $0xd0] sm:$0xff]
    %v551 = vld [vmem:[%s3 + $0xd8] sm:$0xff]
    %v552 = vld [vmem:[%s3 + $0xe0] sm:$0xff]
    %v553 = vld [vmem:[%s3 + $0xe8] sm:$0xff]
    %vm554 = vcmask 916480
    %v556 = vsel %vm554, %v511, 0
    %v559 = vsel %vm554, %v513, 0
    %v562 = vsel %vm554, %v515, 0
    %v565 = vsel %vm554, %v517, 0
    %v568 = vsel %vm554, %v519, 0
    %v571 = vsel %vm554, %v521, 0
    %v574 = vsel %vm554, %v523, 0
    %576 = vmatprep.subr.mxu0 0.0
    %577 = vmatpush1.msra.mxu0 %v524
    %578 = vmatprep.subr.mxu0 0.0
    %579 = vmatpush1.msra.mxu0 %v525
    %580 = vmatprep.subr.mxu0 0.0
    %581 = vmatpush1.msra.mxu0 %v526
    %582 = vmatprep.subr.mxu0 0.0
    %583 = vmatpush1.msra.mxu0 %v527
    %584 = vmatprep.subr.mxu0 0.0
    %585 = vmatpush1.msra.mxu0 %v528
    %586 = vmatprep.subr.mxu0 0.0
    %587 = vmatpush1.msra.mxu0 %v529
    %588 = vmatprep.subr.mxu0 0.0
    %589 = vmatpush1.msra.mxu0 %v530
    %590 = vmatprep.subr.mxu0 0.0
    %591 = vmatpush1.msra.mxu0 %v531
    %592 = vmatprep.subr.mxu0 0.0
    %593 = vmatpush1.msra.mxu0 %v532
    %594 = vmatprep.subr.mxu0 0.0
    %595 = vmatpush1.msra.mxu0 %v533
    %596 = vmatprep.subr.mxu0 0.0
    %597 = vmatpush1.msra.mxu0 %v534
    %598 = vmatprep.subr.mxu0 0.0
    %599 = vmatpush1.msra.mxu0 %v535
    %600 = vmatprep.subr.mxu0 0.0
    %601 = vmatpush1.msra.mxu0 %v536
    %602 = vmatprep.subr.mxu0 0.0
    %603 = vmatpush1.msra.mxu0 %v537
    %604 = vmatprep.subr.mxu0 0.0
    %605 = vmatpush1.msra.mxu0 %v538
    %606 = vmatprep.subr.mxu0 0.0
    %607 = vmatpush1.msra.mxu0 %v539
    %608 = vmatprep.subr.mxu0 0.0
    %609 = vmatpush1.msra.mxu0 %v540
    %610 = vmatprep.subr.mxu0 0.0
    %611 = vmatpush1.msra.mxu0 %v541
    %612 = vmatprep.subr.mxu0 0.0
    %613 = vmatpush1.msra.mxu0 %v542
    %614 = vmatprep.subr.mxu0 0.0
    %615 = vmatpush1.msra.mxu0 %v543
    %616 = vmatprep.subr.mxu0 0.0
    %617 = vmatpush1.msra.mxu0 %v544
    %618 = vmatprep.subr.mxu0 0.0
    %619 = vmatpush1.msra.mxu0 %v545
    %620 = vmatprep.subr.mxu0 0.0
    %621 = vmatpush1.msra.mxu0 %v546
    %622 = vmatprep.subr.mxu0 0.0
    %623 = vmatpush1.msra.mxu0 %v547
    %624 = vmatprep.subr.mxu0 0.0
    %625 = vmatpush1.msra.mxu0 %v548
    %626 = vmatprep.subr.mxu0 0.0
    %627 = vmatpush1.msra.mxu0 %v549
    %628 = vmatprep.subr.mxu0 0.0
    %629 = vmatpush1.msra.mxu0 %v550
    %630 = vmatprep.subr.mxu0 0.0
    %631 = vmatpush1.msra.mxu0 %v551
    %632 = vmatprep.subr.mxu0 0.0
    %633 = vmatpush1.msra.mxu0 %v552
    %634 = vmatprep.subr.mxu0 0.0
    %635 = vmatpush1.msra.mxu0 %v553
    %636 = vmatprep.subr.mxu0 0.0
    %637 = vmatpush1.msra.mxu0 0.0
    %638 = vmatprep.subr.mxu0 0.0
    %639 = vmatpush1.msra.mxu0 0.0
    %640 = vmatprep.mubr.f32.mxu0 %v556
    %641 = vmatmul.mubr.f32.gmra.mrb[0].mxu0 %v510
    %v642 = vpop.f32.mrb[0].mxu0
    %v643 = vadd.f32 0.0, %v642
    %v644 = vpop.f32.mrb[0].mxu0
    %645 = vmatprep.mubr.f32.mxu0 %v559
    %646 = vmatmul.mubr.f32.gmra.mrb[0].mxu0 %v512
    %v647 = vpop.f32.mrb[0].mxu0
    %v648 = vadd.f32 0.0, %v647
    %v649 = vpop.f32.mrb[0].mxu0
    %650 = vmatprep.mubr.f32.mxu0 %v562
    %651 = vmatmul.mubr.f32.gmra.mrb[0].mxu0 %v514
    %v652 = vpop.f32.mrb[0].mxu0
    %v653 = vadd.f32 0.0, %v652
    %v654 = vpop.f32.mrb[0].mxu0
    %655 = vmatprep.mubr.f32.mxu0 %v565
    %656 = vmatmul.mubr.f32.gmra.mrb[0].mxu0 %v516
    %v657 = vpop.f32.mrb[0].mxu0
    %v658 = vadd.f32 0.0, %v657
    %v659 = vpop.f32.mrb[0].mxu0
    %660 = vmatprep.mubr.f32.mxu0 %v568
    %661 = vmatmul.mubr.f32.gmra.mrb[0].mxu0 %v518
    %v662 = vpop.f32.mrb[0].mxu0
    %v663 = vadd.f32 0.0, %v662
    %v664 = vpop.f32.mrb[0].mxu0
    %665 = vmatprep.mubr.f32.mxu0 %v571
    %666 = vmatmul.mubr.f32.gmra.mrb[0].mxu0 %v520
    %v667 = vpop.f32.mrb[0].mxu0
    %v668 = vadd.f32 0.0, %v667
    %v669 = vpop.f32.mrb[0].mxu0
    %670 = vmatprep.mubr.f32.mxu0 %v574
    %671 = vmatmul.mubr.f32.gmra.mrb[0].mxu0 %v522
    %v672 = vpop.f32.mrb[0].mxu0
    %v673 = vadd.f32 0.0, %v672
    %v674 = vpop.f32.mrb[0].mxu0
    %675 = vdwg.mxu0
    %v676 = vld [vmem:[%s4] sm:$0xff]
    %v677 = vld [vmem:[%s4 + $0x8] sm:$0xff]
    %v678 = vld [vmem:[%s4 + $0x10] sm:$0xff]
    %v679 = vld [vmem:[%s4 + $0x18] sm:$0xff]
    %v680 = vld [vmem:[%s4 + $0x20] sm:$0xff]
    %v681 = vld [vmem:[%s4 + $0x28] sm:$0xff]
    %v682 = vld [vmem:[%s4 + $0x30] sm:$0xff]
    %v683 = vld [vmem:[%s4 + $0x38] sm:$0xff]
    %v684 = vld [vmem:[%s4 + $0x40] sm:$0xff]
    %v685 = vld [vmem:[%s4 + $0x48] sm:$0xff]
    %v686 = vld [vmem:[%s4 + $0x50] sm:$0xff]
    %v687 = vld [vmem:[%s4 + $0x58] sm:$0xff]
    %v688 = vld [vmem:[%s4 + $0x60] sm:$0xff]
    %v689 = vld [vmem:[%s4 + $0x68] sm:$0xff]
    %v690 = vld [vmem:[%s4 + $0x70] sm:$0xff]
    %v691 = vld [vmem:[%s4 + $0x78] sm:$0xff]
    %v692 = vld [vmem:[%s4 + $0x80] sm:$0xff]
    %v693 = vld [vmem:[%s4 + $0x88] sm:$0xff]
    %v694 = vld [vmem:[%s4 + $0x90] sm:$0xff]
    %v695 = vld [vmem:[%s4 + $0x98] sm:$0xff]
    %v696 = vld [vmem:[%s4 + $0xa0] sm:$0xff]
    %v697 = vld [vmem:[%s4 + $0xa8] sm:$0xff]
    %v698 = vld [vmem:[%s4 + $0xb0] sm:$0xff]
    %v699 = vld [vmem:[%s4 + $0xb8] sm:$0xff]
    %v700 = vld [vmem:[%s4 + $0xc0] sm:$0xff]
    %v701 = vld [vmem:[%s4 + $0xc8] sm:$0xff]
    %v702 = vld [vmem:[%s4 + $0xd0] sm:$0xff]
    %v703 = vld [vmem:[%s4 + $0xd8] sm:$0xff]
    %v704 = vld [vmem:[%s4 + $0xe0] sm:$0xff]
    %v705 = vld [vmem:[%s4 + $0xe8] sm:$0xff]
    %706 = vmatprep.subr.mxu0 0.0
    %707 = vmatpush1.msra.mxu0 %v676
    %708 = vmatprep.subr.mxu0 0.0
    %709 = vmatpush1.msra.mxu0 %v677
    %710 = vmatprep.subr.mxu0 0.0
    %711 = vmatpush1.msra.mxu0 %v678
    %712 = vmatprep.subr.mxu0 0.0
    %713 = vmatpush1.msra.mxu0 %v679
    %714 = vmatprep.subr.mxu0 0.0
    %715 = vmatpush1.msra.mxu0 %v680
    %716 = vmatprep.subr.mxu0 0.0
    %717 = vmatpush1.msra.mxu0 %v681
    %718 = vmatprep.subr.mxu0 0.0
    %719 = vmatpush1.msra.mxu0 %v682
    %720 = vmatprep.subr.mxu0 0.0
    %721 = vmatpush1.msra.mxu0 %v683
    %722 = vmatprep.subr.mxu0 0.0
    %723 = vmatpush1.msra.mxu0 %v684
    %724 = vmatprep.subr.mxu0 0.0
    %725 = vmatpush1.msra.mxu0 %v685
    %726 = vmatprep.subr.mxu0 0.0
    %727 = vmatpush1.msra.mxu0 %v686
    %728 = vmatprep.subr.mxu0 0.0
    %729 = vmatpush1.msra.mxu0 %v687
    %730 = vmatprep.subr.mxu0 0.0
    %731 = vmatpush1.msra.mxu0 %v688
    %732 = vmatprep.subr.mxu0 0.0
    %733 = vmatpush1.msra.mxu0 %v689
    %734 = vmatprep.subr.mxu0 0.0
    %735 = vmatpush1.msra.mxu0 %v690
    %736 = vmatprep.subr.mxu0 0.0
    %737 = vmatpush1.msra.mxu0 %v691
    %738 = vmatprep.subr.mxu0 0.0
    %739 = vmatpush1.msra.mxu0 %v692
    %740 = vmatprep.subr.mxu0 0.0
    %741 = vmatpush1.msra.mxu0 %v693
    %742 = vmatprep.subr.mxu0 0.0
    %743 = vmatpush1.msra.mxu0 %v694
    %744 = vmatprep.subr.mxu0 0.0
    %745 = vmatpush1.msra.mxu0 %v695
    %746 = vmatprep.subr.mxu0 0.0
    %747 = vmatpush1.msra.mxu0 %v696
    %748 = vmatprep.subr.mxu0 0.0
    %749 = vmatpush1.msra.mxu0 %v697
    %750 = vmatprep.subr.mxu0 0.0
    %751 = vmatpush1.msra.mxu0 %v698
    %752 = vmatprep.subr.mxu0 0.0
    %753 = vmatpush1.msra.mxu0 %v699
    %754 = vmatprep.subr.mxu0 0.0
    %755 = vmatpush1.msra.mxu0 %v700
    %756 = vmatprep.subr.mxu0 0.0
    %757 = vmatpush1.msra.mxu0 %v701
    %758 = vmatprep.subr.mxu0 0.0
    %759 = vmatpush1.msra.mxu0 %v702
    %760 = vmatprep.subr.mxu0 0.0
    %761 = vmatpush1.msra.mxu0 %v703
    %762 = vmatprep.subr.mxu0 0.0
    %763 = vmatpush1.msra.mxu0 %v704
    %764 = vmatprep.subr.mxu0 0.0
    %765 = vmatpush1.msra.mxu0 %v705
    %766 = vmatprep.subr.mxu0 0.0
    %767 = vmatpush1.msra.mxu0 0.0
    %768 = vmatprep.subr.mxu0 0.0
    %769 = vmatpush1.msra.mxu0 0.0
    %770 = vmatprep.mubr.f32.mxu0 %v556
    %771 = vmatmul.mubr.f32.gmra.mrb[0].mxu0 %v510
    %v772 = vpop.f32.mrb[0].mxu0
    %v773 = vadd.f32 0.0, %v772
    %v774 = vpop.f32.mrb[0].mxu0
    %775 = vmatprep.mubr.f32.mxu0 %v559
    %776 = vmatmul.mubr.f32.gmra.mrb[0].mxu0 %v512
    %v777 = vpop.f32.mrb[0].mxu0
    %v778 = vadd.f32 0.0, %v777
    %v779 = vpop.f32.mrb[0].mxu0
    %780 = vmatprep.mubr.f32.mxu0 %v562
    %781 = vmatmul.mubr.f32.gmra.mrb[0].mxu0 %v514
    %v782 = vpop.f32.mrb[0].mxu0
    %v783 = vadd.f32 0.0, %v782
    %v784 = vpop.f32.mrb[0].mxu0
    %785 = vmatprep.mubr.f32.mxu0 %v565
    %786 = vmatmul.mubr.f32.gmra.mrb[0].mxu0 %v516
    %v787 = vpop.f32.mrb[0].mxu0
    %v788 = vadd.f32 0.0, %v787
    %v789 = vpop.f32.mrb[0].mxu0
    %790 = vmatprep.mubr.f32.mxu0 %v568
    %791 = vmatmul.mubr.f32.gmra.mrb[0].mxu0 %v518
    %v792 = vpop.f32.mrb[0].mxu0
    %v793 = vadd.f32 0.0, %v792
    %v794 = vpop.f32.mrb[0].mxu0
    %795 = vmatprep.mubr.f32.mxu0 %v571
    %796 = vmatmul.mubr.f32.gmra.mrb[0].mxu0 %v520
    %v797 = vpop.f32.mrb[0].mxu0
    %v798 = vadd.f32 0.0, %v797
    %v799 = vpop.f32.mrb[0].mxu0
    %800 = vmatprep.mubr.f32.mxu0 %v574
    %801 = vmatmul.mubr.f32.gmra.mrb[0].mxu0 %v522
    %v802 = vpop.f32.mrb[0].mxu0
    %v803 = vadd.f32 0.0, %v802
    %v804 = vpop.f32.mrb[0].mxu0
    %805 = vdwg.mxu0
    %v806 = vmax.f32 %v643, %v773
    %v807 = vmax.f32 %v648, %v778
    %v808 = vmax.f32 %v653, %v783
    %v809 = vmax.f32 %v658, %v788
    %v810 = vmax.f32 %v663, %v793
    %v811 = vmax.f32 %v668, %v798
    %v812 = vmax.f32 %v673, %v803
    %v813 = vpack.c.bf16 %v807, %v806
    %v814 = vpack.c.bf16 %v809, %v808
    %v815 = vpack.c.bf16 %v811, %v810
    %v816 = vld [vmem:[%s5] sm:$0xff]
    %v817 = vld [vmem:[%s5 + $0x8] sm:$0xff]
    %v818 = vld [vmem:[%s5 + $0x10] sm:$0xff]
    %v819 = vld [vmem:[%s5 + $0x18] sm:$0xff]
    %v820 = vld [vmem:[%s5 + $0x20] sm:$0xff]
    %v821 = vld [vmem:[%s5 + $0x28] sm:$0xff]
    %v822 = vld [vmem:[%s5 + $0x30] sm:$0xff]
    %v823 = vld [vmem:[%s5 + $0x38] sm:$0xff]
    %v824 = vld [vmem:[%s5 + $0x40] sm:$0xff]
    %v825 = vld [vmem:[%s5 + $0x48] sm:$0xff]
    %v826 = vld [vmem:[%s5 + $0x50] sm:$0xff]
    %v827 = vld [vmem:[%s5 + $0x58] sm:$0xff]
    %v828 = vld [vmem:[%s5 + $0x60] sm:$0xff]
    %v829 = vld [vmem:[%s5 + $0x68] sm:$0xff]
    %v830 = vpack.c.bf16 %v808, %v807
    %v831 = vpack.c.bf16 %v810, %v809
    %v832 = vpack.c.bf16 %v812, %v811
    %s833 = scalar_lea.vmem %s5, 112
    %v834 = vld [vmem:[%s833] sm:$0xff]
    %v835 = vld [vmem:[%s833 + $0x8] sm:$0xff]
    %v836 = vld [vmem:[%s833 + $0x10] sm:$0xff]
    %v837 = vld [vmem:[%s833 + $0x18] sm:$0xff]
    %v838 = vld [vmem:[%s833 + $0x20] sm:$0xff]
    %v839 = vld [vmem:[%s833 + $0x28] sm:$0xff]
    %v840 = vld [vmem:[%s833 + $0x30] sm:$0xff]
    %v841 = vld [vmem:[%s833 + $0x38] sm:$0xff]
    %v842 = vld [vmem:[%s833 + $0x40] sm:$0xff]
    %v843 = vld [vmem:[%s833 + $0x48] sm:$0xff]
    %v844 = vld [vmem:[%s833 + $0x50] sm:$0xff]
    %v845 = vld [vmem:[%s833 + $0x58] sm:$0xff]
    %v846 = vld [vmem:[%s833 + $0x60] sm:$0xff]
    %v847 = vld [vmem:[%s833 + $0x68] sm:$0xff]
    %v862 = vunpack.c.l.b16 %v834
    %v863 = vunpack.c.h.b16 %v834
    %v864 = vunpack.c.l.b16 %v835
    %v865 = vunpack.c.h.b16 %v835
    %v866 = vunpack.c.l.b16 %v836
    %v867 = vunpack.c.h.b16 %v836
    %v868 = vunpack.c.l.b16 %v837
    %v869 = vunpack.c.h.b16 %v837
    %v870 = vunpack.c.l.b16 %v838
    %v871 = vunpack.c.h.b16 %v838
    %v872 = vunpack.c.l.b16 %v839
    %v873 = vunpack.c.h.b16 %v839
    %v874 = vunpack.c.l.b16 %v840
    %v875 = vunpack.c.h.b16 %v840
    %v876 = vunpack.c.l.b16 %v841
    %v877 = vunpack.c.h.b16 %v841
    %v878 = vunpack.c.l.b16 %v842
    %v879 = vunpack.c.h.b16 %v842
    %v880 = vunpack.c.l.b16 %v843
    %v881 = vunpack.c.h.b16 %v843
    %v882 = vunpack.c.l.b16 %v844
    %v883 = vunpack.c.h.b16 %v844
    %v884 = vunpack.c.l.b16 %v845
    %v885 = vunpack.c.h.b16 %v845
    %v886 = vunpack.c.l.b16 %v846
    %v887 = vunpack.c.h.b16 %v846
    %v888 = vunpack.c.l.b16 %v847
    %v889 = vunpack.c.h.b16 %v847
    %v890 = vpack.c.b16 %v864, %v862
    %v891 = vpack.c.b16 %v865, %v863
    %v892 = vpack.c.b16 %v868, %v866
    %v893 = vpack.c.b16 %v869, %v867
    %v894 = vpack.c.b16 %v872, %v870
    %v895 = vpack.c.b16 %v873, %v871
    %v896 = vpack.c.b16 %v876, %v874
    %v897 = vpack.c.b16 %v877, %v875
    %v898 = vpack.c.b16 %v880, %v878
    %v899 = vpack.c.b16 %v881, %v879
    %v900 = vpack.c.b16 %v884, %v882
    %v901 = vpack.c.b16 %v885, %v883
    %v902 = vpack.c.b16 %v888, %v886
    %v903 = vpack.c.b16 %v889, %v887
    %v919 = vsel %vm554, %v830, 0
    %v922 = vsel %vm554, %v831, 0
    %v925 = vsel %vm554, %v832, 0
    %927 = vmatprep.subr.bf16.mxu0 %v891
    %928 = vmatpush1.bf16.msra.mxu0 %v890
    %929 = vmatprep.subr.bf16.mxu0 %v893
    %930 = vmatpush1.bf16.msra.mxu0 %v892
    %931 = vmatprep.subr.bf16.mxu0 %v895
    %932 = vmatpush1.bf16.msra.mxu0 %v894
    %933 = vmatprep.subr.bf16.mxu0 %v897
    %934 = vmatpush1.bf16.msra.mxu0 %v896
    %935 = vmatprep.subr.bf16.mxu0 %v899
    %936 = vmatpush1.bf16.msra.mxu0 %v898
    %937 = vmatprep.subr.bf16.mxu0 %v901
    %938 = vmatpush1.bf16.msra.mxu0 %v900
    %939 = vmatprep.subr.bf16.mxu0 %v903
    %940 = vmatpush1.bf16.msra.mxu0 %v902
    %941 = vmatprep.subr.bf16.mxu0 0
    %942 = vmatpush1.bf16.msra.mxu0 0
    %943 = vmatprep.subr.bf16.mxu0 0
    %944 = vmatpush1.bf16.msra.mxu0 0
    %945 = vmatprep.subr.bf16.mxu0 0
    %946 = vmatpush1.bf16.msra.mxu0 0
    %947 = vmatprep.subr.bf16.mxu0 0
    %948 = vmatpush1.bf16.msra.mxu0 0
    %949 = vmatprep.subr.bf16.mxu0 0
    %950 = vmatpush1.bf16.msra.mxu0 0
    %951 = vmatprep.subr.bf16.mxu0 0
    %952 = vmatpush1.bf16.msra.mxu0 0
    %953 = vmatprep.subr.bf16.mxu0 0
    %954 = vmatpush1.bf16.msra.mxu0 0
    %955 = vmatprep.subr.bf16.mxu0 0
    %956 = vmatpush1.bf16.msra.mxu0 0
    %957 = vmatprep.subr.bf16.mxu0 0
    %958 = vmatpush1.bf16.msra.mxu0 0
    %959 = vmatprep.mubr.bf16.mxu0 0
    %960 = vmatmul.mubr.bf16.gmra.mrb[0].mxu0 %v919
    %v961 = vpop.f32.mrb[0].mxu0
    %v962 = vadd.f32 0.0, %v961
    %v963 = vpop.f32.mrb[0].mxu0
    %v964 = vadd.f32 0.0, %v963
    %v965 = vpop.f32.mrb[0].mxu0
    %v966 = vadd.f32 0.0, %v965
    %v967 = vpop.f32.mrb[0].mxu0
    %v968 = vadd.f32 0.0, %v967
    %969 = vmatprep.mubr.bf16.mxu0 0
    %970 = vmatmul.mubr.bf16.gmra.mrb[0].mxu0 %v922
    %v971 = vpop.f32.mrb[0].mxu0
    %v972 = vadd.f32 0.0, %v971
    %v973 = vpop.f32.mrb[0].mxu0
    %v974 = vadd.f32 0.0, %v973
    %v975 = vpop.f32.mrb[0].mxu0
    %v976 = vadd.f32 0.0, %v975
    %v977 = vpop.f32.mrb[0].mxu0
    %v978 = vadd.f32 0.0, %v977
    %979 = vmatprep.mubr.bf16.mxu0 0
    %980 = vmatmul.mubr.bf16.gmra.mrb[0].mxu0 %v925
    %v981 = vpop.f32.mrb[0].mxu0
    %v982 = vadd.f32 0.0, %v981
    %v983 = vpop.f32.mrb[0].mxu0
    %v984 = vadd.f32 0.0, %v983
    %v985 = vpop.f32.mrb[0].mxu0
    %v986 = vadd.f32 0.0, %v985
    %v987 = vpop.f32.mrb[0].mxu0
    %v988 = vadd.f32 0.0, %v987
    %989 = vdwg.mxu0
    %v1004 = vunpack.c.l.b16 %v816
    %v1005 = vunpack.c.h.b16 %v816
    %v1006 = vunpack.c.l.b16 %v817
    %v1007 = vunpack.c.h.b16 %v817
    %v1008 = vunpack.c.l.b16 %v818
    %v1009 = vunpack.c.h.b16 %v818
    %v1010 = vunpack.c.l.b16 %v819
    %v1011 = vunpack.c.h.b16 %v819
    %v1012 = vunpack.c.l.b16 %v820
    %v1013 = vunpack.c.h.b16 %v820
    %v1014 = vunpack.c.l.b16 %v821
    %v1015 = vunpack.c.h.b16 %v821
    %v1016 = vunpack.c.l.b16 %v822
    %v1017 = vunpack.c.h.b16 %v822
    %v1018 = vunpack.c.l.b16 %v823
    %v1019 = vunpack.c.h.b16 %v823
    %v1020 = vunpack.c.l.b16 %v824
    %v1021 = vunpack.c.h.b16 %v824
    %v1022 = vunpack.c.l.b16 %v825
    %v1023 = vunpack.c.h.b16 %v825
    %v1024 = vunpack.c.l.b16 %v826
    %v1025 = vunpack.c.h.b16 %v826
    %v1026 = vunpack.c.l.b16 %v827
    %v1027 = vunpack.c.h.b16 %v827
    %v1028 = vunpack.c.l.b16 %v828
    %v1029 = vunpack.c.h.b16 %v828
    %v1030 = vunpack.c.l.b16 %v829
    %v1031 = vunpack.c.h.b16 %v829
    %v1032 = vpack.c.b16 %v1006, %v1004
    %v1033 = vpack.c.b16 %v1007, %v1005
    %v1034 = vpack.c.b16 %v1010, %v1008
    %v1035 = vpack.c.b16 %v1011, %v1009
    %v1036 = vpack.c.b16 %v1014, %v1012
    %v1037 = vpack.c.b16 %v1015, %v1013
    %v1038 = vpack.c.b16 %v1018, %v1016
    %v1039 = vpack.c.b16 %v1019, %v1017
    %v1040 = vpack.c.b16 %v1022, %v1020
    %v1041 = vpack.c.b16 %v1023, %v1021
    %v1042 = vpack.c.b16 %v1026, %v1024
    %v1043 = vpack.c.b16 %v1027, %v1025
    %v1044 = vpack.c.b16 %v1030, %v1028
    %v1045 = vpack.c.b16 %v1031, %v1029
    %v1061 = vsel %vm554, %v813, 0
    %v1064 = vsel %vm554, %v814, 0
    %v1067 = vsel %vm554, %v815, 0
    %1069 = vmatprep.subr.bf16.mxu0 %v1033
    %1070 = vmatpush1.bf16.msra.mxu0 %v1032
    %1071 = vmatprep.subr.bf16.mxu0 %v1035
    %1072 = vmatpush1.bf16.msra.mxu0 %v1034
    %1073 = vmatprep.subr.bf16.mxu0 %v1037
    %1074 = vmatpush1.bf16.msra.mxu0 %v1036
    %1075 = vmatprep.subr.bf16.mxu0 %v1039
    %1076 = vmatpush1.bf16.msra.mxu0 %v1038
    %1077 = vmatprep.subr.bf16.mxu0 %v1041
    %1078 = vmatpush1.bf16.msra.mxu0 %v1040
    %1079 = vmatprep.subr.bf16.mxu0 %v1043
    %1080 = vmatpush1.bf16.msra.mxu0 %v1042
    %1081 = vmatprep.subr.bf16.mxu0 %v1045
    %1082 = vmatpush1.bf16.msra.mxu0 %v1044
    %1083 = vmatprep.subr.bf16.mxu0 0
    %1084 = vmatpush1.bf16.msra.mxu0 0
    %1085 = vmatprep.subr.bf16.mxu0 0
    %1086 = vmatpush1.bf16.msra.mxu0 0
    %1087 = vmatprep.subr.bf16.mxu0 0
    %1088 = vmatpush1.bf16.msra.mxu0 0
    %1089 = vmatprep.subr.bf16.mxu0 0
    %1090 = vmatpush1.bf16.msra.mxu0 0
    %1091 = vmatprep.subr.bf16.mxu0 0
    %1092 = vmatpush1.bf16.msra.mxu0 0
    %1093 = vmatprep.subr.bf16.mxu0 0
    %1094 = vmatpush1.bf16.msra.mxu0 0
    %1095 = vmatprep.subr.bf16.mxu0 0
    %1096 = vmatpush1.bf16.msra.mxu0 0
    %1097 = vmatprep.subr.bf16.mxu0 0
    %1098 = vmatpush1.bf16.msra.mxu0 0
    %1099 = vmatprep.subr.bf16.mxu0 0
    %1100 = vmatpush1.bf16.msra.mxu0 0
    %1101 = vmatprep.mubr.bf16.mxu0 0
    %1102 = vmatmul.mubr.bf16.gmra.mrb[0].mxu0 %v1061
    %v1103 = vpop.f32.mrb[0].mxu0
    %v1104 = vadd.f32 %v962, %v1103
    %v1105 = vpop.f32.mrb[0].mxu0
    %v1106 = vadd.f32 %v964, %v1105
    %v1107 = vpop.f32.mrb[0].mxu0
    %v1108 = vadd.f32 %v966, %v1107
    %v1109 = vpop.f32.mrb[0].mxu0
    %v1110 = vadd.f32 %v968, %v1109
    %1111 = vmatprep.mubr.bf16.mxu0 0
    %1112 = vmatmul.mubr.bf16.gmra.mrb[0].mxu0 %v1064
    %v1113 = vpop.f32.mrb[0].mxu0
    %v1114 = vadd.f32 %v972, %v1113
    %v1115 = vpop.f32.mrb[0].mxu0
    %v1116 = vadd.f32 %v974, %v1115
    %v1117 = vpop.f32.mrb[0].mxu0
    %v1118 = vadd.f32 %v976, %v1117
    %v1119 = vpop.f32.mrb[0].mxu0
    %v1120 = vadd.f32 %v978, %v1119
    %1121 = vmatprep.mubr.bf16.mxu0 0
    %1122 = vmatmul.mubr.bf16.gmra.mrb[0].mxu0 %v1067
    %v1123 = vpop.f32.mrb[0].mxu0
    %v1124 = vadd.f32 %v982, %v1123
    %v1125 = vpop.f32.mrb[0].mxu0
    %v1126 = vadd.f32 %v984, %v1125
    %v1127 = vpop.f32.mrb[0].mxu0
    %v1128 = vadd.f32 %v986, %v1127
    %v1129 = vpop.f32.mrb[0].mxu0
    %v1130 = vadd.f32 %v988, %v1129
    %1131 = vdwg.mxu0
    %v1132 = vld [vmem:[%s6] sm:$0x3]
    %v1134 = vlaneseq
    %v1135 = vshrl.u32 %v1134, 7
    %v1136 = vsub.s32 0, %v1135
    %v1137 = vrot.slane %v1132, %v1136
    %v1138 = vlaneseq
    %v1139 = vshrl.u32 %v1138, 7
    %v1140 = vsub.s32 1, %v1139
    %v1141 = vrot.slane %v1132, %v1140
    %v1144 = vadd.f32 %v1104, %v1137
    %v1145 = vadd.f32 %v1106, %v1141
    %v1146 = vadd.f32 %v1108, %v1137
    %v1147 = vadd.f32 %v1110, %v1141
    %v1148 = vadd.f32 %v1114, %v1137
    %v1149 = vadd.f32 %v1116, %v1141
    %v1150 = vadd.f32 %v1118, %v1137
    %v1151 = vadd.f32 %v1120, %v1141
    %v1152 = vadd.f32 %v1124, %v1137
    %v1153 = vadd.f32 %v1126, %v1141
    %v1154 = vadd.f32 %v1128, %v1137
    %v1155 = vadd.f32 %v1130, %v1141
    %v1156 = vmax.f32 %v1144, 0.0
    %v1157 = vmax.f32 %v1145, 0.0
    %v1158 = vmax.f32 %v1146, 0.0
    %v1159 = vmax.f32 %v1147, 0.0
    %v1160 = vmax.f32 %v1148, 0.0
    %v1161 = vmax.f32 %v1149, 0.0
    %v1162 = vmax.f32 %v1150, 0.0
    %v1163 = vmax.f32 %v1151, 0.0
    %v1164 = vmax.f32 %v1152, 0.0
    %v1165 = vmax.f32 %v1153, 0.0
    %v1166 = vmax.f32 %v1154, 0.0
    %v1167 = vmax.f32 %v1155, 0.0
    %v1168 = vpack.c.bf16 %v1158, %v1156
    %v1169 = vpack.c.bf16 %v1159, %v1157
    %v1170 = vpack.c.bf16 %v1162, %v1160
    %v1171 = vpack.c.bf16 %v1163, %v1161
    %v1172 = vpack.c.bf16 %v1164, %v1164
    %v1173 = vpack.c.bf16 %v1165, %v1165
    %v1174 = vld [vmem:[%s7] sm:$0xff]
    %v1175 = vld [vmem:[%s7 + $0x8] sm:$0xf]
    %v1176 = vld [vmem:[%s7 + $0xc] sm:$0xff]
    %v1177 = vld [vmem:[%s7 + $0x14] sm:$0xf]
    %v1178 = vld [vmem:[%s7 + $0x18] sm:$0xff]
    %v1179 = vld [vmem:[%s7 + $0x20] sm:$0xf]
    %v1180 = vld [vmem:[%s7 + $0x24] sm:$0xff]
    %v1181 = vld [vmem:[%s7 + $0x2c] sm:$0xf]
    %v1182 = vld [vmem:[%s7 + $0x30] sm:$0xff]
    %v1183 = vld [vmem:[%s7 + $0x38] sm:$0xf]
    %v1184 = vld [vmem:[%s7 + $0x3c] sm:$0xff]
    %v1185 = vld [vmem:[%s7 + $0x44] sm:$0xf]
    %v1186 = vld [vmem:[%s7 + $0x48] sm:$0xff]
    %v1187 = vld [vmem:[%s7 + $0x50] sm:$0xf]
    %v1188 = vld [vmem:[%s7 + $0x54] sm:$0xff]
    %v1189 = vld [vmem:[%s7 + $0x5c] sm:$0xf]
    %v1190 = vld [vmem:[%s7 + $0x60] sm:$0xff]
    %v1191 = vld [vmem:[%s7 + $0x68] sm:$0xf]
    %v1192 = vld [vmem:[%s7 + $0x6c] sm:$0xff]
    %v1193 = vld [vmem:[%s7 + $0x74] sm:$0xf]
    %v1194 = vld [vmem:[%s7 + $0x78] sm:$0xff]
    %v1195 = vld [vmem:[%s7 + $0x80] sm:$0xf]
    %v1196 = vld [vmem:[%s7 + $0x84] sm:$0xff]
    %v1197 = vld [vmem:[%s7 + $0x8c] sm:$0xf]
    %v1198 = vld [vmem:[%s7 + $0x90] sm:$0xff]
    %v1199 = vld [vmem:[%s7 + $0x98] sm:$0xf]
    %v1200 = vld [vmem:[%s7 + $0x9c] sm:$0xff]
    %v1201 = vld [vmem:[%s7 + $0xa4] sm:$0xf]
    %v1202 = vld [vmem:[%s7 + $0xa8] sm:$0xff]
    %v1203 = vld [vmem:[%s7 + $0xb0] sm:$0xf]
    %v1204 = vld [vmem:[%s7 + $0xb4] sm:$0xff]
    %v1205 = vld [vmem:[%s7 + $0xbc] sm:$0xf]
    %v1206 = vld [vmem:[%s7 + $0xc0] sm:$0xff]
    %v1207 = vld [vmem:[%s7 + $0xc8] sm:$0xf]
    %v1208 = vld [vmem:[%s7 + $0xcc] sm:$0xff]
    %v1209 = vld [vmem:[%s7 + $0xd4] sm:$0xf]
    %v1210 = vld [vmem:[%s7 + $0xd8] sm:$0xff]
    %v1211 = vld [vmem:[%s7 + $0xe0] sm:$0xf]
    %v1212 = vld [vmem:[%s7 + $0xe4] sm:$0xff]
    %v1213 = vld [vmem:[%s7 + $0xec] sm:$0xf]
    %v1214 = vld [vmem:[%s7 + $0xf0] sm:$0xff]
    %v1215 = vld [vmem:[%s7 + $0xf8] sm:$0xf]
    %v1216 = vld [vmem:[%s7 + $0xfc] sm:$0xff]
    %v1217 = vld [vmem:[%s7 + $0x104] sm:$0xf]
    %v1218 = vld [vmem:[%s7 + $0x108] sm:$0xff]
    %v1219 = vld [vmem:[%s7 + $0x110] sm:$0xf]
    %v1220 = vld [vmem:[%s7 + $0x114] sm:$0xff]
    %v1221 = vld [vmem:[%s7 + $0x11c] sm:$0xf]
    %v1222 = vpack.c.bf16 %v1160, %v1158
    %v1223 = vpack.c.bf16 %v1161, %v1159
    %v1224 = vpack.c.bf16 %v1164, %v1162
    %v1225 = vpack.c.bf16 %v1165, %v1163
    %v1226 = vpack.c.bf16 %v1166, %v1166
    %v1227 = vpack.c.bf16 %v1167, %v1167
    %s1228 = scalar_lea.vmem %s7, 288
    %v1229 = vld [vmem:[%s1228] sm:$0xff]
    %v1230 = vld [vmem:[%s1228 + $0x8] sm:$0xf]
    %v1231 = vld [vmem:[%s1228 + $0xc] sm:$0xff]
    %v1232 = vld [vmem:[%s1228 + $0x14] sm:$0xf]
    %v1233 = vld [vmem:[%s1228 + $0x18] sm:$0xff]
    %v1234 = vld [vmem:[%s1228 + $0x20] sm:$0xf]
    %v1235 = vld [vmem:[%s1228 + $0x24] sm:$0xff]
    %v1236 = vld [vmem:[%s1228 + $0x2c] sm:$0xf]
    %v1237 = vld [vmem:[%s1228 + $0x30] sm:$0xff]
    %v1238 = vld [vmem:[%s1228 + $0x38] sm:$0xf]
    %v1239 = vld [vmem:[%s1228 + $0x3c] sm:$0xff]
    %v1240 = vld [vmem:[%s1228 + $0x44] sm:$0xf]
    %v1241 = vld [vmem:[%s1228 + $0x48] sm:$0xff]
    %v1242 = vld [vmem:[%s1228 + $0x50] sm:$0xf]
    %v1243 = vld [vmem:[%s1228 + $0x54] sm:$0xff]
    %v1244 = vld [vmem:[%s1228 + $0x5c] sm:$0xf]
    %v1245 = vld [vmem:[%s1228 + $0x60] sm:$0xff]
    %v1246 = vld [vmem:[%s1228 + $0x68] sm:$0xf]
    %v1247 = vld [vmem:[%s1228 + $0x6c] sm:$0xff]
    %v1248 = vld [vmem:[%s1228 + $0x74] sm:$0xf]
    %v1249 = vld [vmem:[%s1228 + $0x78] sm:$0xff]
    %v1250 = vld [vmem:[%s1228 + $0x80] sm:$0xf]
    %v1251 = vld [vmem:[%s1228 + $0x84] sm:$0xff]
    %v1252 = vld [vmem:[%s1228 + $0x8c] sm:$0xf]
    %v1253 = vld [vmem:[%s1228 + $0x90] sm:$0xff]
    %v1254 = vld [vmem:[%s1228 + $0x98] sm:$0xf]
    %v1255 = vld [vmem:[%s1228 + $0x9c] sm:$0xff]
    %v1256 = vld [vmem:[%s1228 + $0xa4] sm:$0xf]
    %v1257 = vld [vmem:[%s1228 + $0xa8] sm:$0xff]
    %v1258 = vld [vmem:[%s1228 + $0xb0] sm:$0xf]
    %v1259 = vld [vmem:[%s1228 + $0xb4] sm:$0xff]
    %v1260 = vld [vmem:[%s1228 + $0xbc] sm:$0xf]
    %v1261 = vld [vmem:[%s1228 + $0xc0] sm:$0xff]
    %v1262 = vld [vmem:[%s1228 + $0xc8] sm:$0xf]
    %v1263 = vld [vmem:[%s1228 + $0xcc] sm:$0xff]
    %v1264 = vld [vmem:[%s1228 + $0xd4] sm:$0xf]
    %v1265 = vld [vmem:[%s1228 + $0xd8] sm:$0xff]
    %v1266 = vld [vmem:[%s1228 + $0xe0] sm:$0xf]
    %v1267 = vld [vmem:[%s1228 + $0xe4] sm:$0xff]
    %v1268 = vld [vmem:[%s1228 + $0xec] sm:$0xf]
    %v1269 = vld [vmem:[%s1228 + $0xf0] sm:$0xff]
    %v1270 = vld [vmem:[%s1228 + $0xf8] sm:$0xf]
    %v1271 = vld [vmem:[%s1228 + $0xfc] sm:$0xff]
    %v1272 = vld [vmem:[%s1228 + $0x104] sm:$0xf]
    %v1273 = vld [vmem:[%s1228 + $0x108] sm:$0xff]
    %v1274 = vld [vmem:[%s1228 + $0x110] sm:$0xf]
    %v1275 = vld [vmem:[%s1228 + $0x114] sm:$0xff]
    %v1276 = vld [vmem:[%s1228 + $0x11c] sm:$0xf]
    %v1325 = vunpack.c.l.b16 %v1229
    %v1326 = vunpack.c.h.b16 %v1229
    %v1327 = vunpack.c.l.b16 %v1230
    %v1328 = vunpack.c.l.b16 %v1231
    %v1329 = vunpack.c.h.b16 %v1231
    %v1330 = vunpack.c.l.b16 %v1232
    %v1331 = vunpack.c.l.b16 %v1233
    %v1332 = vunpack.c.h.b16 %v1233
    %v1333 = vunpack.c.l.b16 %v1234
    %v1334 = vunpack.c.l.b16 %v1235
    %v1335 = vunpack.c.h.b16 %v1235
    %v1336 = vunpack.c.l.b16 %v1236
    %v1337 = vunpack.c.l.b16 %v1237
    %v1338 = vunpack.c.h.b16 %v1237
    %v1339 = vunpack.c.l.b16 %v1238
    %v1340 = vunpack.c.l.b16 %v1239
    %v1341 = vunpack.c.h.b16 %v1239
    %v1342 = vunpack.c.l.b16 %v1240
    %v1343 = vunpack.c.l.b16 %v1241
    %v1344 = vunpack.c.h.b16 %v1241
    %v1345 = vunpack.c.l.b16 %v1242
    %v1346 = vunpack.c.l.b16 %v1243
    %v1347 = vunpack.c.h.b16 %v1243
    %v1348 = vunpack.c.l.b16 %v1244
    %v1349 = vunpack.c.l.b16 %v1245
    %v1350 = vunpack.c.h.b16 %v1245
    %v1351 = vunpack.c.l.b16 %v1246
    %v1352 = vunpack.c.l.b16 %v1247
    %v1353 = vunpack.c.h.b16 %v1247
    %v1354 = vunpack.c.l.b16 %v1248
    %v1355 = vunpack.c.l.b16 %v1249
    %v1356 = vunpack.c.h.b16 %v1249
    %v1357 = vunpack.c.l.b16 %v1250
    %v1358 = vunpack.c.l.b16 %v1251
    %v1359 = vunpack.c.h.b16 %v1251
    %v1360 = vunpack.c.l.b16 %v1252
    %v1361 = vunpack.c.l.b16 %v1253
    %v1362 = vunpack.c.h.b16 %v1253
    %v1363 = vunpack.c.l.b16 %v1254
    %v1364 = vunpack.c.l.b16 %v1255
    %v1365 = vunpack.c.h.b16 %v1255
    %v1366 = vunpack.c.l.b16 %v1256
    %v1367 = vunpack.c.l.b16 %v1257
    %v1368 = vunpack.c.h.b16 %v1257
    %v1369 = vunpack.c.l.b16 %v1258
    %v1370 = vunpack.c.l.b16 %v1259
    %v1371 = vunpack.c.h.b16 %v1259
    %v1372 = vunpack.c.l.b16 %v1260
    %v1373 = vunpack.c.l.b16 %v1261
    %v1374 = vunpack.c.h.b16 %v1261
    %v1375 = vunpack.c.l.b16 %v1262
    %v1376 = vunpack.c.l.b16 %v1263
    %v1377 = vunpack.c.h.b16 %v1263
    %v1378 = vunpack.c.l.b16 %v1264
    %v1379 = vunpack.c.l.b16 %v1265
    %v1380 = vunpack.c.h.b16 %v1265
    %v1381 = vunpack.c.l.b16 %v1266
    %v1382 = vunpack.c.l.b16 %v1267
    %v1383 = vunpack.c.h.b16 %v1267
    %v1384 = vunpack.c.l.b16 %v1268
    %v1385 = vunpack.c.l.b16 %v1269
    %v1386 = vunpack.c.h.b16 %v1269
    %v1387 = vunpack.c.l.b16 %v1270
    %v1388 = vunpack.c.l.b16 %v1271
    %v1389 = vunpack.c.h.b16 %v1271
    %v1390 = vunpack.c.l.b16 %v1272
    %v1391 = vunpack.c.l.b16 %v1273
    %v1392 = vunpack.c.h.b16 %v1273
    %v1393 = vunpack.c.l.b16 %v1274
    %v1394 = vunpack.c.l.b16 %v1275
    %v1395 = vunpack.c.h.b16 %v1275
    %v1396 = vunpack.c.l.b16 %v1276
    %v1397 = vpack.c.b16 %v1328, %v1325
    %v1398 = vpack.c.b16 %v1329, %v1326
    %v1399 = vpack.c.b16 %v1330, %v1327
    %v1400 = vpack.c.b16 %v1334, %v1331
    %v1401 = vpack.c.b16 %v1335, %v1332
    %v1402 = vpack.c.b16 %v1336, %v1333
    %v1403 = vpack.c.b16 %v1340, %v1337
    %v1404 = vpack.c.b16 %v1341, %v1338
    %v1405 = vpack.c.b16 %v1342, %v1339
    %v1406 = vpack.c.b16 %v1346, %v1343
    %v1407 = vpack.c.b16 %v1347, %v1344
    %v1408 = vpack.c.b16 %v1348, %v1345
    %v1409 = vpack.c.b16 %v1352, %v1349
    %v1410 = vpack.c.b16 %v1353, %v1350
    %v1411 = vpack.c.b16 %v1354, %v1351
    %v1412 = vpack.c.b16 %v1358, %v1355
    %v1413 = vpack.c.b16 %v1359, %v1356
    %v1414 = vpack.c.b16 %v1360, %v1357
    %v1415 = vpack.c.b16 %v1364, %v1361
    %v1416 = vpack.c.b16 %v1365, %v1362
    %v1417 = vpack.c.b16 %v1366, %v1363
    %v1418 = vpack.c.b16 %v1370, %v1367
    %v1419 = vpack.c.b16 %v1371, %v1368
    %v1420 = vpack.c.b16 %v1372, %v1369
    %v1421 = vpack.c.b16 %v1376, %v1373
    %v1422 = vpack.c.b16 %v1377, %v1374
    %v1423 = vpack.c.b16 %v1378, %v1375
    %v1424 = vpack.c.b16 %v1382, %v1379
    %v1425 = vpack.c.b16 %v1383, %v1380
    %v1426 = vpack.c.b16 %v1384, %v1381
    %v1427 = vpack.c.b16 %v1388, %v1385
    %v1428 = vpack.c.b16 %v1389, %v1386
    %v1429 = vpack.c.b16 %v1390, %v1387
    %v1430 = vpack.c.b16 %v1394, %v1391
    %v1431 = vpack.c.b16 %v1395, %v1392
    %v1432 = vpack.c.b16 %v1396, %v1393
    %v1470 = vsel %vm135, %v1223, 0
    %v1473 = vsel %vm135, %v1225, 0
    %v1476 = vsel %vm135, %v1227, 0
    %1478 = vmatprep.subr.bf16.mxu0 %v1398
    %1479 = vmatpush1.bf16.msra.mxu0 %v1397
    %1480 = vmatprep.subr.bf16.mxu0 %v1401
    %1481 = vmatpush1.bf16.msra.mxu0 %v1400
    %1482 = vmatprep.subr.bf16.mxu0 %v1404
    %1483 = vmatpush1.bf16.msra.mxu0 %v1403
    %1484 = vmatprep.subr.bf16.mxu0 %v1407
    %1485 = vmatpush1.bf16.msra.mxu0 %v1406
    %1486 = vmatprep.subr.bf16.mxu0 %v1410
    %1487 = vmatpush1.bf16.msra.mxu0 %v1409
    %1488 = vmatprep.subr.bf16.mxu0 %v1413
    %1489 = vmatpush1.bf16.msra.mxu0 %v1412
    %1490 = vmatprep.subr.bf16.mxu0 %v1416
    %1491 = vmatpush1.bf16.msra.mxu0 %v1415
    %1492 = vmatprep.subr.bf16.mxu0 %v1419
    %1493 = vmatpush1.bf16.msra.mxu0 %v1418
    %1494 = vmatprep.subr.bf16.mxu0 %v1422
    %1495 = vmatpush1.bf16.msra.mxu0 %v1421
    %1496 = vmatprep.subr.bf16.mxu0 %v1425
    %1497 = vmatpush1.bf16.msra.mxu0 %v1424
    %1498 = vmatprep.subr.bf16.mxu0 %v1428
    %1499 = vmatpush1.bf16.msra.mxu0 %v1427
    %1500 = vmatprep.subr.bf16.mxu0 %v1431
    %1501 = vmatpush1.bf16.msra.mxu0 %v1430
    %1502 = vmatprep.subr.bf16.mxu0 0
    %1503 = vmatpush1.bf16.msra.mxu0 0
    %1504 = vmatprep.subr.bf16.mxu0 0
    %1505 = vmatpush1.bf16.msra.mxu0 0
    %1506 = vmatprep.subr.bf16.mxu0 0
    %1507 = vmatpush1.bf16.msra.mxu0 0
    %1508 = vmatprep.subr.bf16.mxu0 0
    %1509 = vmatpush1.bf16.msra.mxu0 0
    %1510 = vmatprep.mubr.bf16.mxu0 %v1470
    %1511 = vmatmul.mubr.bf16.gmra.mrb[0].mxu0 %v1222
    %v1512 = vpop.f32.mrb[0].mxu0
    %v1513 = vadd.f32 0.0, %v1512
    %v1514 = vpop.f32.mrb[0].mxu0
    %v1515 = vadd.f32 0.0, %v1514
    %v1516 = vpop.f32.mrb[0].mxu0
    %v1517 = vadd.f32 0.0, %v1516
    %v1518 = vpop.f32.mrb[0].mxu0
    %v1519 = vadd.f32 0.0, %v1518
    %1520 = vmatprep.mubr.bf16.mxu0 %v1473
    %1521 = vmatmul.mubr.bf16.gmra.mrb[0].mxu0 %v1224
    %v1522 = vpop.f32.mrb[0].mxu0
    %v1523 = vadd.f32 0.0, %v1522
    %v1524 = vpop.f32.mrb[0].mxu0
    %v1525 = vadd.f32 0.0, %v1524
    %v1526 = vpop.f32.mrb[0].mxu0
    %v1527 = vadd.f32 0.0, %v1526
    %v1528 = vpop.f32.mrb[0].mxu0
    %v1529 = vadd.f32 0.0, %v1528
    %1530 = vmatprep.mubr.bf16.mxu0 %v1476
    %1531 = vmatmul.mubr.bf16.gmra.mrb[0].mxu0 %v1226
    %v1532 = vpop.f32.mrb[0].mxu0
    %v1533 = vadd.f32 0.0, %v1532
    %v1534 = vpop.f32.mrb[0].mxu0
    %v1535 = vadd.f32 0.0, %v1534
    %v1536 = vpop.f32.mrb[0].mxu0
    %v1537 = vpop.f32.mrb[0].mxu0
    %1538 = vdwg.mxu0
    %1539 = vmatprep.subr.bf16.mxu0 0
    %1540 = vmatpush1.bf16.msra.mxu0 %v1399
    %1541 = vmatprep.subr.bf16.mxu0 0
    %1542 = vmatpush1.bf16.msra.mxu0 %v1402
    %1543 = vmatprep.subr.bf16.mxu0 0
    %1544 = vmatpush1.bf16.msra.mxu0 %v1405
    %1545 = vmatprep.subr.bf16.mxu0 0
    %1546 = vmatpush1.bf16.msra.mxu0 %v1408
    %1547 = vmatprep.subr.bf16.mxu0 0
    %1548 = vmatpush1.bf16.msra.mxu0 %v1411
    %1549 = vmatprep.subr.bf16.mxu0 0
    %1550 = vmatpush1.bf16.msra.mxu0 %v1414
    %1551 = vmatprep.subr.bf16.mxu0 0
    %1552 = vmatpush1.bf16.msra.mxu0 %v1417
    %1553 = vmatprep.subr.bf16.mxu0 0
    %1554 = vmatpush1.bf16.msra.mxu0 %v1420
    %1555 = vmatprep.subr.bf16.mxu0 0
    %1556 = vmatpush1.bf16.msra.mxu0 %v1423
    %1557 = vmatprep.subr.bf16.mxu0 0
    %1558 = vmatpush1.bf16.msra.mxu0 %v1426
    %1559 = vmatprep.subr.bf16.mxu0 0
    %1560 = vmatpush1.bf16.msra.mxu0 %v1429
    %1561 = vmatprep.subr.bf16.mxu0 0
    %1562 = vmatpush1.bf16.msra.mxu0 %v1432
    %1563 = vmatprep.subr.bf16.mxu0 0
    %1564 = vmatpush1.bf16.msra.mxu0 0
    %1565 = vmatprep.subr.bf16.mxu0 0
    %1566 = vmatpush1.bf16.msra.mxu0 0
    %1567 = vmatprep.subr.bf16.mxu0 0
    %1568 = vmatpush1.bf16.msra.mxu0 0
    %1569 = vmatprep.subr.bf16.mxu0 0
    %1570 = vmatpush1.bf16.msra.mxu0 0
    %1571 = vmatprep.mubr.bf16.mxu0 %v1470
    %1572 = vmatmul.mubr.bf16.gmra.mrb[0].mxu0 %v1222
    %v1573 = vpop.f32.mrb[0].mxu0
    %v1574 = vadd.f32 0.0, %v1573
    %v1575 = vpop.f32.mrb[0].mxu0
    %v1576 = vpop.f32.mrb[0].mxu0
    %v1577 = vadd.f32 0.0, %v1576
    %v1578 = vpop.f32.mrb[0].mxu0
    %1579 = vmatprep.mubr.bf16.mxu0 %v1473
    %1580 = vmatmul.mubr.bf16.gmra.mrb[0].mxu0 %v1224
    %v1581 = vpop.f32.mrb[0].mxu0
    %v1582 = vadd.f32 0.0, %v1581
    %v1583 = vpop.f32.mrb[0].mxu0
    %v1584 = vpop.f32.mrb[0].mxu0
    %v1585 = vadd.f32 0.0, %v1584
    %v1586 = vpop.f32.mrb[0].mxu0
    %1587 = vmatprep.mubr.bf16.mxu0 %v1476
    %1588 = vmatmul.mubr.bf16.gmra.mrb[0].mxu0 %v1226
    %v1589 = vpop.f32.mrb[0].mxu0
    %v1590 = vadd.f32 0.0, %v1589
    %v1591 = vpop.f32.mrb[0].mxu0
    %v1592 = vpop.f32.mrb[0].mxu0
    %v1593 = vpop.f32.mrb[0].mxu0
    %1594 = vdwg.mxu0
    %v1643 = vunpack.c.l.b16 %v1174
    %v1644 = vunpack.c.h.b16 %v1174
    %v1645 = vunpack.c.l.b16 %v1175
    %v1646 = vunpack.c.l.b16 %v1176
    %v1647 = vunpack.c.h.b16 %v1176
    %v1648 = vunpack.c.l.b16 %v1177
    %v1649 = vunpack.c.l.b16 %v1178
    %v1650 = vunpack.c.h.b16 %v1178
    %v1651 = vunpack.c.l.b16 %v1179
    %v1652 = vunpack.c.l.b16 %v1180
    %v1653 = vunpack.c.h.b16 %v1180
    %v1654 = vunpack.c.l.b16 %v1181
    %v1655 = vunpack.c.l.b16 %v1182
    %v1656 = vunpack.c.h.b16 %v1182
    %v1657 = vunpack.c.l.b16 %v1183
    %v1658 = vunpack.c.l.b16 %v1184
    %v1659 = vunpack.c.h.b16 %v1184
    %v1660 = vunpack.c.l.b16 %v1185
    %v1661 = vunpack.c.l.b16 %v1186
    %v1662 = vunpack.c.h.b16 %v1186
    %v1663 = vunpack.c.l.b16 %v1187
    %v1664 = vunpack.c.l.b16 %v1188
    %v1665 = vunpack.c.h.b16 %v1188
    %v1666 = vunpack.c.l.b16 %v1189
    %v1667 = vunpack.c.l.b16 %v1190
    %v1668 = vunpack.c.h.b16 %v1190
    %v1669 = vunpack.c.l.b16 %v1191
    %v1670 = vunpack.c.l.b16 %v1192
    %v1671 = vunpack.c.h.b16 %v1192
    %v1672 = vunpack.c.l.b16 %v1193
    %v1673 = vunpack.c.l.b16 %v1194
    %v1674 = vunpack.c.h.b16 %v1194
    %v1675 = vunpack.c.l.b16 %v1195
    %v1676 = vunpack.c.l.b16 %v1196
    %v1677 = vunpack.c.h.b16 %v1196
    %v1678 = vunpack.c.l.b16 %v1197
    %v1679 = vunpack.c.l.b16 %v1198
    %v1680 = vunpack.c.h.b16 %v1198
    %v1681 = vunpack.c.l.b16 %v1199
    %v1682 = vunpack.c.l.b16 %v1200
    %v1683 = vunpack.c.h.b16 %v1200
    %v1684 = vunpack.c.l.b16 %v1201
    %v1685 = vunpack.c.l.b16 %v1202
    %v1686 = vunpack.c.h.b16 %v1202
    %v1687 = vunpack.c.l.b16 %v1203
    %v1688 = vunpack.c.l.b16 %v1204
    %v1689 = vunpack.c.h.b16 %v1204
    %v1690 = vunpack.c.l.b16 %v1205
    %v1691 = vunpack.c.l.b16 %v1206
    %v1692 = vunpack.c.h.b16 %v1206
    %v1693 = vunpack.c.l.b16 %v1207
    %v1694 = vunpack.c.l.b16 %v1208
    %v1695 = vunpack.c.h.b16 %v1208
    %v1696 = vunpack.c.l.b16 %v1209
    %v1697 = vunpack.c.l.b16 %v1210
    %v1698 = vunpack.c.h.b16 %v1210
    %v1699 = vunpack.c.l.b16 %v1211
    %v1700 = vunpack.c.l.b16 %v1212
    %v1701 = vunpack.c.h.b16 %v1212
    %v1702 = vunpack.c.l.b16 %v1213
    %v1703 = vunpack.c.l.b16 %v1214
    %v1704 = vunpack.c.h.b16 %v1214
    %v1705 = vunpack.c.l.b16 %v1215
    %v1706 = vunpack.c.l.b16 %v1216
    %v1707 = vunpack.c.h.b16 %v1216
    %v1708 = vunpack.c.l.b16 %v1217
    %v1709 = vunpack.c.l.b16 %v1218
    %v1710 = vunpack.c.h.b16 %v1218
    %v1711 = vunpack.c.l.b16 %v1219
    %v1712 = vunpack.c.l.b16 %v1220
    %v1713 = vunpack.c.h.b16 %v1220
    %v1714 = vunpack.c.l.b16 %v1221
    %v1715 = vpack.c.b16 %v1646, %v1643
    %v1716 = vpack.c.b16 %v1647, %v1644
    %v1717 = vpack.c.b16 %v1648, %v1645
    %v1718 = vpack.c.b16 %v1652, %v1649
    %v1719 = vpack.c.b16 %v1653, %v1650
    %v1720 = vpack.c.b16 %v1654, %v1651
    %v1721 = vpack.c.b16 %v1658, %v1655
    %v1722 = vpack.c.b16 %v1659, %v1656
    %v1723 = vpack.c.b16 %v1660, %v1657
    %v1724 = vpack.c.b16 %v1664, %v1661
    %v1725 = vpack.c.b16 %v1665, %v1662
    %v1726 = vpack.c.b16 %v1666, %v1663
    %v1727 = vpack.c.b16 %v1670, %v1667
    %v1728 = vpack.c.b16 %v1671, %v1668
    %v1729 = vpack.c.b16 %v1672, %v1669
    %v1730 = vpack.c.b16 %v1676, %v1673
    %v1731 = vpack.c.b16 %v1677, %v1674
    %v1732 = vpack.c.b16 %v1678, %v1675
    %v1733 = vpack.c.b16 %v1682, %v1679
    %v1734 = vpack.c.b16 %v1683, %v1680
    %v1735 = vpack.c.b16 %v1684, %v1681
    %v1736 = vpack.c.b16 %v1688, %v1685
    %v1737 = vpack.c.b16 %v1689, %v1686
    %v1738 = vpack.c.b16 %v1690, %v1687
    %v1739 = vpack.c.b16 %v1694, %v1691
    %v1740 = vpack.c.b16 %v1695, %v1692
    %v1741 = vpack.c.b16 %v1696, %v1693
    %v1742 = vpack.c.b16 %v1700, %v1697
    %v1743 = vpack.c.b16 %v1701, %v1698
    %v1744 = vpack.c.b16 %v1702, %v1699
    %v1745 = vpack.c.b16 %v1706, %v1703
    %v1746 = vpack.c.b16 %v1707, %v1704
    %v1747 = vpack.c.b16 %v1708, %v1705
    %v1748 = vpack.c.b16 %v1712, %v1709
    %v1749 = vpack.c.b16 %v1713, %v1710
    %v1750 = vpack.c.b16 %v1714, %v1711
    %v1788 = vsel %vm135, %v1169, 0
    %v1791 = vsel %vm135, %v1171, 0
    %v1794 = vsel %vm135, %v1173, 0
    %1796 = vmatprep.subr.bf16.mxu0 %v1716
    %1797 = vmatpush1.bf16.msra.mxu0 %v1715
    %1798 = vmatprep.subr.bf16.mxu0 %v1719
    %1799 = vmatpush1.bf16.msra.mxu0 %v1718
    %1800 = vmatprep.subr.bf16.mxu0 %v1722
    %1801 = vmatpush1.bf16.msra.mxu0 %v1721
    %1802 = vmatprep.subr.bf16.mxu0 %v1725
    %1803 = vmatpush1.bf16.msra.mxu0 %v1724
    %1804 = vmatprep.subr.bf16.mxu0 %v1728
    %1805 = vmatpush1.bf16.msra.mxu0 %v1727
    %1806 = vmatprep.subr.bf16.mxu0 %v1731
    %1807 = vmatpush1.bf16.msra.mxu0 %v1730
    %1808 = vmatprep.subr.bf16.mxu0 %v1734
    %1809 = vmatpush1.bf16.msra.mxu0 %v1733
    %1810 = vmatprep.subr.bf16.mxu0 %v1737
    %1811 = vmatpush1.bf16.msra.mxu0 %v1736
    %1812 = vmatprep.subr.bf16.mxu0 %v1740
    %1813 = vmatpush1.bf16.msra.mxu0 %v1739
    %1814 = vmatprep.subr.bf16.mxu0 %v1743
    %1815 = vmatpush1.bf16.msra.mxu0 %v1742
    %1816 = vmatprep.subr.bf16.mxu0 %v1746
    %1817 = vmatpush1.bf16.msra.mxu0 %v1745
    %1818 = vmatprep.subr.bf16.mxu0 %v1749
    %1819 = vmatpush1.bf16.msra.mxu0 %v1748
    %1820 = vmatprep.subr.bf16.mxu0 0
    %1821 = vmatpush1.bf16.msra.mxu0 0
    %1822 = vmatprep.subr.bf16.mxu0 0
    %1823 = vmatpush1.bf16.msra.mxu0 0
    %1824 = vmatprep.subr.bf16.mxu0 0
    %1825 = vmatpush1.bf16.msra.mxu0 0
    %1826 = vmatprep.subr.bf16.mxu0 0
    %1827 = vmatpush1.bf16.msra.mxu0 0
    %1828 = vmatprep.mubr.bf16.mxu0 %v1788
    %1829 = vmatmul.mubr.bf16.gmra.mrb[0].mxu0 %v1168
    %v1830 = vpop.f32.mrb[0].mxu0
    %v1831 = vadd.f32 %v1513, %v1830
    %v1832 = vpop.f32.mrb[0].mxu0
    %v1833 = vadd.f32 %v1515, %v1832
    %v1834 = vpop.f32.mrb[0].mxu0
    %v1835 = vadd.f32 %v1517, %v1834
    %v1836 = vpop.f32.mrb[0].mxu0
    %v1837 = vadd.f32 %v1519, %v1836
    %1838 = vmatprep.mubr.bf16.mxu0 %v1791
    %1839 = vmatmul.mubr.bf16.gmra.mrb[0].mxu0 %v1170
    %v1840 = vpop.f32.mrb[0].mxu0
    %v1841 = vadd.f32 %v1523, %v1840
    %v1842 = vpop.f32.mrb[0].mxu0
    %v1843 = vadd.f32 %v1525, %v1842
    %v1844 = vpop.f32.mrb[0].mxu0
    %v1845 = vadd.f32 %v1527, %v1844
    %v1846 = vpop.f32.mrb[0].mxu0
    %v1847 = vadd.f32 %v1529, %v1846
    %1848 = vmatprep.mubr.bf16.mxu0 %v1794
    %1849 = vmatmul.mubr.bf16.gmra.mrb[0].mxu0 %v1172
    %v1850 = vpop.f32.mrb[0].mxu0
    %v1851 = vadd.f32 %v1533, %v1850
    %v1852 = vpop.f32.mrb[0].mxu0
    %v1853 = vadd.f32 %v1535, %v1852
    %v1854 = vpop.f32.mrb[0].mxu0
    %v1855 = vpop.f32.mrb[0].mxu0
    %1856 = vdwg.mxu0
    %1857 = vmatprep.subr.bf16.mxu0 0
    %1858 = vmatpush1.bf16.msra.mxu0 %v1717
    %1859 = vmatprep.subr.bf16.mxu0 0
    %1860 = vmatpush1.bf16.msra.mxu0 %v1720
    %1861 = vmatprep.subr.bf16.mxu0 0
    %1862 = vmatpush1.bf16.msra.mxu0 %v1723
    %1863 = vmatprep.subr.bf16.mxu0 0
    %1864 = vmatpush1.bf16.msra.mxu0 %v1726
    %1865 = vmatprep.subr.bf16.mxu0 0
    %1866 = vmatpush1.bf16.msra.mxu0 %v1729
    %1867 = vmatprep.subr.bf16.mxu0 0
    %1868 = vmatpush1.bf16.msra.mxu0 %v1732
    %1869 = vmatprep.subr.bf16.mxu0 0
    %1870 = vmatpush1.bf16.msra.mxu0 %v1735
    %1871 = vmatprep.subr.bf16.mxu0 0
    %1872 = vmatpush1.bf16.msra.mxu0 %v1738
    %1873 = vmatprep.subr.bf16.mxu0 0
    %1874 = vmatpush1.bf16.msra.mxu0 %v1741
    %1875 = vmatprep.subr.bf16.mxu0 0
    %1876 = vmatpush1.bf16.msra.mxu0 %v1744
    %1877 = vmatprep.subr.bf16.mxu0 0
    %1878 = vmatpush1.bf16.msra.mxu0 %v1747
    %1879 = vmatprep.subr.bf16.mxu0 0
    %1880 = vmatpush1.bf16.msra.mxu0 %v1750
    %1881 = vmatprep.subr.bf16.mxu0 0
    %1882 = vmatpush1.bf16.msra.mxu0 0
    %1883 = vmatprep.subr.bf16.mxu0 0
    %1884 = vmatpush1.bf16.msra.mxu0 0
    %1885 = vmatprep.subr.bf16.mxu0 0
    %1886 = vmatpush1.bf16.msra.mxu0 0
    %1887 = vmatprep.subr.bf16.mxu0 0
    %1888 = vmatpush1.bf16.msra.mxu0 0
    %1889 = vmatprep.mubr.bf16.mxu0 %v1788
    %1890 = vmatmul.mubr.bf16.gmra.mrb[0].mxu0 %v1168
    %v1891 = vpop.f32.mrb[0].mxu0
    %v1892 = vadd.f32 %v1574, %v1891
    %v1893 = vpop.f32.mrb[0].mxu0
    %v1894 = vpop.f32.mrb[0].mxu0
    %v1895 = vadd.f32 %v1577, %v1894
    %v1896 = vpop.f32.mrb[0].mxu0
    %1897 = vmatprep.mubr.bf16.mxu0 %v1791
    %1898 = vmatmul.mubr.bf16.gmra.mrb[0].mxu0 %v1170
    %v1899 = vpop.f32.mrb[0].mxu0
    %v1900 = vadd.f32 %v1582, %v1899
    %v1901 = vpop.f32.mrb[0].mxu0
    %v1902 = vpop.f32.mrb[0].mxu0
    %v1903 = vadd.f32 %v1585, %v1902
    %v1904 = vpop.f32.mrb[0].mxu0
    %1905 = vmatprep.mubr.bf16.mxu0 %v1794
    %1906 = vmatmul.mubr.bf16.gmra.mrb[0].mxu0 %v1172
    %v1907 = vpop.f32.mrb[0].mxu0
    %v1908 = vadd.f32 %v1590, %v1907
    %v1909 = vpop.f32.mrb[0].mxu0
    %v1910 = vpop.f32.mrb[0].mxu0
    %v1911 = vpop.f32.mrb[0].mxu0
    %1912 = vdwg.mxu0
    %v1913 = vld [vmem:[%s8] sm:$0x7]
    %v1915 = vlaneseq
    %v1916 = vshrl.u32 %v1915, 7
    %v1917 = vsub.s32 0, %v1916
    %v1918 = vrot.slane %v1913, %v1917
    %v1919 = vlaneseq
    %v1920 = vshrl.u32 %v1919, 7
    %v1921 = vsub.s32 1, %v1920
    %v1922 = vrot.slane %v1913, %v1921
    %v1923 = vlaneseq
    %v1924 = vshrl.u32 %v1923, 7
    %v1925 = vsub.s32 2, %v1924
    %v1926 = vrot.slane %v1913, %v1925
    %v1930 = vadd.f32 %v1831, %v1918
    %v1931 = vadd.f32 %v1833, %v1922
    %v1932 = vadd.f32 %v1892, %v1926
    %v1933 = vadd.f32 %v1835, %v1918
    %v1934 = vadd.f32 %v1837, %v1922
    %v1935 = vadd.f32 %v1895, %v1926
    %v1936 = vadd.f32 %v1841, %v1918
    %v1937 = vadd.f32 %v1843, %v1922
    %v1938 = vadd.f32 %v1900, %v1926
    %v1939 = vadd.f32 %v1845, %v1918
    %v1940 = vadd.f32 %v1847, %v1922
    %v1941 = vadd.f32 %v1903, %v1926
    %v1942 = vadd.f32 %v1851, %v1918
    %v1943 = vadd.f32 %v1853, %v1922
    %v1944 = vadd.f32 %v1908, %v1926
    %v1945 = vmax.f32 %v1930, 0.0
    %v1946 = vmax.f32 %v1931, 0.0
    %v1947 = vmax.f32 %v1932, 0.0
    %v1948 = vmax.f32 %v1933, 0.0
    %v1949 = vmax.f32 %v1934, 0.0
    %v1950 = vmax.f32 %v1935, 0.0
    %v1951 = vmax.f32 %v1936, 0.0
    %v1952 = vmax.f32 %v1937, 0.0
    %v1953 = vmax.f32 %v1938, 0.0
    %v1954 = vmax.f32 %v1939, 0.0
    %v1955 = vmax.f32 %v1940, 0.0
    %v1956 = vmax.f32 %v1941, 0.0
    %v1957 = vmax.f32 %v1942, 0.0
    %v1958 = vmax.f32 %v1943, 0.0
    %v1959 = vmax.f32 %v1944, 0.0
    %v1960 = vpack.c.bf16 %v1945, %v1945
    %v1961 = vpack.c.bf16 %v1946, %v1946
    %v1962 = vpack.c.bf16 %v1947, %v1947
    %v1963 = vld [vmem:[%s9] sm:$0xf]
    %v1964 = vld [vmem:[%s9 + $0x4] sm:$0xf]
    %v1965 = vld [vmem:[%s9 + $0x8] sm:$0xf]
    %v1966 = vld [vmem:[%s9 + $0xc] sm:$0xf]
    %v1967 = vld [vmem:[%s9 + $0x10] sm:$0xf]
    %v1968 = vld [vmem:[%s9 + $0x14] sm:$0xf]
    %v1969 = vld [vmem:[%s9 + $0x18] sm:$0xf]
    %v1970 = vld [vmem:[%s9 + $0x1c] sm:$0xf]
    %v1971 = vld [vmem:[%s9 + $0x20] sm:$0xf]
    %v1972 = vld [vmem:[%s9 + $0x24] sm:$0xf]
    %v1973 = vld [vmem:[%s9 + $0x28] sm:$0xf]
    %v1974 = vld [vmem:[%s9 + $0x2c] sm:$0xf]
    %v1975 = vld [vmem:[%s9 + $0x30] sm:$0xf]
    %v1976 = vld [vmem:[%s9 + $0x34] sm:$0xf]
    %v1977 = vld [vmem:[%s9 + $0x38] sm:$0xf]
    %v1978 = vld [vmem:[%s9 + $0x3c] sm:$0xf]
    %v1979 = vld [vmem:[%s9 + $0x40] sm:$0xf]
    %v1980 = vld [vmem:[%s9 + $0x44] sm:$0xf]
    %v1981 = vld [vmem:[%s9 + $0x48] sm:$0xf]
    %v1982 = vld [vmem:[%s9 + $0x4c] sm:$0xf]
    %v1983 = vld [vmem:[%s9 + $0x50] sm:$0xf]
    %v1984 = vld [vmem:[%s9 + $0x54] sm:$0xf]
    %v1985 = vld [vmem:[%s9 + $0x58] sm:$0xf]
    %v1986 = vld [vmem:[%s9 + $0x5c] sm:$0xf]
    %v1987 = vld [vmem:[%s9 + $0x60] sm:$0xf]
    %v1988 = vld [vmem:[%s9 + $0x64] sm:$0xf]
    %v1989 = vld [vmem:[%s9 + $0x68] sm:$0xf]
    %v1990 = vld [vmem:[%s9 + $0x6c] sm:$0xf]
    %v1991 = vld [vmem:[%s9 + $0x70] sm:$0xf]
    %v1992 = vld [vmem:[%s9 + $0x74] sm:$0xf]
    %v1993 = vld [vmem:[%s9 + $0x78] sm:$0xf]
    %v1994 = vld [vmem:[%s9 + $0x7c] sm:$0xf]
    %v1995 = vld [vmem:[%s9 + $0x80] sm:$0xf]
    %v1996 = vld [vmem:[%s9 + $0x84] sm:$0xf]
    %v1997 = vld [vmem:[%s9 + $0x88] sm:$0xf]
    %v1998 = vld [vmem:[%s9 + $0x8c] sm:$0xf]
    %v1999 = vld [vmem:[%s9 + $0x90] sm:$0xf]
    %v2000 = vld [vmem:[%s9 + $0x94] sm:$0xf]
    %v2001 = vld [vmem:[%s9 + $0x98] sm:$0xf]
    %v2002 = vld [vmem:[%s9 + $0x9c] sm:$0xf]
    %v2003 = vpack.c.bf16 %v1948, %v1948
    %v2004 = vpack.c.bf16 %v1949, %v1949
    %v2005 = vpack.c.bf16 %v1950, %v1950
    %s2006 = scalar_lea.vmem %s9, 160
    %v2007 = vld [vmem:[%s2006] sm:$0xf]
    %v2008 = vld [vmem:[%s2006 + $0x4] sm:$0xf]
    %v2009 = vld [vmem:[%s2006 + $0x8] sm:$0xf]
    %v2010 = vld [vmem:[%s2006 + $0xc] sm:$0xf]
    %v2011 = vld [vmem:[%s2006 + $0x10] sm:$0xf]
    %v2012 = vld [vmem:[%s2006 + $0x14] sm:$0xf]
    %v2013 = vld [vmem:[%s2006 + $0x18] sm:$0xf]
    %v2014 = vld [vmem:[%s2006 + $0x1c] sm:$0xf]
    %v2015 = vld [vmem:[%s2006 + $0x20] sm:$0xf]
    %v2016 = vld [vmem:[%s2006 + $0x24] sm:$0xf]
    %v2017 = vld [vmem:[%s2006 + $0x28] sm:$0xf]
    %v2018 = vld [vmem:[%s2006 + $0x2c] sm:$0xf]
    %v2019 = vld [vmem:[%s2006 + $0x30] sm:$0xf]
    %v2020 = vld [vmem:[%s2006 + $0x34] sm:$0xf]
    %v2021 = vld [vmem:[%s2006 + $0x38] sm:$0xf]
    %v2022 = vld [vmem:[%s2006 + $0x3c] sm:$0xf]
    %v2023 = vld [vmem:[%s2006 + $0x40] sm:$0xf]
    %v2024 = vld [vmem:[%s2006 + $0x44] sm:$0xf]
    %v2025 = vld [vmem:[%s2006 + $0x48] sm:$0xf]
    %v2026 = vld [vmem:[%s2006 + $0x4c] sm:$0xf]
    %v2027 = vld [vmem:[%s2006 + $0x50] sm:$0xf]
    %v2028 = vld [vmem:[%s2006 + $0x54] sm:$0xf]
    %v2029 = vld [vmem:[%s2006 + $0x58] sm:$0xf]
    %v2030 = vld [vmem:[%s2006 + $0x5c] sm:$0xf]
    %v2031 = vld [vmem:[%s2006 + $0x60] sm:$0xf]
    %v2032 = vld [vmem:[%s2006 + $0x64] sm:$0xf]
    %v2033 = vld [vmem:[%s2006 + $0x68] sm:$0xf]
    %v2034 = vld [vmem:[%s2006 + $0x6c] sm:$0xf]
    %v2035 = vld [vmem:[%s2006 + $0x70] sm:$0xf]
    %v2036 = vld [vmem:[%s2006 + $0x74] sm:$0xf]
    %v2037 = vld [vmem:[%s2006 + $0x78] sm:$0xf]
    %v2038 = vld [vmem:[%s2006 + $0x7c] sm:$0xf]
    %v2039 = vld [vmem:[%s2006 + $0x80] sm:$0xf]
    %v2040 = vld [vmem:[%s2006 + $0x84] sm:$0xf]
    %v2041 = vld [vmem:[%s2006 + $0x88] sm:$0xf]
    %v2042 = vld [vmem:[%s2006 + $0x8c] sm:$0xf]
    %v2043 = vld [vmem:[%s2006 + $0x90] sm:$0xf]
    %v2044 = vld [vmem:[%s2006 + $0x94] sm:$0xf]
    %v2045 = vld [vmem:[%s2006 + $0x98] sm:$0xf]
    %v2046 = vld [vmem:[%s2006 + $0x9c] sm:$0xf]
    %v2087 = vunpack.c.l.b16 %v2007
    %v2088 = vunpack.c.l.b16 %v2008
    %v2089 = vunpack.c.l.b16 %v2009
    %v2090 = vunpack.c.l.b16 %v2010
    %v2091 = vunpack.c.l.b16 %v2011
    %v2092 = vunpack.c.l.b16 %v2012
    %v2093 = vunpack.c.l.b16 %v2013
    %v2094 = vunpack.c.l.b16 %v2014
    %v2095 = vunpack.c.l.b16 %v2015
    %v2096 = vunpack.c.l.b16 %v2016
    %v2097 = vunpack.c.l.b16 %v2017
    %v2098 = vunpack.c.l.b16 %v2018
    %v2099 = vunpack.c.l.b16 %v2019
    %v2100 = vunpack.c.l.b16 %v2020
    %v2101 = vunpack.c.l.b16 %v2021
    %v2102 = vunpack.c.l.b16 %v2022
    %v2103 = vunpack.c.l.b16 %v2023
    %v2104 = vunpack.c.l.b16 %v2024
    %v2105 = vunpack.c.l.b16 %v2025
    %v2106 = vunpack.c.l.b16 %v2026
    %v2107 = vunpack.c.l.b16 %v2027
    %v2108 = vunpack.c.l.b16 %v2028
    %v2109 = vunpack.c.l.b16 %v2029
    %v2110 = vunpack.c.l.b16 %v2030
    %v2111 = vunpack.c.l.b16 %v2031
    %v2112 = vunpack.c.l.b16 %v2032
    %v2113 = vunpack.c.l.b16 %v2033
    %v2114 = vunpack.c.l.b16 %v2034
    %v2115 = vunpack.c.l.b16 %v2035
    %v2116 = vunpack.c.l.b16 %v2036
    %v2117 = vunpack.c.l.b16 %v2037
    %v2118 = vunpack.c.l.b16 %v2038
    %v2119 = vunpack.c.l.b16 %v2039
    %v2120 = vunpack.c.l.b16 %v2040
    %v2121 = vunpack.c.l.b16 %v2041
    %v2122 = vunpack.c.l.b16 %v2042
    %v2123 = vunpack.c.l.b16 %v2043
    %v2124 = vunpack.c.l.b16 %v2044
    %v2125 = vunpack.c.l.b16 %v2045
    %v2126 = vunpack.c.l.b16 %v2046
    %v2127 = vpack.c.b16 %v2088, %v2087
    %v2128 = vpack.c.b16 %v2090, %v2089
    %v2129 = vpack.c.b16 %v2092, %v2091
    %v2130 = vpack.c.b16 %v2094, %v2093
    %v2131 = vpack.c.b16 %v2096, %v2095
    %v2132 = vpack.c.b16 %v2098, %v2097
    %v2133 = vpack.c.b16 %v2100, %v2099
    %v2134 = vpack.c.b16 %v2102, %v2101
    %v2135 = vpack.c.b16 %v2104, %v2103
    %v2136 = vpack.c.b16 %v2106, %v2105
    %v2137 = vpack.c.b16 %v2108, %v2107
    %v2138 = vpack.c.b16 %v2110, %v2109
    %v2139 = vpack.c.b16 %v2112, %v2111
    %v2140 = vpack.c.b16 %v2114, %v2113
    %v2141 = vpack.c.b16 %v2116, %v2115
    %v2142 = vpack.c.b16 %v2118, %v2117
    %v2143 = vpack.c.b16 %v2120, %v2119
    %v2144 = vpack.c.b16 %v2122, %v2121
    %v2145 = vpack.c.b16 %v2124, %v2123
    %v2146 = vpack.c.b16 %v2126, %v2125
    %v2168 = vsel %vm135, %v2005, 0
    %2170 = vmatprep.subr.bf16.mxu0 0
    %2171 = vmatpush1.bf16.msra.mxu0 %v2127
    %2172 = vmatprep.subr.bf16.mxu0 0
    %2173 = vmatpush1.bf16.msra.mxu0 %v2128
    %2174 = vmatprep.subr.bf16.mxu0 0
    %2175 = vmatpush1.bf16.msra.mxu0 %v2129
    %2176 = vmatprep.subr.bf16.mxu0 0
    %2177 = vmatpush1.bf16.msra.mxu0 %v2130
    %2178 = vmatprep.subr.bf16.mxu0 0
    %2179 = vmatpush1.bf16.msra.mxu0 %v2131
    %2180 = vmatprep.subr.bf16.mxu0 0
    %2181 = vmatpush1.bf16.msra.mxu0 %v2132
    %2182 = vmatprep.subr.bf16.mxu0 0
    %2183 = vmatpush1.bf16.msra.mxu0 %v2133
    %2184 = vmatprep.subr.bf16.mxu0 0
    %2185 = vmatpush1.bf16.msra.mxu0 %v2134
    %2186 = vmatprep.subr.bf16.mxu0 0
    %2187 = vmatpush1.bf16.msra.mxu0 %v2135
    %2188 = vmatprep.subr.bf16.mxu0 0
    %2189 = vmatpush1.bf16.msra.mxu0 %v2136
    %2190 = vmatprep.subr.bf16.mxu0 0
    %2191 = vmatpush1.bf16.msra.mxu0 %v2137
    %2192 = vmatprep.subr.bf16.mxu0 0
    %2193 = vmatpush1.bf16.msra.mxu0 %v2138
    %2194 = vmatprep.subr.bf16.mxu0 0
    %2195 = vmatpush1.bf16.msra.mxu0 %v2139
    %2196 = vmatprep.subr.bf16.mxu0 0
    %2197 = vmatpush1.bf16.msra.mxu0 %v2140
    %2198 = vmatprep.subr.bf16.mxu0 0
    %2199 = vmatpush1.bf16.msra.mxu0 %v2141
    %2200 = vmatprep.subr.bf16.mxu0 0
    %2201 = vmatpush1.bf16.msra.mxu0 %v2142
    %2202 = vmatprep.mubr.bf16.mxu0 %v2004
    %2203 = vmatmul.mubr.bf16.gmra.mrb[0].mxu0 %v2003
    %v2204 = vpop.f32.mrb[0].mxu0
    %v2205 = vadd.f32 0.0, %v2204
    %v2206 = vpop.f32.mrb[0].mxu0
    %v2207 = vpop.f32.mrb[0].mxu0
    %v2208 = vpop.f32.mrb[0].mxu0
    %2209 = vdwg.mxu0
    %2210 = vmatprep.subr.bf16.mxu0 0
    %2211 = vmatpush1.bf16.msra.mxu0 %v2143
    %2212 = vmatprep.subr.bf16.mxu0 0
    %2213 = vmatpush1.bf16.msra.mxu0 %v2144
    %2214 = vmatprep.subr.bf16.mxu0 0
    %2215 = vmatpush1.bf16.msra.mxu0 %v2145
    %2216 = vmatprep.subr.bf16.mxu0 0
    %2217 = vmatpush1.bf16.msra.mxu0 %v2146
    %2218 = vmatprep.subr.bf16.mxu0 0
    %2219 = vmatpush1.bf16.msra.mxu0 0
    %2220 = vmatprep.subr.bf16.mxu0 0
    %2221 = vmatpush1.bf16.msra.mxu0 0
    %2222 = vmatprep.subr.bf16.mxu0 0
    %2223 = vmatpush1.bf16.msra.mxu0 0
    %2224 = vmatprep.subr.bf16.mxu0 0
    %2225 = vmatpush1.bf16.msra.mxu0 0
    %2226 = vmatprep.subr.bf16.mxu0 0
    %2227 = vmatpush1.bf16.msra.mxu0 0
    %2228 = vmatprep.subr.bf16.mxu0 0
    %2229 = vmatpush1.bf16.msra.mxu0 0
    %2230 = vmatprep.subr.bf16.mxu0 0
    %2231 = vmatpush1.bf16.msra.mxu0 0
    %2232 = vmatprep.subr.bf16.mxu0 0
    %2233 = vmatpush1.bf16.msra.mxu0 0
    %2234 = vmatprep.subr.bf16.mxu0 0
    %2235 = vmatpush1.bf16.msra.mxu0 0
    %2236 = vmatprep.subr.bf16.mxu0 0
    %2237 = vmatpush1.bf16.msra.mxu0 0
    %2238 = vmatprep.subr.bf16.mxu0 0
    %2239 = vmatpush1.bf16.msra.mxu0 0
    %2240 = vmatprep.subr.bf16.mxu0 0
    %2241 = vmatpush1.bf16.msra.mxu0 0
    %2242 = vmatprep.mubr.bf16.mxu0 0
    %2243 = vmatmul.mubr.bf16.gmra.mrb[0].mxu0 %v2168
    %v2244 = vpop.f32.mrb[0].mxu0
    %v2245 = vadd.f32 %v2205, %v2244
    %v2246 = vpop.f32.mrb[0].mxu0
    %v2247 = vpop.f32.mrb[0].mxu0
    %v2248 = vpop.f32.mrb[0].mxu0
    %2249 = vdwg.mxu0
    %v2290 = vunpack.c.l.b16 %v1963
    %v2291 = vunpack.c.l.b16 %v1964
    %v2292 = vunpack.c.l.b16 %v1965
    %v2293 = vunpack.c.l.b16 %v1966
    %v2294 = vunpack.c.l.b16 %v1967
    %v2295 = vunpack.c.l.b16 %v1968
    %v2296 = vunpack.c.l.b16 %v1969
    %v2297 = vunpack.c.l.b16 %v1970
    %v2298 = vunpack.c.l.b16 %v1971
    %v2299 = vunpack.c.l.b16 %v1972
    %v2300 = vunpack.c.l.b16 %v1973
    %v2301 = vunpack.c.l.b16 %v1974
    %v2302 = vunpack.c.l.b16 %v1975
    %v2303 = vunpack.c.l.b16 %v1976
    %v2304 = vunpack.c.l.b16 %v1977
    %v2305 = vunpack.c.l.b16 %v1978
    %v2306 = vunpack.c.l.b16 %v1979
    %v2307 = vunpack.c.l.b16 %v1980
    %v2308 = vunpack.c.l.b16 %v1981
    %v2309 = vunpack.c.l.b16 %v1982
    %v2310 = vunpack.c.l.b16 %v1983
    %v2311 = vunpack.c.l.b16 %v1984
    %v2312 = vunpack.c.l.b16 %v1985
    %v2313 = vunpack.c.l.b16 %v1986
    %v2314 = vunpack.c.l.b16 %v1987
    %v2315 = vunpack.c.l.b16 %v1988
    %v2316 = vunpack.c.l.b16 %v1989
    %v2317 = vunpack.c.l.b16 %v1990
    %v2318 = vunpack.c.l.b16 %v1991
    %v2319 = vunpack.c.l.b16 %v1992
    %v2320 = vunpack.c.l.b16 %v1993
    %v2321 = vunpack.c.l.b16 %v1994
    %v2322 = vunpack.c.l.b16 %v1995
    %v2323 = vunpack.c.l.b16 %v1996
    %v2324 = vunpack.c.l.b16 %v1997
    %v2325 = vunpack.c.l.b16 %v1998
    %v2326 = vunpack.c.l.b16 %v1999
    %v2327 = vunpack.c.l.b16 %v2000
    %v2328 = vunpack.c.l.b16 %v2001
    %v2329 = vunpack.c.l.b16 %v2002
    %v2330 = vpack.c.b16 %v2291, %v2290
    %v2331 = vpack.c.b16 %v2293, %v2292
    %v2332 = vpack.c.b16 %v2295, %v2294
    %v2333 = vpack.c.b16 %v2297, %v2296
    %v2334 = vpack.c.b16 %v2299, %v2298
    %v2335 = vpack.c.b16 %v2301, %v2300
    %v2336 = vpack.c.b16 %v2303, %v2302
    %v2337 = vpack.c.b16 %v2305, %v2304
    %v2338 = vpack.c.b16 %v2307, %v2306
    %v2339 = vpack.c.b16 %v2309, %v2308
    %v2340 = vpack.c.b16 %v2311, %v2310
    %v2341 = vpack.c.b16 %v2313, %v2312
    %v2342 = vpack.c.b16 %v2315, %v2314
    %v2343 = vpack.c.b16 %v2317, %v2316
    %v2344 = vpack.c.b16 %v2319, %v2318
    %v2345 = vpack.c.b16 %v2321, %v2320
    %v2346 = vpack.c.b16 %v2323, %v2322
    %v2347 = vpack.c.b16 %v2325, %v2324
    %v2348 = vpack.c.b16 %v2327, %v2326
    %v2349 = vpack.c.b16 %v2329, %v2328
    %v2371 = vsel %vm135, %v1962, 0
    %2373 = vmatprep.subr.bf16.mxu0 0
    %2374 = vmatpush1.bf16.msra.mxu0 %v2330
    %2375 = vmatprep.subr.bf16.mxu0 0
    %2376 = vmatpush1.bf16.msra.mxu0 %v2331
    %2377 = vmatprep.subr.bf16.mxu0 0
    %2378 = vmatpush1.bf16.msra.mxu0 %v2332
    %2379 = vmatprep.subr.bf16.mxu0 0
    %2380 = vmatpush1.bf16.msra.mxu0 %v2333
    %2381 = vmatprep.subr.bf16.mxu0 0
    %2382 = vmatpush1.bf16.msra.mxu0 %v2334
    %2383 = vmatprep.subr.bf16.mxu0 0
    %2384 = vmatpush1.bf16.msra.mxu0 %v2335
    %2385 = vmatprep.subr.bf16.mxu0 0
    %2386 = vmatpush1.bf16.msra.mxu0 %v2336
    %2387 = vmatprep.subr.bf16.mxu0 0
    %2388 = vmatpush1.bf16.msra.mxu0 %v2337
    %2389 = vmatprep.subr.bf16.mxu0 0
    %2390 = vmatpush1.bf16.msra.mxu0 %v2338
    %2391 = vmatprep.subr.bf16.mxu0 0
    %2392 = vmatpush1.bf16.msra.mxu0 %v2339
    %2393 = vmatprep.subr.bf16.mxu0 0
    %2394 = vmatpush1.bf16.msra.mxu0 %v2340
    %2395 = vmatprep.subr.bf16.mxu0 0
    %2396 = vmatpush1.bf16.msra.mxu0 %v2341
    %2397 = vmatprep.subr.bf16.mxu0 0
    %2398 = vmatpush1.bf16.msra.mxu0 %v2342
    %2399 = vmatprep.subr.bf16.mxu0 0
    %2400 = vmatpush1.bf16.msra.mxu0 %v2343
    %2401 = vmatprep.subr.bf16.mxu0 0
    %2402 = vmatpush1.bf16.msra.mxu0 %v2344
    %2403 = vmatprep.subr.bf16.mxu0 0
    %2404 = vmatpush1.bf16.msra.mxu0 %v2345
    %2405 = vmatprep.mubr.bf16.mxu0 %v1961
    %2406 = vmatmul.mubr.bf16.gmra.mrb[0].mxu0 %v1960
    %v2407 = vpop.f32.mrb[0].mxu0
    %v2408 = vadd.f32 %v2245, %v2407
    %v2409 = vpop.f32.mrb[0].mxu0
    %v2410 = vpop.f32.mrb[0].mxu0
    %v2411 = vpop.f32.mrb[0].mxu0
    %2412 = vdwg.mxu0
    %2413 = vmatprep.subr.bf16.mxu0 0
    %2414 = vmatpush1.bf16.msra.mxu0 %v2346
    %2415 = vmatprep.subr.bf16.mxu0 0
    %2416 = vmatpush1.bf16.msra.mxu0 %v2347
    %2417 = vmatprep.subr.bf16.mxu0 0
    %2418 = vmatpush1.bf16.msra.mxu0 %v2348
    %2419 = vmatprep.subr.bf16.mxu0 0
    %2420 = vmatpush1.bf16.msra.mxu0 %v2349
    %2421 = vmatprep.subr.bf16.mxu0 0
    %2422 = vmatpush1.bf16.msra.mxu0 0
    %2423 = vmatprep.subr.bf16.mxu0 0
    %2424 = vmatpush1.bf16.msra.mxu0 0
    %2425 = vmatprep.subr.bf16.mxu0 0
    %2426 = vmatpush1.bf16.msra.mxu0 0
    %2427 = vmatprep.subr.bf16.mxu0 0
    %2428 = vmatpush1.bf16.msra.mxu0 0
    %2429 = vmatprep.subr.bf16.mxu0 0
    %2430 = vmatpush1.bf16.msra.mxu0 0
    %2431 = vmatprep.subr.bf16.mxu0 0
    %2432 = vmatpush1.bf16.msra.mxu0 0
    %2433 = vmatprep.subr.bf16.mxu0 0
    %2434 = vmatpush1.bf16.msra.mxu0 0
    %2435 = vmatprep.subr.bf16.mxu0 0
    %2436 = vmatpush1.bf16.msra.mxu0 0
    %2437 = vmatprep.subr.bf16.mxu0 0
    %2438 = vmatpush1.bf16.msra.mxu0 0
    %2439 = vmatprep.subr.bf16.mxu0 0
    %2440 = vmatpush1.bf16.msra.mxu0 0
    %2441 = vmatprep.subr.bf16.mxu0 0
    %2442 = vmatpush1.bf16.msra.mxu0 0
    %2443 = vmatprep.subr.bf16.mxu0 0
    %2444 = vmatpush1.bf16.msra.mxu0 0
    %2445 = vmatprep.mubr.bf16.mxu0 0
    %2446 = vmatmul.mubr.bf16.gmra.mrb[0].mxu0 %v2371
    %v2447 = vpop.f32.mrb[0].mxu0
    %v2448 = vadd.f32 %v2408, %v2447
    %v2449 = vpop.f32.mrb[0].mxu0
    %v2450 = vpop.f32.mrb[0].mxu0
    %v2451 = vpop.f32.mrb[0].mxu0
    %2452 = vdwg.mxu0
    %v2453 = vpack.c.bf16 %v1951, %v1951
    %v2454 = vpack.c.bf16 %v1952, %v1952
    %v2455 = vpack.c.bf16 %v1953, %v1953
    %s2456 = scalar_lea.vmem %s9, 320
    %v2457 = vld [vmem:[%s2456] sm:$0xf]
    %v2458 = vld [vmem:[%s2456 + $0x4] sm:$0xf]
    %v2459 = vld [vmem:[%s2456 + $0x8] sm:$0xf]
    %v2460 = vld [vmem:[%s2456 + $0xc] sm:$0xf]
    %v2461 = vld [vmem:[%s2456 + $0x10] sm:$0xf]
    %v2462 = vld [vmem:[%s2456 + $0x14] sm:$0xf]
    %v2463 = vld [vmem:[%s2456 + $0x18] sm:$0xf]
    %v2464 = vld [vmem:[%s2456 + $0x1c] sm:$0xf]
    %v2465 = vld [vmem:[%s2456 + $0x20] sm:$0xf]
    %v2466 = vld [vmem:[%s2456 + $0x24] sm:$0xf]
    %v2467 = vld [vmem:[%s2456 + $0x28] sm:$0xf]
    %v2468 = vld [vmem:[%s2456 + $0x2c] sm:$0xf]
    %v2469 = vld [vmem:[%s2456 + $0x30] sm:$0xf]
    %v2470 = vld [vmem:[%s2456 + $0x34] sm:$0xf]
    %v2471 = vld [vmem:[%s2456 + $0x38] sm:$0xf]
    %v2472 = vld [vmem:[%s2456 + $0x3c] sm:$0xf]
    %v2473 = vld [vmem:[%s2456 + $0x40] sm:$0xf]
    %v2474 = vld [vmem:[%s2456 + $0x44] sm:$0xf]
    %v2475 = vld [vmem:[%s2456 + $0x48] sm:$0xf]
    %v2476 = vld [vmem:[%s2456 + $0x4c] sm:$0xf]
    %v2477 = vld [vmem:[%s2456 + $0x50] sm:$0xf]
    %v2478 = vld [vmem:[%s2456 + $0x54] sm:$0xf]
    %v2479 = vld [vmem:[%s2456 + $0x58] sm:$0xf]
    %v2480 = vld [vmem:[%s2456 + $0x5c] sm:$0xf]
    %v2481 = vld [vmem:[%s2456 + $0x60] sm:$0xf]
    %v2482 = vld [vmem:[%s2456 + $0x64] sm:$0xf]
    %v2483 = vld [vmem:[%s2456 + $0x68] sm:$0xf]
    %v2484 = vld [vmem:[%s2456 + $0x6c] sm:$0xf]
    %v2485 = vld [vmem:[%s2456 + $0x70] sm:$0xf]
    %v2486 = vld [vmem:[%s2456 + $0x74] sm:$0xf]
    %v2487 = vld [vmem:[%s2456 + $0x78] sm:$0xf]
    %v2488 = vld [vmem:[%s2456 + $0x7c] sm:$0xf]
    %v2489 = vld [vmem:[%s2456 + $0x80] sm:$0xf]
    %v2490 = vld [vmem:[%s2456 + $0x84] sm:$0xf]
    %v2491 = vld [vmem:[%s2456 + $0x88] sm:$0xf]
    %v2492 = vld [vmem:[%s2456 + $0x8c] sm:$0xf]
    %v2493 = vld [vmem:[%s2456 + $0x90] sm:$0xf]
    %v2494 = vld [vmem:[%s2456 + $0x94] sm:$0xf]
    %v2495 = vld [vmem:[%s2456 + $0x98] sm:$0xf]
    %v2496 = vld [vmem:[%s2456 + $0x9c] sm:$0xf]
    %v2537 = vunpack.c.l.b16 %v2457
    %v2538 = vunpack.c.l.b16 %v2458
    %v2539 = vunpack.c.l.b16 %v2459
    %v2540 = vunpack.c.l.b16 %v2460
    %v2541 = vunpack.c.l.b16 %v2461
    %v2542 = vunpack.c.l.b16 %v2462
    %v2543 = vunpack.c.l.b16 %v2463
    %v2544 = vunpack.c.l.b16 %v2464
    %v2545 = vunpack.c.l.b16 %v2465
    %v2546 = vunpack.c.l.b16 %v2466
    %v2547 = vunpack.c.l.b16 %v2467
    %v2548 = vunpack.c.l.b16 %v2468
    %v2549 = vunpack.c.l.b16 %v2469
    %v2550 = vunpack.c.l.b16 %v2470
    %v2551 = vunpack.c.l.b16 %v2471
    %v2552 = vunpack.c.l.b16 %v2472
    %v2553 = vunpack.c.l.b16 %v2473
    %v2554 = vunpack.c.l.b16 %v2474
    %v2555 = vunpack.c.l.b16 %v2475
    %v2556 = vunpack.c.l.b16 %v2476
    %v2557 = vunpack.c.l.b16 %v2477
    %v2558 = vunpack.c.l.b16 %v2478
    %v2559 = vunpack.c.l.b16 %v2479
    %v2560 = vunpack.c.l.b16 %v2480
    %v2561 = vunpack.c.l.b16 %v2481
    %v2562 = vunpack.c.l.b16 %v2482
    %v2563 = vunpack.c.l.b16 %v2483
    %v2564 = vunpack.c.l.b16 %v2484
    %v2565 = vunpack.c.l.b16 %v2485
    %v2566 = vunpack.c.l.b16 %v2486
    %v2567 = vunpack.c.l.b16 %v2487
    %v2568 = vunpack.c.l.b16 %v2488
    %v2569 = vunpack.c.l.b16 %v2489
    %v2570 = vunpack.c.l.b16 %v2490
    %v2571 = vunpack.c.l.b16 %v2491
    %v2572 = vunpack.c.l.b16 %v2492
    %v2573 = vunpack.c.l.b16 %v2493
    %v2574 = vunpack.c.l.b16 %v2494
    %v2575 = vunpack.c.l.b16 %v2495
    %v2576 = vunpack.c.l.b16 %v2496
    %v2577 = vpack.c.b16 %v2538, %v2537
    %v2578 = vpack.c.b16 %v2540, %v2539
    %v2579 = vpack.c.b16 %v2542, %v2541
    %v2580 = vpack.c.b16 %v2544, %v2543
    %v2581 = vpack.c.b16 %v2546, %v2545
    %v2582 = vpack.c.b16 %v2548, %v2547
    %v2583 = vpack.c.b16 %v2550, %v2549
    %v2584 = vpack.c.b16 %v2552, %v2551
    %v2585 = vpack.c.b16 %v2554, %v2553
    %v2586 = vpack.c.b16 %v2556, %v2555
    %v2587 = vpack.c.b16 %v2558, %v2557
    %v2588 = vpack.c.b16 %v2560, %v2559
    %v2589 = vpack.c.b16 %v2562, %v2561
    %v2590 = vpack.c.b16 %v2564, %v2563
    %v2591 = vpack.c.b16 %v2566, %v2565
    %v2592 = vpack.c.b16 %v2568, %v2567
    %v2593 = vpack.c.b16 %v2570, %v2569
    %v2594 = vpack.c.b16 %v2572, %v2571
    %v2595 = vpack.c.b16 %v2574, %v2573
    %v2596 = vpack.c.b16 %v2576, %v2575
    %v2618 = vsel %vm135, %v2455, 0
    %2620 = vmatprep.subr.bf16.mxu0 0
    %2621 = vmatpush1.bf16.msra.mxu0 %v2577
    %2622 = vmatprep.subr.bf16.mxu0 0
    %2623 = vmatpush1.bf16.msra.mxu0 %v2578
    %2624 = vmatprep.subr.bf16.mxu0 0
    %2625 = vmatpush1.bf16.msra.mxu0 %v2579
    %2626 = vmatprep.subr.bf16.mxu0 0
    %2627 = vmatpush1.bf16.msra.mxu0 %v2580
    %2628 = vmatprep.subr.bf16.mxu0 0
    %2629 = vmatpush1.bf16.msra.mxu0 %v2581
    %2630 = vmatprep.subr.bf16.mxu0 0
    %2631 = vmatpush1.bf16.msra.mxu0 %v2582
    %2632 = vmatprep.subr.bf16.mxu0 0
    %2633 = vmatpush1.bf16.msra.mxu0 %v2583
    %2634 = vmatprep.subr.bf16.mxu0 0
    %2635 = vmatpush1.bf16.msra.mxu0 %v2584
    %2636 = vmatprep.subr.bf16.mxu0 0
    %2637 = vmatpush1.bf16.msra.mxu0 %v2585
    %2638 = vmatprep.subr.bf16.mxu0 0
    %2639 = vmatpush1.bf16.msra.mxu0 %v2586
    %2640 = vmatprep.subr.bf16.mxu0 0
    %2641 = vmatpush1.bf16.msra.mxu0 %v2587
    %2642 = vmatprep.subr.bf16.mxu0 0
    %2643 = vmatpush1.bf16.msra.mxu0 %v2588
    %2644 = vmatprep.subr.bf16.mxu0 0
    %2645 = vmatpush1.bf16.msra.mxu0 %v2589
    %2646 = vmatprep.subr.bf16.mxu0 0
    %2647 = vmatpush1.bf16.msra.mxu0 %v2590
    %2648 = vmatprep.subr.bf16.mxu0 0
    %2649 = vmatpush1.bf16.msra.mxu0 %v2591
    %2650 = vmatprep.subr.bf16.mxu0 0
    %2651 = vmatpush1.bf16.msra.mxu0 %v2592
    %2652 = vmatprep.mubr.bf16.mxu0 %v2454
    %2653 = vmatmul.mubr.bf16.gmra.mrb[0].mxu0 %v2453
    %v2654 = vpop.f32.mrb[0].mxu0
    %v2655 = vadd.f32 0.0, %v2654
    %v2656 = vpop.f32.mrb[0].mxu0
    %v2657 = vpop.f32.mrb[0].mxu0
    %v2658 = vpop.f32.mrb[0].mxu0
    %2659 = vdwg.mxu0
    %2660 = vmatprep.subr.bf16.mxu0 0
    %2661 = vmatpush1.bf16.msra.mxu0 %v2593
    %2662 = vmatprep.subr.bf16.mxu0 0
    %2663 = vmatpush1.bf16.msra.mxu0 %v2594
    %2664 = vmatprep.subr.bf16.mxu0 0
    %2665 = vmatpush1.bf16.msra.mxu0 %v2595
    %2666 = vmatprep.subr.bf16.mxu0 0
    %2667 = vmatpush1.bf16.msra.mxu0 %v2596
    %2668 = vmatprep.subr.bf16.mxu0 0
    %2669 = vmatpush1.bf16.msra.mxu0 0
    %2670 = vmatprep.subr.bf16.mxu0 0
    %2671 = vmatpush1.bf16.msra.mxu0 0
    %2672 = vmatprep.subr.bf16.mxu0 0
    %2673 = vmatpush1.bf16.msra.mxu0 0
    %2674 = vmatprep.subr.bf16.mxu0 0
    %2675 = vmatpush1.bf16.msra.mxu0 0
    %2676 = vmatprep.subr.bf16.mxu0 0
    %2677 = vmatpush1.bf16.msra.mxu0 0
    %2678 = vmatprep.subr.bf16.mxu0 0
    %2679 = vmatpush1.bf16.msra.mxu0 0
    %2680 = vmatprep.subr.bf16.mxu0 0
    %2681 = vmatpush1.bf16.msra.mxu0 0
    %2682 = vmatprep.subr.bf16.mxu0 0
    %2683 = vmatpush1.bf16.msra.mxu0 0
    %2684 = vmatprep.subr.bf16.mxu0 0
    %2685 = vmatpush1.bf16.msra.mxu0 0
    %2686 = vmatprep.subr.bf16.mxu0 0
    %2687 = vmatpush1.bf16.msra.mxu0 0
    %2688 = vmatprep.subr.bf16.mxu0 0
    %2689 = vmatpush1.bf16.msra.mxu0 0
    %2690 = vmatprep.subr.bf16.mxu0 0
    %2691 = vmatpush1.bf16.msra.mxu0 0
    %2692 = vmatprep.mubr.bf16.mxu0 0
    %2693 = vmatmul.mubr.bf16.gmra.mrb[0].mxu0 %v2618
    %v2694 = vpop.f32.mrb[0].mxu0
    %v2695 = vadd.f32 %v2655, %v2694
    %v2696 = vpop.f32.mrb[0].mxu0
    %v2697 = vpop.f32.mrb[0].mxu0
    %v2698 = vpop.f32.mrb[0].mxu0
    %2699 = vdwg.mxu0
    %v2700 = vadd.f32 %v2448, %v2695
    %v2701 = vpack.c.bf16 %v1954, %v1954
    %v2702 = vpack.c.bf16 %v1955, %v1955
    %v2703 = vpack.c.bf16 %v1956, %v1956
    %s2704 = scalar_lea.vmem %s9, 480
    %v2705 = vld [vmem:[%s2704] sm:$0xf]
    %v2706 = vld [vmem:[%s2704 + $0x4] sm:$0xf]
    %v2707 = vld [vmem:[%s2704 + $0x8] sm:$0xf]
    %v2708 = vld [vmem:[%s2704 + $0xc] sm:$0xf]
    %v2709 = vld [vmem:[%s2704 + $0x10] sm:$0xf]
    %v2710 = vld [vmem:[%s2704 + $0x14] sm:$0xf]
    %v2711 = vld [vmem:[%s2704 + $0x18] sm:$0xf]
    %v2712 = vld [vmem:[%s2704 + $0x1c] sm:$0xf]
    %v2713 = vld [vmem:[%s2704 + $0x20] sm:$0xf]
    %v2714 = vld [vmem:[%s2704 + $0x24] sm:$0xf]
    %v2715 = vld [vmem:[%s2704 + $0x28] sm:$0xf]
    %v2716 = vld [vmem:[%s2704 + $0x2c] sm:$0xf]
    %v2717 = vld [vmem:[%s2704 + $0x30] sm:$0xf]
    %v2718 = vld [vmem:[%s2704 + $0x34] sm:$0xf]
    %v2719 = vld [vmem:[%s2704 + $0x38] sm:$0xf]
    %v2720 = vld [vmem:[%s2704 + $0x3c] sm:$0xf]
    %v2721 = vld [vmem:[%s2704 + $0x40] sm:$0xf]
    %v2722 = vld [vmem:[%s2704 + $0x44] sm:$0xf]
    %v2723 = vld [vmem:[%s2704 + $0x48] sm:$0xf]
    %v2724 = vld [vmem:[%s2704 + $0x4c] sm:$0xf]
    %v2725 = vld [vmem:[%s2704 + $0x50] sm:$0xf]
    %v2726 = vld [vmem:[%s2704 + $0x54] sm:$0xf]
    %v2727 = vld [vmem:[%s2704 + $0x58] sm:$0xf]
    %v2728 = vld [vmem:[%s2704 + $0x5c] sm:$0xf]
    %v2729 = vld [vmem:[%s2704 + $0x60] sm:$0xf]
    %v2730 = vld [vmem:[%s2704 + $0x64] sm:$0xf]
    %v2731 = vld [vmem:[%s2704 + $0x68] sm:$0xf]
    %v2732 = vld [vmem:[%s2704 + $0x6c] sm:$0xf]
    %v2733 = vld [vmem:[%s2704 + $0x70] sm:$0xf]
    %v2734 = vld [vmem:[%s2704 + $0x74] sm:$0xf]
    %v2735 = vld [vmem:[%s2704 + $0x78] sm:$0xf]
    %v2736 = vld [vmem:[%s2704 + $0x7c] sm:$0xf]
    %v2737 = vld [vmem:[%s2704 + $0x80] sm:$0xf]
    %v2738 = vld [vmem:[%s2704 + $0x84] sm:$0xf]
    %v2739 = vld [vmem:[%s2704 + $0x88] sm:$0xf]
    %v2740 = vld [vmem:[%s2704 + $0x8c] sm:$0xf]
    %v2741 = vld [vmem:[%s2704 + $0x90] sm:$0xf]
    %v2742 = vld [vmem:[%s2704 + $0x94] sm:$0xf]
    %v2743 = vld [vmem:[%s2704 + $0x98] sm:$0xf]
    %v2744 = vld [vmem:[%s2704 + $0x9c] sm:$0xf]
    %v2785 = vunpack.c.l.b16 %v2705
    %v2786 = vunpack.c.l.b16 %v2706
    %v2787 = vunpack.c.l.b16 %v2707
    %v2788 = vunpack.c.l.b16 %v2708
    %v2789 = vunpack.c.l.b16 %v2709
    %v2790 = vunpack.c.l.b16 %v2710
    %v2791 = vunpack.c.l.b16 %v2711
    %v2792 = vunpack.c.l.b16 %v2712
    %v2793 = vunpack.c.l.b16 %v2713
    %v2794 = vunpack.c.l.b16 %v2714
    %v2795 = vunpack.c.l.b16 %v2715
    %v2796 = vunpack.c.l.b16 %v2716
    %v2797 = vunpack.c.l.b16 %v2717
    %v2798 = vunpack.c.l.b16 %v2718
    %v2799 = vunpack.c.l.b16 %v2719
    %v2800 = vunpack.c.l.b16 %v2720
    %v2801 = vunpack.c.l.b16 %v2721
    %v2802 = vunpack.c.l.b16 %v2722
    %v2803 = vunpack.c.l.b16 %v2723
    %v2804 = vunpack.c.l.b16 %v2724
    %v2805 = vunpack.c.l.b16 %v2725
    %v2806 = vunpack.c.l.b16 %v2726
    %v2807 = vunpack.c.l.b16 %v2727
    %v2808 = vunpack.c.l.b16 %v2728
    %v2809 = vunpack.c.l.b16 %v2729
    %v2810 = vunpack.c.l.b16 %v2730
    %v2811 = vunpack.c.l.b16 %v2731
    %v2812 = vunpack.c.l.b16 %v2732
    %v2813 = vunpack.c.l.b16 %v2733
    %v2814 = vunpack.c.l.b16 %v2734
    %v2815 = vunpack.c.l.b16 %v2735
    %v2816 = vunpack.c.l.b16 %v2736
    %v2817 = vunpack.c.l.b16 %v2737
    %v2818 = vunpack.c.l.b16 %v2738
    %v2819 = vunpack.c.l.b16 %v2739
    %v2820 = vunpack.c.l.b16 %v2740
    %v2821 = vunpack.c.l.b16 %v2741
    %v2822 = vunpack.c.l.b16 %v2742
    %v2823 = vunpack.c.l.b16 %v2743
    %v2824 = vunpack.c.l.b16 %v2744
    %v2825 = vpack.c.b16 %v2786, %v2785
    %v2826 = vpack.c.b16 %v2788, %v2787
    %v2827 = vpack.c.b16 %v2790, %v2789
    %v2828 = vpack.c.b16 %v2792, %v2791
    %v2829 = vpack.c.b16 %v2794, %v2793
    %v2830 = vpack.c.b16 %v2796, %v2795
    %v2831 = vpack.c.b16 %v2798, %v2797
    %v2832 = vpack.c.b16 %v2800, %v2799
    %v2833 = vpack.c.b16 %v2802, %v2801
    %v2834 = vpack.c.b16 %v2804, %v2803
    %v2835 = vpack.c.b16 %v2806, %v2805
    %v2836 = vpack.c.b16 %v2808, %v2807
    %v2837 = vpack.c.b16 %v2810, %v2809
    %v2838 = vpack.c.b16 %v2812, %v2811
    %v2839 = vpack.c.b16 %v2814, %v2813
    %v2840 = vpack.c.b16 %v2816, %v2815
    %v2841 = vpack.c.b16 %v2818, %v2817
    %v2842 = vpack.c.b16 %v2820, %v2819
    %v2843 = vpack.c.b16 %v2822, %v2821
    %v2844 = vpack.c.b16 %v2824, %v2823
    %v2866 = vsel %vm135, %v2703, 0
    %2868 = vmatprep.subr.bf16.mxu0 0
    %2869 = vmatpush1.bf16.msra.mxu0 %v2825
    %2870 = vmatprep.subr.bf16.mxu0 0
    %2871 = vmatpush1.bf16.msra.mxu0 %v2826
    %2872 = vmatprep.subr.bf16.mxu0 0
    %2873 = vmatpush1.bf16.msra.mxu0 %v2827
    %2874 = vmatprep.subr.bf16.mxu0 0
    %2875 = vmatpush1.bf16.msra.mxu0 %v2828
    %2876 = vmatprep.subr.bf16.mxu0 0
    %2877 = vmatpush1.bf16.msra.mxu0 %v2829
    %2878 = vmatprep.subr.bf16.mxu0 0
    %2879 = vmatpush1.bf16.msra.mxu0 %v2830
    %2880 = vmatprep.subr.bf16.mxu0 0
    %2881 = vmatpush1.bf16.msra.mxu0 %v2831
    %2882 = vmatprep.subr.bf16.mxu0 0
    %2883 = vmatpush1.bf16.msra.mxu0 %v2832
    %2884 = vmatprep.subr.bf16.mxu0 0
    %2885 = vmatpush1.bf16.msra.mxu0 %v2833
    %2886 = vmatprep.subr.bf16.mxu0 0
    %2887 = vmatpush1.bf16.msra.mxu0 %v2834
    %2888 = vmatprep.subr.bf16.mxu0 0
    %2889 = vmatpush1.bf16.msra.mxu0 %v2835
    %2890 = vmatprep.subr.bf16.mxu0 0
    %2891 = vmatpush1.bf16.msra.mxu0 %v2836
    %2892 = vmatprep.subr.bf16.mxu0 0
    %2893 = vmatpush1.bf16.msra.mxu0 %v2837
    %2894 = vmatprep.subr.bf16.mxu0 0
    %2895 = vmatpush1.bf16.msra.mxu0 %v2838
    %2896 = vmatprep.subr.bf16.mxu0 0
    %2897 = vmatpush1.bf16.msra.mxu0 %v2839
    %2898 = vmatprep.subr.bf16.mxu0 0
    %2899 = vmatpush1.bf16.msra.mxu0 %v2840
    %2900 = vmatprep.mubr.bf16.mxu0 %v2702
    %2901 = vmatmul.mubr.bf16.gmra.mrb[0].mxu0 %v2701
    %v2902 = vpop.f32.mrb[0].mxu0
    %v2903 = vadd.f32 0.0, %v2902
    %v2904 = vpop.f32.mrb[0].mxu0
    %v2905 = vpop.f32.mrb[0].mxu0
    %v2906 = vpop.f32.mrb[0].mxu0
    %2907 = vdwg.mxu0
    %2908 = vmatprep.subr.bf16.mxu0 0
    %2909 = vmatpush1.bf16.msra.mxu0 %v2841
    %2910 = vmatprep.subr.bf16.mxu0 0
    %2911 = vmatpush1.bf16.msra.mxu0 %v2842
    %2912 = vmatprep.subr.bf16.mxu0 0
    %2913 = vmatpush1.bf16.msra.mxu0 %v2843
    %2914 = vmatprep.subr.bf16.mxu0 0
    %2915 = vmatpush1.bf16.msra.mxu0 %v2844
    %2916 = vmatprep.subr.bf16.mxu0 0
    %2917 = vmatpush1.bf16.msra.mxu0 0
    %2918 = vmatprep.subr.bf16.mxu0 0
    %2919 = vmatpush1.bf16.msra.mxu0 0
    %2920 = vmatprep.subr.bf16.mxu0 0
    %2921 = vmatpush1.bf16.msra.mxu0 0
    %2922 = vmatprep.subr.bf16.mxu0 0
    %2923 = vmatpush1.bf16.msra.mxu0 0
    %2924 = vmatprep.subr.bf16.mxu0 0
    %2925 = vmatpush1.bf16.msra.mxu0 0
    %2926 = vmatprep.subr.bf16.mxu0 0
    %2927 = vmatpush1.bf16.msra.mxu0 0
    %2928 = vmatprep.subr.bf16.mxu0 0
    %2929 = vmatpush1.bf16.msra.mxu0 0
    %2930 = vmatprep.subr.bf16.mxu0 0
    %2931 = vmatpush1.bf16.msra.mxu0 0
    %2932 = vmatprep.subr.bf16.mxu0 0
    %2933 = vmatpush1.bf16.msra.mxu0 0
    %2934 = vmatprep.subr.bf16.mxu0 0
    %2935 = vmatpush1.bf16.msra.mxu0 0
    %2936 = vmatprep.subr.bf16.mxu0 0
    %2937 = vmatpush1.bf16.msra.mxu0 0
    %2938 = vmatprep.subr.bf16.mxu0 0
    %2939 = vmatpush1.bf16.msra.mxu0 0
    %2940 = vmatprep.mubr.bf16.mxu0 0
    %2941 = vmatmul.mubr.bf16.gmra.mrb[0].mxu0 %v2866
    %v2942 = vpop.f32.mrb[0].mxu0
    %v2943 = vadd.f32 %v2903, %v2942
    %v2944 = vpop.f32.mrb[0].mxu0
    %v2945 = vpop.f32.mrb[0].mxu0
    %v2946 = vpop.f32.mrb[0].mxu0
    %2947 = vdwg.mxu0
    %v2948 = vadd.f32 %v2700, %v2943
    %v2949 = vpack.c.bf16 %v1957, %v1957
    %v2950 = vpack.c.bf16 %v1958, %v1958
    %v2951 = vpack.c.bf16 %v1959, %v1959
    %s2952 = scalar_lea.vmem %s9, 640
    %v2953 = vld [vmem:[%s2952] sm:$0xf]
    %v2954 = vld [vmem:[%s2952 + $0x4] sm:$0xf]
    %v2955 = vld [vmem:[%s2952 + $0x8] sm:$0xf]
    %v2956 = vld [vmem:[%s2952 + $0xc] sm:$0xf]
    %v2957 = vld [vmem:[%s2952 + $0x10] sm:$0xf]
    %v2958 = vld [vmem:[%s2952 + $0x14] sm:$0xf]
    %v2959 = vld [vmem:[%s2952 + $0x18] sm:$0xf]
    %v2960 = vld [vmem:[%s2952 + $0x1c] sm:$0xf]
    %v2961 = vld [vmem:[%s2952 + $0x20] sm:$0xf]
    %v2962 = vld [vmem:[%s2952 + $0x24] sm:$0xf]
    %v2963 = vld [vmem:[%s2952 + $0x28] sm:$0xf]
    %v2964 = vld [vmem:[%s2952 + $0x2c] sm:$0xf]
    %v2965 = vld [vmem:[%s2952 + $0x30] sm:$0xf]
    %v2966 = vld [vmem:[%s2952 + $0x34] sm:$0xf]
    %v2967 = vld [vmem:[%s2952 + $0x38] sm:$0xf]
    %v2968 = vld [vmem:[%s2952 + $0x3c] sm:$0xf]
    %v2969 = vld [vmem:[%s2952 + $0x40] sm:$0xf]
    %v2970 = vld [vmem:[%s2952 + $0x44] sm:$0xf]
    %v2971 = vld [vmem:[%s2952 + $0x48] sm:$0xf]
    %v2972 = vld [vmem:[%s2952 + $0x4c] sm:$0xf]
    %v2973 = vld [vmem:[%s2952 + $0x50] sm:$0xf]
    %v2974 = vld [vmem:[%s2952 + $0x54] sm:$0xf]
    %v2975 = vld [vmem:[%s2952 + $0x58] sm:$0xf]
    %v2976 = vld [vmem:[%s2952 + $0x5c] sm:$0xf]
    %v2977 = vld [vmem:[%s2952 + $0x60] sm:$0xf]
    %v2978 = vld [vmem:[%s2952 + $0x64] sm:$0xf]
    %v2979 = vld [vmem:[%s2952 + $0x68] sm:$0xf]
    %v2980 = vld [vmem:[%s2952 + $0x6c] sm:$0xf]
    %v2981 = vld [vmem:[%s2952 + $0x70] sm:$0xf]
    %v2982 = vld [vmem:[%s2952 + $0x74] sm:$0xf]
    %v2983 = vld [vmem:[%s2952 + $0x78] sm:$0xf]
    %v2984 = vld [vmem:[%s2952 + $0x7c] sm:$0xf]
    %v2985 = vld [vmem:[%s2952 + $0x80] sm:$0xf]
    %v2986 = vld [vmem:[%s2952 + $0x84] sm:$0xf]
    %v2987 = vld [vmem:[%s2952 + $0x88] sm:$0xf]
    %v2988 = vld [vmem:[%s2952 + $0x8c] sm:$0xf]
    %v2989 = vld [vmem:[%s2952 + $0x90] sm:$0xf]
    %v2990 = vld [vmem:[%s2952 + $0x94] sm:$0xf]
    %v2991 = vld [vmem:[%s2952 + $0x98] sm:$0xf]
    %v2992 = vld [vmem:[%s2952 + $0x9c] sm:$0xf]
    %v3033 = vunpack.c.l.b16 %v2953
    %v3034 = vunpack.c.l.b16 %v2954
    %v3035 = vunpack.c.l.b16 %v2955
    %v3036 = vunpack.c.l.b16 %v2956
    %v3037 = vunpack.c.l.b16 %v2957
    %v3038 = vunpack.c.l.b16 %v2958
    %v3039 = vunpack.c.l.b16 %v2959
    %v3040 = vunpack.c.l.b16 %v2960
    %v3041 = vunpack.c.l.b16 %v2961
    %v3042 = vunpack.c.l.b16 %v2962
    %v3043 = vunpack.c.l.b16 %v2963
    %v3044 = vunpack.c.l.b16 %v2964
    %v3045 = vunpack.c.l.b16 %v2965
    %v3046 = vunpack.c.l.b16 %v2966
    %v3047 = vunpack.c.l.b16 %v2967
    %v3048 = vunpack.c.l.b16 %v2968
    %v3049 = vunpack.c.l.b16 %v2969
    %v3050 = vunpack.c.l.b16 %v2970
    %v3051 = vunpack.c.l.b16 %v2971
    %v3052 = vunpack.c.l.b16 %v2972
    %v3053 = vunpack.c.l.b16 %v2973
    %v3054 = vunpack.c.l.b16 %v2974
    %v3055 = vunpack.c.l.b16 %v2975
    %v3056 = vunpack.c.l.b16 %v2976
    %v3057 = vunpack.c.l.b16 %v2977
    %v3058 = vunpack.c.l.b16 %v2978
    %v3059 = vunpack.c.l.b16 %v2979
    %v3060 = vunpack.c.l.b16 %v2980
    %v3061 = vunpack.c.l.b16 %v2981
    %v3062 = vunpack.c.l.b16 %v2982
    %v3063 = vunpack.c.l.b16 %v2983
    %v3064 = vunpack.c.l.b16 %v2984
    %v3065 = vunpack.c.l.b16 %v2985
    %v3066 = vunpack.c.l.b16 %v2986
    %v3067 = vunpack.c.l.b16 %v2987
    %v3068 = vunpack.c.l.b16 %v2988
    %v3069 = vunpack.c.l.b16 %v2989
    %v3070 = vunpack.c.l.b16 %v2990
    %v3071 = vunpack.c.l.b16 %v2991
    %v3072 = vunpack.c.l.b16 %v2992
    %v3073 = vpack.c.b16 %v3034, %v3033
    %v3074 = vpack.c.b16 %v3036, %v3035
    %v3075 = vpack.c.b16 %v3038, %v3037
    %v3076 = vpack.c.b16 %v3040, %v3039
    %v3077 = vpack.c.b16 %v3042, %v3041
    %v3078 = vpack.c.b16 %v3044, %v3043
    %v3079 = vpack.c.b16 %v3046, %v3045
    %v3080 = vpack.c.b16 %v3048, %v3047
    %v3081 = vpack.c.b16 %v3050, %v3049
    %v3082 = vpack.c.b16 %v3052, %v3051
    %v3083 = vpack.c.b16 %v3054, %v3053
    %v3084 = vpack.c.b16 %v3056, %v3055
    %v3085 = vpack.c.b16 %v3058, %v3057
    %v3086 = vpack.c.b16 %v3060, %v3059
    %v3087 = vpack.c.b16 %v3062, %v3061
    %v3088 = vpack.c.b16 %v3064, %v3063
    %v3089 = vpack.c.b16 %v3066, %v3065
    %v3090 = vpack.c.b16 %v3068, %v3067
    %v3091 = vpack.c.b16 %v3070, %v3069
    %v3092 = vpack.c.b16 %v3072, %v3071
    %v3114 = vsel %vm135, %v2951, 0
    %3116 = vmatprep.subr.bf16.mxu0 0
    %3117 = vmatpush1.bf16.msra.mxu0 %v3073
    %3118 = vmatprep.subr.bf16.mxu0 0
    %3119 = vmatpush1.bf16.msra.mxu0 %v3074
    %3120 = vmatprep.subr.bf16.mxu0 0
    %3121 = vmatpush1.bf16.msra.mxu0 %v3075
    %3122 = vmatprep.subr.bf16.mxu0 0
    %3123 = vmatpush1.bf16.msra.mxu0 %v3076
    %3124 = vmatprep.subr.bf16.mxu0 0
    %3125 = vmatpush1.bf16.msra.mxu0 %v3077
    %3126 = vmatprep.subr.bf16.mxu0 0
    %3127 = vmatpush1.bf16.msra.mxu0 %v3078
    %3128 = vmatprep.subr.bf16.mxu0 0
    %3129 = vmatpush1.bf16.msra.mxu0 %v3079
    %3130 = vmatprep.subr.bf16.mxu0 0
    %3131 = vmatpush1.bf16.msra.mxu0 %v3080
    %3132 = vmatprep.subr.bf16.mxu0 0
    %3133 = vmatpush1.bf16.msra.mxu0 %v3081
    %3134 = vmatprep.subr.bf16.mxu0 0
    %3135 = vmatpush1.bf16.msra.mxu0 %v3082
    %3136 = vmatprep.subr.bf16.mxu0 0
    %3137 = vmatpush1.bf16.msra.mxu0 %v3083
    %3138 = vmatprep.subr.bf16.mxu0 0
    %3139 = vmatpush1.bf16.msra.mxu0 %v3084
    %3140 = vmatprep.subr.bf16.mxu0 0
    %3141 = vmatpush1.bf16.msra.mxu0 %v3085
    %3142 = vmatprep.subr.bf16.mxu0 0
    %3143 = vmatpush1.bf16.msra.mxu0 %v3086
    %3144 = vmatprep.subr.bf16.mxu0 0
    %3145 = vmatpush1.bf16.msra.mxu0 %v3087
    %3146 = vmatprep.subr.bf16.mxu0 0
    %3147 = vmatpush1.bf16.msra.mxu0 %v3088
    %3148 = vmatprep.mubr.bf16.mxu0 %v2950
    %3149 = vmatmul.mubr.bf16.gmra.mrb[0].mxu0 %v2949
    %v3150 = vpop.f32.mrb[0].mxu0
    %v3151 = vadd.f32 0.0, %v3150
    %v3152 = vpop.f32.mrb[0].mxu0
    %v3153 = vpop.f32.mrb[0].mxu0
    %v3154 = vpop.f32.mrb[0].mxu0
    %3155 = vdwg.mxu0
    %3156 = vmatprep.subr.bf16.mxu0 0
    %3157 = vmatpush1.bf16.msra.mxu0 %v3089
    %3158 = vmatprep.subr.bf16.mxu0 0
    %3159 = vmatpush1.bf16.msra.mxu0 %v3090
    %3160 = vmatprep.subr.bf16.mxu0 0
    %3161 = vmatpush1.bf16.msra.mxu0 %v3091
    %3162 = vmatprep.subr.bf16.mxu0 0
    %3163 = vmatpush1.bf16.msra.mxu0 %v3092
    %3164 = vmatprep.subr.bf16.mxu0 0
    %3165 = vmatpush1.bf16.msra.mxu0 0
    %3166 = vmatprep.subr.bf16.mxu0 0
    %3167 = vmatpush1.bf16.msra.mxu0 0
    %3168 = vmatprep.subr.bf16.mxu0 0
    %3169 = vmatpush1.bf16.msra.mxu0 0
    %3170 = vmatprep.subr.bf16.mxu0 0
    %3171 = vmatpush1.bf16.msra.mxu0 0
    %3172 = vmatprep.subr.bf16.mxu0 0
    %3173 = vmatpush1.bf16.msra.mxu0 0
    %3174 = vmatprep.subr.bf16.mxu0 0
    %3175 = vmatpush1.bf16.msra.mxu0 0
    %3176 = vmatprep.subr.bf16.mxu0 0
    %3177 = vmatpush1.bf16.msra.mxu0 0
    %3178 = vmatprep.subr.bf16.mxu0 0
    %3179 = vmatpush1.bf16.msra.mxu0 0
    %3180 = vmatprep.subr.bf16.mxu0 0
    %3181 = vmatpush1.bf16.msra.mxu0 0
    %3182 = vmatprep.subr.bf16.mxu0 0
    %3183 = vmatpush1.bf16.msra.mxu0 0
    %3184 = vmatprep.subr.bf16.mxu0 0
    %3185 = vmatpush1.bf16.msra.mxu0 0
    %3186 = vmatprep.subr.bf16.mxu0 0
    %3187 = vmatpush1.bf16.msra.mxu0 0
    %3188 = vmatprep.mubr.bf16.mxu0 0
    %3189 = vmatmul.mubr.bf16.gmra.mrb[0].mxu0 %v3114
    %v3190 = vpop.f32.mrb[0].mxu0
    %v3191 = vadd.f32 %v3151, %v3190
    %v3192 = vpop.f32.mrb[0].mxu0
    %v3193 = vpop.f32.mrb[0].mxu0
    %v3194 = vpop.f32.mrb[0].mxu0
    %3195 = vdwg.mxu0
    %v3196 = vadd.f32 %v2948, %v3191
    %v3197 = vld [vmem:[%s10] sm:$0x1]
    %v3199 = vlaneseq
    %v3200 = vshrl.u32 %v3199, 7
    %v3201 = vsub.s32 0, %v3200
    %v3202 = vrot.slane %v3197, %v3201
    %v3204 = vadd.f32 %v3196, %v3202
    %v3205 = vtanh.pop %v3204
    %v3206 = vpack.c.bf16 %v3205, %v3205
    %v3207 = vld [vmem:[%s11] sm:$0xf]
    %v3208 = vld [vmem:[%s11 + $0x4] sm:$0xf]
    %v3209 = vld [vmem:[%s11 + $0x8] sm:$0xf]
    %v3210 = vld [vmem:[%s11 + $0xc] sm:$0xf]
    %v3211 = vld [vmem:[%s11 + $0x10] sm:$0xf]
    %v3212 = vld [vmem:[%s11 + $0x14] sm:$0xf]
    %v3213 = vld [vmem:[%s11 + $0x18] sm:$0xf]
    %v3214 = vld [vmem:[%s11 + $0x1c] sm:$0xf]
    %v3215 = vld [vmem:[%s12] sm:$0x1]
    %v3217 = vlaneseq
    %v3218 = vshrl.u32 %v3217, 7
    %v3219 = vsub.s32 0, %v3218
    %v3220 = vrot.slane %v3215, %v3219
    %v3230 = vunpack.c.l.b16 %v3207
    %v3231 = vunpack.c.l.b16 %v3208
    %v3232 = vunpack.c.l.b16 %v3209
    %v3233 = vunpack.c.l.b16 %v3210
    %v3234 = vunpack.c.l.b16 %v3211
    %v3235 = vunpack.c.l.b16 %v3212
    %v3236 = vunpack.c.l.b16 %v3213
    %v3237 = vunpack.c.l.b16 %v3214
    %v3238 = vpack.c.b16 %v3231, %v3230
    %v3239 = vpack.c.b16 %v3233, %v3232
    %v3240 = vpack.c.b16 %v3235, %v3234
    %v3241 = vpack.c.b16 %v3237, %v3236
    %v3247 = vsel %vm135, %v3206, 0
    %3249 = vmatprep.subr.bf16.mxu0 0
    %3250 = vmatpush1.bf16.msra.mxu0 %v3238
    %3251 = vmatprep.subr.bf16.mxu0 0
    %3252 = vmatpush1.bf16.msra.mxu0 %v3239
    %3253 = vmatprep.subr.bf16.mxu0 0
    %3254 = vmatpush1.bf16.msra.mxu0 %v3240
    %3255 = vmatprep.subr.bf16.mxu0 0
    %3256 = vmatpush1.bf16.msra.mxu0 %v3241
    %3257 = vmatprep.subr.bf16.mxu0 0
    %3258 = vmatpush1.bf16.msra.mxu0 0
    %3259 = vmatprep.subr.bf16.mxu0 0
    %3260 = vmatpush1.bf16.msra.mxu0 0
    %3261 = vmatprep.subr.bf16.mxu0 0
    %3262 = vmatpush1.bf16.msra.mxu0 0
    %3263 = vmatprep.subr.bf16.mxu0 0
    %3264 = vmatpush1.bf16.msra.mxu0 0
    %3265 = vmatprep.subr.bf16.mxu0 0
    %3266 = vmatpush1.bf16.msra.mxu0 0
    %3267 = vmatprep.subr.bf16.mxu0 0
    %3268 = vmatpush1.bf16.msra.mxu0 0
    %3269 = vmatprep.subr.bf16.mxu0 0
    %3270 = vmatpush1.bf16.msra.mxu0 0
    %3271 = vmatprep.subr.bf16.mxu0 0
    %3272 = vmatpush1.bf16.msra.mxu0 0
    %3273 = vmatprep.subr.bf16.mxu0 0
    %3274 = vmatpush1.bf16.msra.mxu0 0
    %3275 = vmatprep.subr.bf16.mxu0 0
    %3276 = vmatpush1.bf16.msra.mxu0 0
    %3277 = vmatprep.subr.bf16.mxu0 0
    %3278 = vmatpush1.bf16.msra.mxu0 0
    %3279 = vmatprep.subr.bf16.mxu0 0
    %3280 = vmatpush1.bf16.msra.mxu0 0
    %3281 = vmatprep.mubr.bf16.mxu0 0
    %3282 = vmatmul.mubr.bf16.gmra.mrb[0].mxu0 %v3247
    %v3283 = vpop.f32.mrb[0].mxu0
    %v3284 = vadd.f32 %v3220, %v3283
    %v3285 = vpop.f32.mrb[0].mxu0
    %v3286 = vpop.f32.mrb[0].mxu0
    %v3287 = vpop.f32.mrb[0].mxu0
    %3288 = vdwg.mxu0
    %3289 = vst [vmem:[#allocation2] sm:$0xff] %v3284
    // Predicated region
    $region54: #{tpu_custom_call.1} parent=1 // pred_check
      _
    $region55: #{tpu_custom_call.1} parent=1 // pred_check_branch
      %3291 = sbr.rel (0) target = $region57
    $region56: #{tpu_custom_call.1} parent=1 // pred_region
      %s3293 = ssub.s32 128, 128
      %3294 = vsyncadd [#allocation3], %s3293
      %s3296 = sshll.u32 [#allocation2], 4
      %s3297 = int_to_ptr.vmem [resolvable:$true] %s3296
      %3299 = dma.vmem_to_hbm [thread:$0]  %s3297, 128, %s13, [#allocation3]
    $region57: #{tpu_custom_call.1} parent=1 // pred_fallthru
      _
    // Predicated region
    $region58: #{tpu_custom_call.1} parent=1 // pred_check
      _
    $region59: #{tpu_custom_call.1} parent=1 // pred_check_branch
      %3301 = sbr.rel (0) target = $region61
    $region60: #{tpu_custom_call.1} parent=1 // pred_region
      %3302 = dma.done [#allocation3], 128
    $region61: #{tpu_custom_call.1} parent=1 // pred_fallthru
      _
    %3303 = vsyncpa [#allocation3], 1

</llo_original>
